<compile_context>
chip_gen: v6e
topology: v6e:2x2x1
jax: 0.10.0
libtpu: 0.0.40
codegen_flags: <defaults>
</compile_context>

<pallas_src>
import math
from functools import partial

import jax
import jax.numpy as jnp
from jax.experimental import pallas as pl
from jax.experimental.pallas import tpu as pltpu


# ------------------------------- helpers ------------------------------------

def _round_up(x, m):
    return ((x + m - 1) // m) * m


class _KeyGen:
    """Hands out PRNG keys on demand (avoids miscounted split() pools)."""

    def __init__(self, key):
        self._key = key

    def __call__(self):
        self._key, sub = jax.random.split(self._key)
        return sub


# ----------------------------- layer norm kernel ----------------------------

def _layernorm_kernel(x_ref, g_ref, b_ref, o_ref):
    x = x_ref[...].astype(jnp.float32)
    mean = jnp.mean(x, axis=-1, keepdims=True)
    var = jnp.mean(jnp.square(x - mean), axis=-1, keepdims=True)
    y = (x - mean) * jax.lax.rsqrt(var + 1e-5)
    o_ref[...] = (y * g_ref[...] + b_ref[...]).astype(o_ref.dtype)


def layernorm(x2d, gamma, beta, *, tm=256):
    M, D = x2d.shape
    tm = M if M <= tm else tm
    Mp = _round_up(M, tm)
    x_p = x2d if Mp == M else jnp.pad(x2d, ((0, Mp - M), (0, 0)))
    out = pl.pallas_call(
        _layernorm_kernel,
        out_shape=jax.ShapeDtypeStruct((Mp, D), x2d.dtype),
        grid_spec=pltpu.PrefetchScalarGridSpec(
            num_scalar_prefetch=0,
            grid=(Mp // tm,),
            in_specs=[
                pl.BlockSpec((tm, D), lambda i: (i, 0)),
                pl.BlockSpec((1, D), lambda i: (0, 0)),
                pl.BlockSpec((1, D), lambda i: (0, 0)),
            ],
            out_specs=pl.BlockSpec((tm, D), lambda i: (i, 0)),
        ),
        compiler_params=pltpu.CompilerParams(dimension_semantics=("parallel",)),
    )(x_p, gamma.reshape(1, -1), beta.reshape(1, -1))
    return out if Mp == M else out[:M]


# ------------------------------ linear kernel --------------------------------

def _linear_kernel(*refs, activation, k_steps, has_residual):
    if has_residual:
        x_ref, w_ref, b_ref, r_ref, o_ref, acc_ref = refs
    else:
        x_ref, w_ref, b_ref, o_ref, acc_ref = refs
        r_ref = None

    @pl.when(pl.program_id(2) == 0)
    def _():
        acc_ref[...] = jnp.zeros_like(acc_ref)

    # bf16 operands on the MXU, f32 accumulation.
    acc_ref[...] += jnp.dot(
        x_ref[...].astype(jnp.bfloat16),
        w_ref[...].astype(jnp.bfloat16),
        preferred_element_type=jnp.float32,
    )

    @pl.when(pl.program_id(2) == k_steps - 1)
    def _():
        acc = acc_ref[...] + b_ref[...].astype(jnp.float32)
        if activation == "gelu":
            # exact (erf) GELU, matching torch.nn.GELU default used by HF Whisper
            acc = 0.5 * acc * (1.0 + jax.lax.erf(acc * (1.0 / math.sqrt(2.0))))
        if has_residual:
            acc = acc + r_ref[...].astype(jnp.float32)
        o_ref[...] = acc.astype(o_ref.dtype)


def linear(x2d, w, b, *, activation="none", residual=None, tm=256, tn=256, tk=512):
    """y = act(x @ w + b) [+ residual]; x2d:[M,K] f32, w:[K,N] (bf16), b:[N]."""
    M, K = x2d.shape
    Kw, N = w.shape
    assert K == Kw
    tm = M if M <= tm else tm
    tn = N if N <= tn else tn
    tk = K if K <= tk else tk
    Mp, Np, Kp = _round_up(M, tm), _round_up(N, tn), _round_up(K, tk)

    x_p = x2d if (Mp, Kp) == (M, K) else jnp.pad(x2d, ((0, Mp - M), (0, Kp - K)))
    w_p = w if (Kp, Np) == (K, N) else jnp.pad(w, ((0, Kp - K), (0, Np - N)))
    b_p = (b if Np == N else jnp.pad(b, (0, Np - N))).reshape(1, Np)

    has_res = residual is not None
    inputs = [x_p, w_p, b_p]
    in_specs = [
        pl.BlockSpec((tm, tk), lambda i, j, k: (i, k)),
        pl.BlockSpec((tk, tn), lambda i, j, k: (k, j)),
        pl.BlockSpec((1, tn), lambda i, j, k: (0, j)),
    ]
    if has_res:
        r_p = residual if (Mp, Np) == (M, N) else jnp.pad(
            residual, ((0, Mp - M), (0, Np - N)))
        inputs.append(r_p)
        in_specs.append(pl.BlockSpec((tm, tn), lambda i, j, k: (i, j)))

    k_steps = Kp // tk
    out = pl.pallas_call(
        partial(_linear_kernel, activation=activation,
                k_steps=k_steps, has_residual=has_res),
        out_shape=jax.ShapeDtypeStruct((Mp, Np), jnp.float32),
        grid_spec=pltpu.PrefetchScalarGridSpec(
            num_scalar_prefetch=0,
            grid=(Mp // tm, Np // tn, k_steps),
            in_specs=in_specs,
            out_specs=pl.BlockSpec((tm, tn), lambda i, j, k: (i, j)),
            scratch_shapes=[pltpu.VMEM((tm, tn), jnp.float32)],
        ),
        compiler_params=pltpu.CompilerParams(
            dimension_semantics=("parallel", "parallel", "arbitrary")),
        cost_estimate=pl.CostEstimate(
            flops=2 * Mp * Np * Kp,
            transcendentals=Mp * Np if activation == "gelu" else 0,
            bytes_accessed=Mp * Kp * x_p.dtype.itemsize
            + Kp * Np * w_p.dtype.itemsize
            + Mp * Np * 4,
        ),
    )(*inputs)
    if (Mp, Np) != (M, N):
        out = out[:M, :N]
    return out


# ----------------------------- attention kernel ------------------------------

def _attention_kernel(q_ref, k_ref, v_ref, o_ref, *, hpb, Dh, causal, scale):
    # blocks: q (1, Tq, hpb*Dh), k/v (1, Tk, hpb*Dh)
    q = (q_ref[0].astype(jnp.float32) * scale).astype(jnp.bfloat16)  # scale folded into q
    k = k_ref[0].astype(jnp.bfloat16)
    v = v_ref[0].astype(jnp.bfloat16)
    Tq, Tk = q.shape[0], k.shape[0]

    neg = jnp.float32(jnp.finfo(jnp.float32).min)
    if causal:
        qi = jax.lax.broadcasted_iota(jnp.int32, (Tq, Tk), 0)
        ki = jax.lax.broadcasted_iota(jnp.int32, (Tq, Tk), 1)
        keep = ki <= qi  # mask generated in-kernel; no HBM mask traffic

    outs = []
    for h in range(hpb):  # static loop over heads in this lane-dense block
        sl = slice(h * Dh, (h + 1) * Dh)
        q_h, k_h, v_h = q[:, sl], k[:, sl], v[:, sl]
        s = jax.lax.dot_general(
            q_h, k_h, (((1,), (1,)), ((), ())),
            preferred_element_type=jnp.float32)            # (Tq, Tk) f32
        if causal:
            s = jnp.where(keep, s, neg)
        m = jnp.max(s, axis=-1, keepdims=True)
        p = jnp.exp(s - m)
        denom = jnp.sum(p, axis=-1, keepdims=True)
        p = (p * pl.reciprocal(denom, approx=True)).astype(jnp.bfloat16)
        outs.append(jnp.dot(p, v_h, preferred_element_type=jnp.float32))
    o = outs[0] if hpb == 1 else jnp.concatenate(outs, axis=-1)
    o_ref[0] = o.astype(o_ref.dtype)


def _pick_heads_per_block(H, Dh):
    hpb = max(1, min(H, 128 // max(Dh, 1)))
    while H % hpb:
        hpb -= 1
    # feature block must be a multiple of 128 lanes or span the full feature dim
    if (hpb * Dh) % 128 != 0 and hpb != H:
        hpb = H
    return hpb


def attention(q3, k3, v3, *, H, Dh, causal, scale):
    # q3: [B, Tq, D], k3/v3: [B, Tk, D]  (heads live contiguously in the feature dim)
    B, Tq, D = q3.shape
    Tk = k3.shape[1]
    hpb = _pick_heads_per_block(H, Dh)
    G = H // hpb
    fb = hpb * Dh
    return pl.pallas_call(
        partial(_attention_kernel, hpb=hpb, Dh=Dh, causal=causal, scale=scale),
        out_shape=jax.ShapeDtypeStruct((B, Tq, D), q3.dtype),
        grid_spec=pltpu.PrefetchScalarGridSpec(
            num_scalar_prefetch=0,
            grid=(B, G),
            in_specs=[
                pl.BlockSpec((1, Tq, fb), lambda b, g: (b, 0, g)),
                pl.BlockSpec((1, Tk, fb), lambda b, g: (b, 0, g)),
                pl.BlockSpec((1, Tk, fb), lambda b, g: (b, 0, g)),
            ],
            out_specs=pl.BlockSpec((1, Tq, fb), lambda b, g: (b, 0, g)),
        ),
        compiler_params=pltpu.CompilerParams(
            dimension_semantics=("parallel", "parallel")),
    )(q3, k3, v3)


# --------------------------- parameter construction --------------------------

def init_params(key, cfg):
    D = cfg["d_model"]
    V = cfg["vocab_size"]
    L = cfg["decoder_layers"]
    F = cfg["decoder_ffn_dim"]
    P = cfg["max_target_positions"]
    kg = _KeyGen(key)
    wdt = jnp.bfloat16  # matmul weights stored bf16 (MXU-native, halves weight HBM traffic)

    def nrm(shape, dtype=jnp.float32, scale=0.02):
        return (scale * jax.random.normal(kg(), shape, dtype=jnp.float32)).astype(dtype)

    params = {
        "embed_tokens": nrm((V, D)),       # nn.Embedding(vocab, d_model)
        "embed_positions": nrm((P, D)),    # WhisperPositionalEmbedding
        "final_ln_g": jnp.ones((D,), jnp.float32),
        "final_ln_b": jnp.zeros((D,), jnp.float32),
        "layers": [],
    }
    for _ in range(L):
        # fused QKV bias: [q_bias | 0 (k has no bias in Whisper) | v_bias]
        sa_qkv_b = jnp.concatenate([nrm((D,)), jnp.zeros((D,), jnp.float32), nrm((D,))])
        # fused cross-attn KV bias: [0 | v_bias]
        ca_kv_b = jnp.concatenate([jnp.zeros((D,), jnp.float32), nrm((D,))])
        lp = {
            "sa_ln_g": jnp.ones((D,), jnp.float32), "sa_ln_b": jnp.zeros((D,), jnp.float32),
            "sa_qkv_w": nrm((D, 3 * D), wdt), "sa_qkv_b": sa_qkv_b,
            "sa_o_w": nrm((D, D), wdt), "sa_o_b": nrm((D,)),
            "ca_ln_g": jnp.ones((D,), jnp.float32), "ca_ln_b": jnp.zeros((D,), jnp.float32),
            "ca_q_w": nrm((D, D), wdt), "ca_q_b": nrm((D,)),
            "ca_kv_w": nrm((D, 2 * D), wdt), "ca_kv_b": ca_kv_b,
            "ca_o_w": nrm((D, D), wdt), "ca_o_b": nrm((D,)),
            "fc_ln_g": jnp.ones((D,), jnp.float32), "fc_ln_b": jnp.zeros((D,), jnp.float32),
            "fc1_w": nrm((D, F), wdt), "fc1_b": nrm((F,)),
            "fc2_w": nrm((F, D), wdt), "fc2_b": nrm((D,)),
        }
        params["layers"].append(lp)
    return params


# ------------------------------ forward pass ---------------------------------

def whisper_decoder_forward(params, input_ids, encoder_hidden_states, cfg):
    B, T = input_ids.shape
    S = encoder_hidden_states.shape[1]
    D = cfg["d_model"]
    H = cfg["decoder_attention_heads"]
    Dh = D // H
    scale = Dh ** -0.5
    embed_scale = math.sqrt(D) if cfg["scale_embedding"] else 1.0

    # embeddings (reference does these in torch; plain-JAX glue here)
    inputs_embeds = jnp.take(params["embed_tokens"], input_ids, axis=0) * embed_scale
    positions = params["embed_positions"][:T]        # past_key_values_length = 0
    hs2d = (inputs_embeds + positions[None, :, :]).reshape(B * T, D).astype(jnp.float32)

    enc2d = encoder_hidden_states.reshape(B * S, D).astype(jnp.float32)

    for lp in params["layers"]:
        # --- self-attention block (pre-norm, residual fused into o_proj) ---
        y = layernorm(hs2d, lp["sa_ln_g"], lp["sa_ln_b"])
        qkv = linear(y, lp["sa_qkv_w"], lp["sa_qkv_b"]).reshape(B, T, 3 * D)
        q3, k3, v3 = qkv[..., :D], qkv[..., D:2 * D], qkv[..., 2 * D:]
        attn = attention(q3, k3, v3, H=H, Dh=Dh, causal=True, scale=scale)
        hs2d = linear(attn.reshape(B * T, D), lp["sa_o_w"], lp["sa_o_b"], residual=hs2d)

        # --- cross-attention block on encoder_hidden_states (no mask) ---
        y = layernorm(hs2d, lp["ca_ln_g"], lp["ca_ln_b"])
        q3 = linear(y, lp["ca_q_w"], lp["ca_q_b"]).reshape(B, T, D)
        kv = linear(enc2d, lp["ca_kv_w"], lp["ca_kv_b"]).reshape(B, S, 2 * D)
        k3, v3 = kv[..., :D], kv[..., D:]
        attn = attention(q3, k3, v3, H=H, Dh=Dh, causal=False, scale=scale)
        hs2d = linear(attn.reshape(B * T, D), lp["ca_o_w"], lp["ca_o_b"], residual=hs2d)

        # --- feed-forward block (GELU), residual fused into fc2 ---
        y = layernorm(hs2d, lp["fc_ln_g"], lp["fc_ln_b"])
        y = linear(y, lp["fc1_w"], lp["fc1_b"], activation="gelu")
        hs2d = linear(y, lp["fc2_w"], lp["fc2_b"], residual=hs2d)

    # final layer norm (ttnn.layer_norm, eps=1e-5)
    out2d = layernorm(hs2d, params["final_ln_g"], params["final_ln_b"])
    return out2d.reshape(B, T, D)

# TODO(synk): dropout / layerdrop / past_key_values KV-cache / optional attention &
# hidden-state outputs are inference no-ops or bookkeeping and are not reproduced here.


# ---------------------------------- main -------------------------------------

if __name__ == "__main__":
    cfg = dict(
        vocab_size=100,
        d_model=32,
        decoder_layers=2,
        decoder_attention_heads=4,
        decoder_ffn_dim=64,
        max_target_positions=32,
        scale_embedding=False,
    )
    B, T, S = 2, 8, 16

    root = jax.random.PRNGKey(0)
    k_param, k_ids, k_enc = jax.random.split(root, 3)

    params = init_params(k_param, cfg)
    input_ids = jax.random.randint(k_ids, (B, T), 0, cfg["vocab_size"], dtype=jnp.int32)
    encoder_hidden_states = jax.random.normal(k_enc, (B, S, cfg["d_model"]), jnp.float32)

    fwd = jax.jit(lambda p, ids, enc: whisper_decoder_forward(p, ids, enc, cfg))
    out = fwd(params, input_ids, encoder_hidden_states)
    out = jax.block_until_ready(out)
    assert out.shape == (B, T, cfg["d_model"])
    assert bool(jnp.all(jnp.isfinite(out)))
    print("KERNEL_OK")
</pallas_src>

<mosaic_0001>
module attributes {stable_mosaic.version = 11 : i64} {
  func.func @_linear_kernel(%arg0: i32, %arg1: i32, %arg2: i32, %arg3: memref<16x32xf32, #tpu.memory_space<vmem>>, %arg4: memref<32x32xbf16, #tpu.memory_space<vmem>>, %arg5: memref<1x32xf32, #tpu.memory_space<vmem>>, %arg6: memref<16x32xf32, #tpu.memory_space<vmem>>, %arg7: memref<16x32xf32, #tpu.memory_space<vmem>>, %arg8: memref<16x32xf32, #tpu.memory_space<vmem>>) attributes {dimension_semantics = [#tpu.dimension_semantics<parallel>, #tpu.dimension_semantics<parallel>, #tpu.dimension_semantics<arbitrary>], iteration_bounds = array<i64: 1, 1, 1>, scalar_prefetch = 0 : i64, scratch_operands = 1 : i64, tpu.core_type = #tpu.core_type<tc>, window_params = [{transform_indices = @transform_0, window_bounds = array<i64: 16, 32>}, {transform_indices = @transform_1, window_bounds = array<i64: 32, 32>}, {transform_indices = @transform_2, window_bounds = array<i64: 1, 32>}, {transform_indices = @transform_3, window_bounds = array<i64: 16, 32>}, {transform_indices = @transform_4, window_bounds = array<i64: 16, 32>}]} {
    %c0_i32 = arith.constant 0 : i32
    %0 = arith.cmpi eq, %arg2, %c0_i32 : i32
    %1 = arith.extui %0 : i1 to i32
    %c0_i32_0 = arith.constant 0 : i32
    %2 = arith.cmpi ne, %1, %c0_i32_0 : i32
    scf.if %2 {
      %cst_10 = arith.constant 0.000000e+00 : f32
      %13 = vector.broadcast %cst_10 : f32 to vector<16x32xf32>
      %c0_11 = arith.constant 0 : index
      %c0_12 = arith.constant 0 : index
      %14 = vector.load %arg8[%c0_11, %c0_12] : memref<16x32xf32, #tpu.memory_space<vmem>>, vector<16x32xf32>
      tpu.vector_store %arg8[%c0_11, %c0_12], %13 {strides = array<i32>} : memref<16x32xf32, #tpu.memory_space<vmem>>, vector<16x32xf32>,
    } else {
    }
    %c0 = arith.constant 0 : index
    %c0_1 = arith.constant 0 : index
    %3 = vector.load %arg8[%c0, %c0_1] : memref<16x32xf32, #tpu.memory_space<vmem>>, vector<16x32xf32>
    %c0_2 = arith.constant 0 : index
    %c0_3 = arith.constant 0 : index
    %4 = vector.load %arg3[%c0_2, %c0_3] : memref<16x32xf32, #tpu.memory_space<vmem>>, vector<16x32xf32>
    %5 = arith.truncf %4 : vector<16x32xf32> to vector<16x32xbf16>
    %c0_4 = arith.constant 0 : index
    %c0_5 = arith.constant 0 : index
    %6 = vector.load %arg4[%c0_4, %c0_5] : memref<32x32xbf16, #tpu.memory_space<vmem>>, vector<32x32xbf16>
    %cst = arith.constant dense<0.000000e+00> : vector<16x32xf32>
    %7 = tpu.matmul %5, %6, %cst {dimension_numbers = #tpu.dot_dimension_numbers<[1], [0], [0], [1], [0, 0, 1, 1], [], []>} : vector<16x32xbf16>, vector<32x32xbf16>, vector<16x32xf32> -> vector<16x32xf32>
    %8 = arith.addf %3, %7 : vector<16x32xf32>
    %c0_6 = arith.constant 0 : index
    %c0_7 = arith.constant 0 : index
    %9 = vector.load %arg8[%c0_6, %c0_7] : memref<16x32xf32, #tpu.memory_space<vmem>>, vector<16x32xf32>
    tpu.vector_store %arg8[%c0_6, %c0_7], %8 {strides = array<i32>} : memref<16x32xf32, #tpu.memory_space<vmem>>, vector<16x32xf32>,
    %c0_i32_8 = arith.constant 0 : i32
    %10 = arith.cmpi eq, %arg2, %c0_i32_8 : i32
    %11 = arith.extui %10 : i1 to i32
    %c0_i32_9 = arith.constant 0 : i32
    %12 = arith.cmpi ne, %11, %c0_i32_9 : i32
    scf.if %12 {
      %c0_10 = arith.constant 0 : index
      %c0_11 = arith.constant 0 : index
      %13 = vector.load %arg8[%c0_10, %c0_11] : memref<16x32xf32, #tpu.memory_space<vmem>>, vector<16x32xf32>
      %c0_12 = arith.constant 0 : index
      %c0_13 = arith.constant 0 : index
      %14 = vector.load %arg5[%c0_12, %c0_13] : memref<1x32xf32, #tpu.memory_space<vmem>>, vector<1x32xf32>
      %15 = vector.broadcast %14 : vector<1x32xf32> to vector<16x32xf32>
      %16 = arith.addf %13, %15 : vector<16x32xf32>
      %c0_14 = arith.constant 0 : index
      %c0_15 = arith.constant 0 : index
      %17 = vector.load %arg6[%c0_14, %c0_15] : memref<16x32xf32, #tpu.memory_space<vmem>>, vector<16x32xf32>
      %18 = arith.addf %16, %17 : vector<16x32xf32>
      %c0_16 = arith.constant 0 : index
      %c0_17 = arith.constant 0 : index
      %19 = vector.load %arg7[%c0_16, %c0_17] : memref<16x32xf32, #tpu.memory_space<vmem>>, vector<16x32xf32>
      tpu.vector_store %arg7[%c0_16, %c0_17], %18 {strides = array<i32>} : memref<16x32xf32, #tpu.memory_space<vmem>>, vector<16x32xf32>,
    } else {
    }
    return
  }
  func.func @transform_0(%arg0: i32, %arg1: i32, %arg2: i32) -> (i32, i32) {
    %c0_i32 = arith.constant 0 : i32
    return %arg0, %arg2 : i32, i32
  }
  func.func @transform_1(%arg0: i32, %arg1: i32, %arg2: i32) -> (i32, i32) {
    %c0_i32 = arith.constant 0 : i32
    return %arg2, %arg1 : i32, i32
  }
  func.func @transform_2(%arg0: i32, %arg1: i32, %arg2: i32) -> (i32, i32) {
    %c0_i32 = arith.constant 0 : i32
    %c0_i32_0 = arith.constant 0 : i32
    return %c0_i32, %arg1 : i32, i32
  }
  func.func @transform_3(%arg0: i32, %arg1: i32, %arg2: i32) -> (i32, i32) {
    %c0_i32 = arith.constant 0 : i32
    return %arg0, %arg1 : i32, i32
  }
  func.func @transform_4(%arg0: i32, %arg1: i32, %arg2: i32) -> (i32, i32) {
    %c0_i32 = arith.constant 0 : i32
    return %arg0, %arg1 : i32, i32
  }
}

module attributes {stable_mosaic.version = 11 : i64} {
  func.func @_attention_kernel(%arg0: i32, %arg1: i32, %arg2: memref<1x8x32xf32, #tpu.memory_space<vmem>>, %arg3: memref<1x8x32xf32, #tpu.memory_space<vmem>>, %arg4: memref<1x8x32xf32, #tpu.memory_space<vmem>>, %arg5: memref<1x8x32xf32, #tpu.memory_space<vmem>>) attributes {dimension_semantics = [#tpu.dimension_semantics<parallel>, #tpu.dimension_semantics<parallel>], iteration_bounds = array<i64: 2, 1>, scalar_prefetch = 0 : i64, scratch_operands = 0 : i64, tpu.core_type = #tpu.core_type<tc>, window_params = [{transform_indices = @transform_0, window_bounds = array<i64: 1, 8, 32>}, {transform_indices = @transform_1, window_bounds = array<i64: 1, 8, 32>}, {transform_indices = @transform_2, window_bounds = array<i64: 1, 8, 32>}, {transform_indices = @transform_3, window_bounds = array<i64: 1, 8, 32>}]} {
    %c0 = arith.constant 0 : index
    %c0_0 = arith.constant 0 : index
    %c0_1 = arith.constant 0 : index
    %0 = vector.load %arg2[%c0, %c0_0, %c0_1] : memref<1x8x32xf32, #tpu.memory_space<vmem>>, vector<1x8x32xf32>
    %1 = vector.shape_cast %0 : vector<1x8x32xf32> to vector<8x32xf32>
    %cst = arith.constant 0.353553385 : f32
    %2 = vector.broadcast %cst : f32 to vector<8x32xf32>
    %3 = arith.mulf %1, %2 : vector<8x32xf32>
    %4 = arith.truncf %3 : vector<8x32xf32> to vector<8x32xbf16>
    %c0_2 = arith.constant 0 : index
    %c0_3 = arith.constant 0 : index
    %c0_4 = arith.constant 0 : index
    %5 = vector.load %arg3[%c0_2, %c0_3, %c0_4] : memref<1x8x32xf32, #tpu.memory_space<vmem>>, vector<1x8x32xf32>
    %6 = vector.shape_cast %5 : vector<1x8x32xf32> to vector<8x32xf32>
    %7 = arith.truncf %6 : vector<8x32xf32> to vector<8x32xbf16>
    %c0_5 = arith.constant 0 : index
    %c0_6 = arith.constant 0 : index
    %c0_7 = arith.constant 0 : index
    %8 = vector.load %arg4[%c0_5, %c0_6, %c0_7] : memref<1x8x32xf32, #tpu.memory_space<vmem>>, vector<1x8x32xf32>
    %9 = vector.shape_cast %8 : vector<1x8x32xf32> to vector<8x32xf32>
    %10 = arith.truncf %9 : vector<8x32xf32> to vector<8x32xbf16>
    %11 = tpu.iota {dimensions = array<i32: 0>} : vector<8x8xi32>
    %12 = tpu.iota {dimensions = array<i32: 1>} : vector<8x8xi32>
    %13 = arith.cmpi sle, %12, %11 : vector<8x8xi32>
    %14 = vector.extract_strided_slice %4 {offsets = [0, 0], sizes = [8, 8], strides = [1, 1]} : vector<8x32xbf16> to vector<8x8xbf16>
    %15 = vector.extract_strided_slice %7 {offsets = [0, 0], sizes = [8, 8], strides = [1, 1]} : vector<8x32xbf16> to vector<8x8xbf16>
    %16 = vector.extract_strided_slice %10 {offsets = [0, 0], sizes = [8, 8], strides = [1, 1]} : vector<8x32xbf16> to vector<8x8xbf16>
    %cst_8 = arith.constant dense<0.000000e+00> : vector<8x8xf32>
    %17 = tpu.matmul %14, %15, %cst_8 {dimension_numbers = #tpu.dot_dimension_numbers<[1], [1], [0], [0], [0, 0, 1, 0], [], []>} : vector<8x8xbf16>, vector<8x8xbf16>, vector<8x8xf32> -> vector<8x8xf32>
    %cst_9 = arith.constant -3.40282347E+38 : f32
    %18 = vector.broadcast %cst_9 : f32 to vector<8x8xf32>
    %19 = arith.select %13, %17, %18 : vector<8x8xi1>, vector<8x8xf32>
    %cst_10 = arith.constant dense<0xFF800000> : vector<8xf32>
    %20 = vector.multi_reduction <maximumf>, %19, %cst_10 [1] : vector<8x8xf32> to vector<8xf32>
    %21 = vector.shape_cast %20 : vector<8xf32> to vector<8x1xf32>
    %22 = vector.broadcast %21 : vector<8x1xf32> to vector<8x8xf32>
    %23 = arith.subf %19, %22 : vector<8x8xf32>
    %24 = math.exp %23 : vector<8x8xf32>
    %cst_11 = arith.constant dense<0.000000e+00> : vector<8xf32>
    %25 = vector.multi_reduction <add>, %24, %cst_11 [1] : vector<8x8xf32> to vector<8xf32>
    %26 = vector.shape_cast %25 : vector<8xf32> to vector<8x1xf32>
    %27 = tpu.reciprocal %26 {approx = true} : vector<8x1xf32> -> vector<8x1xf32>
    %28 = vector.broadcast %27 : vector<8x1xf32> to vector<8x8xf32>
    %29 = arith.mulf %24, %28 : vector<8x8xf32>
    %30 = arith.truncf %29 : vector<8x8xf32> to vector<8x8xbf16>
    %cst_12 = arith.constant dense<0.000000e+00> : vector<8x8xf32>
    %31 = tpu.matmul %30, %16, %cst_12 {dimension_numbers = #tpu.dot_dimension_numbers<[1], [0], [0], [1], [0, 0, 1, 1], [], []>} : vector<8x8xbf16>, vector<8x8xbf16>, vector<8x8xf32> -> vector<8x8xf32>
    %32 = vector.extract_strided_slice %4 {offsets = [0, 8], sizes = [8, 8], strides = [1, 1]} : vector<8x32xbf16> to vector<8x8xbf16>
    %33 = vector.extract_strided_slice %7 {offsets = [0, 8], sizes = [8, 8], strides = [1, 1]} : vector<8x32xbf16> to vector<8x8xbf16>
    %34 = vector.extract_strided_slice %10 {offsets = [0, 8], sizes = [8, 8], strides = [1, 1]} : vector<8x32xbf16> to vector<8x8xbf16>
    %cst_13 = arith.constant dense<0.000000e+00> : vector<8x8xf32>
    %35 = tpu.matmul %32, %33, %cst_13 {dimension_numbers = #tpu.dot_dimension_numbers<[1], [1], [0], [0], [0, 0, 1, 0], [], []>} : vector<8x8xbf16>, vector<8x8xbf16>, vector<8x8xf32> -> vector<8x8xf32>
    %cst_14 = arith.constant -3.40282347E+38 : f32
    %36 = vector.broadcast %cst_14 : f32 to vector<8x8xf32>
    %37 = arith.select %13, %35, %36 : vector<8x8xi1>, vector<8x8xf32>
    %cst_15 = arith.constant dense<0xFF800000> : vector<8xf32>
    %38 = vector.multi_reduction <maximumf>, %37, %cst_15 [1] : vector<8x8xf32> to vector<8xf32>
    %39 = vector.shape_cast %38 : vector<8xf32> to vector<8x1xf32>
    %40 = vector.broadcast %39 : vector<8x1xf32> to vector<8x8xf32>
    %41 = arith.subf %37, %40 : vector<8x8xf32>
    %42 = math.exp %41 : vector<8x8xf32>
    %cst_16 = arith.constant dense<0.000000e+00> : vector<8xf32>
    %43 = vector.multi_reduction <add>, %42, %cst_16 [1] : vector<8x8xf32> to vector<8xf32>
    %44 = vector.shape_cast %43 : vector<8xf32> to vector<8x1xf32>
    %45 = tpu.reciprocal %44 {approx = true} : vector<8x1xf32> -> vector<8x1xf32>
    %46 = vector.broadcast %45 : vector<8x1xf32> to vector<8x8xf32>
    %47 = arith.mulf %42, %46 : vector<8x8xf32>
    %48 = arith.truncf %47 : vector<8x8xf32> to vector<8x8xbf16>
    %cst_17 = arith.constant dense<0.000000e+00> : vector<8x8xf32>
    %49 = tpu.matmul %48, %34, %cst_17 {dimension_numbers = #tpu.dot_dimension_numbers<[1], [0], [0], [1], [0, 0, 1, 1], [], []>} : vector<8x8xbf16>, vector<8x8xbf16>, vector<8x8xf32> -> vector<8x8xf32>
    %50 = vector.extract_strided_slice %4 {offsets = [0, 16], sizes = [8, 8], strides = [1, 1]} : vector<8x32xbf16> to vector<8x8xbf16>
    %51 = vector.extract_strided_slice %7 {offsets = [0, 16], sizes = [8, 8], strides = [1, 1]} : vector<8x32xbf16> to vector<8x8xbf16>
    %52 = vector.extract_strided_slice %10 {offsets = [0, 16], sizes = [8, 8], strides = [1, 1]} : vector<8x32xbf16> to vector<8x8xbf16>
    %cst_18 = arith.constant dense<0.000000e+00> : vector<8x8xf32>
    %53 = tpu.matmul %50, %51, %cst_18 {dimension_numbers = #tpu.dot_dimension_numbers<[1], [1], [0], [0], [0, 0, 1, 0], [], []>} : vector<8x8xbf16>, vector<8x8xbf16>, vector<8x8xf32> -> vector<8x8xf32>
    %cst_19 = arith.constant -3.40282347E+38 : f32
    %54 = vector.broadcast %cst_19 : f32 to vector<8x8xf32>
    %55 = arith.select %13, %53, %54 : vector<8x8xi1>, vector<8x8xf32>
    %cst_20 = arith.constant dense<0xFF800000> : vector<8xf32>
    %56 = vector.multi_reduction <maximumf>, %55, %cst_20 [1] : vector<8x8xf32> to vector<8xf32>
    %57 = vector.shape_cast %56 : vector<8xf32> to vector<8x1xf32>
    %58 = vector.broadcast %57 : vector<8x1xf32> to vector<8x8xf32>
    %59 = arith.subf %55, %58 : vector<8x8xf32>
    %60 = math.exp %59 : vector<8x8xf32>
    %cst_21 = arith.constant dense<0.000000e+00> : vector<8xf32>
    %61 = vector.multi_reduction <add>, %60, %cst_21 [1] : vector<8x8xf32> to vector<8xf32>
    %62 = vector.shape_cast %61 : vector<8xf32> to vector<8x1xf32>
    %63 = tpu.reciprocal %62 {approx = true} : vector<8x1xf32> -> vector<8x1xf32>
    %64 = vector.broadcast %63 : vector<8x1xf32> to vector<8x8xf32>
    %65 = arith.mulf %60, %64 : vector<8x8xf32>
    %66 = arith.truncf %65 : vector<8x8xf32> to vector<8x8xbf16>
    %cst_22 = arith.constant dense<0.000000e+00> : vector<8x8xf32>
    %67 = tpu.matmul %66, %52, %cst_22 {dimension_numbers = #tpu.dot_dimension_numbers<[1], [0], [0], [1], [0, 0, 1, 1], [], []>} : vector<8x8xbf16>, vector<8x8xbf16>, vector<8x8xf32> -> vector<8x8xf32>
    %68 = vector.extract_strided_slice %4 {offsets = [0, 24], sizes = [8, 8], strides = [1, 1]} : vector<8x32xbf16> to vector<8x8xbf16>
    %69 = vector.extract_strided_slice %7 {offsets = [0, 24], sizes = [8, 8], strides = [1, 1]} : vector<8x32xbf16> to vector<8x8xbf16>
    %70 = vector.extract_strided_slice %10 {offsets = [0, 24], sizes = [8, 8], strides = [1, 1]} : vector<8x32xbf16> to vector<8x8xbf16>
    %cst_23 = arith.constant dense<0.000000e+00> : vector<8x8xf32>
    %71 = tpu.matmul %68, %69, %cst_23 {dimension_numbers = #tpu.dot_dimension_numbers<[1], [1], [0], [0], [0, 0, 1, 0], [], []>} : vector<8x8xbf16>, vector<8x8xbf16>, vector<8x8xf32> -> vector<8x8xf32>
    %cst_24 = arith.constant -3.40282347E+38 : f32
    %72 = vector.broadcast %cst_24 : f32 to vector<8x8xf32>
    %73 = arith.select %13, %71, %72 : vector<8x8xi1>, vector<8x8xf32>
    %cst_25 = arith.constant dense<0xFF800000> : vector<8xf32>
    %74 = vector.multi_reduction <maximumf>, %73, %cst_25 [1] : vector<8x8xf32> to vector<8xf32>
    %75 = vector.shape_cast %74 : vector<8xf32> to vector<8x1xf32>
    %76 = vector.broadcast %75 : vector<8x1xf32> to vector<8x8xf32>
    %77 = arith.subf %73, %76 : vector<8x8xf32>
    %78 = math.exp %77 : vector<8x8xf32>
    %cst_26 = arith.constant dense<0.000000e+00> : vector<8xf32>
    %79 = vector.multi_reduction <add>, %78, %cst_26 [1] : vector<8x8xf32> to vector<8xf32>
    %80 = vector.shape_cast %79 : vector<8xf32> to vector<8x1xf32>
    %81 = tpu.reciprocal %80 {approx = true} : vector<8x1xf32> -> vector<8x1xf32>
    %82 = vector.broadcast %81 : vector<8x1xf32> to vector<8x8xf32>
    %83 = arith.mulf %78, %82 : vector<8x8xf32>
    %84 = arith.truncf %83 : vector<8x8xf32> to vector<8x8xbf16>
    %cst_27 = arith.constant dense<0.000000e+00> : vector<8x8xf32>
    %85 = tpu.matmul %84, %70, %cst_27 {dimension_numbers = #tpu.dot_dimension_numbers<[1], [0], [0], [1], [0, 0, 1, 1], [], []>} : vector<8x8xbf16>, vector<8x8xbf16>, vector<8x8xf32> -> vector<8x8xf32>
    %86 = tpu.concatenate %31, %49, %67, %85 in 1 : vector<8x8xf32>, vector<8x8xf32>, vector<8x8xf32>, vector<8x8xf32> -> vector<8x32xf32>
    %c0_28 = arith.constant 0 : index
    %c0_29 = arith.constant 0 : index
    %c0_30 = arith.constant 0 : index
    %87 = vector.load %arg5[%c0_28, %c0_29, %c0_30] : memref<1x8x32xf32, #tpu.memory_space<vmem>>, vector<1x8x32xf32>
    %88 = vector.shape_cast %87 : vector<1x8x32xf32> to vector<8x32xf32>
    %89 = vector.shape_cast %86 : vector<8x32xf32> to vector<1x8x32xf32>
    tpu.vector_store %arg5[%c0_28, %c0_29, %c0_30], %89 {strides = array<i32>} : memref<1x8x32xf32, #tpu.memory_space<vmem>>, vector<1x8x32xf32>,
    return
  }
  func.func @transform_0(%arg0: i32, %arg1: i32) -> (i32, i32, i32) {
    %c0_i32 = arith.constant 0 : i32
    %c0_i32_0 = arith.constant 0 : i32
    return %arg0, %c0_i32, %arg1 : i32, i32, i32
  }
  func.func @transform_1(%arg0: i32, %arg1: i32) -> (i32, i32, i32) {
    %c0_i32 = arith.constant 0 : i32
    %c0_i32_0 = arith.constant 0 : i32
    return %arg0, %c0_i32, %arg1 : i32, i32, i32
  }
  func.func @transform_2(%arg0: i32, %arg1: i32) -> (i32, i32, i32) {
    %c0_i32 = arith.constant 0 : i32
    %c0_i32_0 = arith.constant 0 : i32
    return %arg0, %c0_i32, %arg1 : i32, i32, i32
  }
  func.func @transform_3(%arg0: i32, %arg1: i32) -> (i32, i32, i32) {
    %c0_i32 = arith.constant 0 : i32
    %c0_i32_0 = arith.constant 0 : i32
    return %arg0, %c0_i32, %arg1 : i32, i32, i32
  }
}

module attributes {stable_mosaic.version = 11 : i64} {
  func.func @_linear_kernel(%arg0: i32, %arg1: i32, %arg2: i32, %arg3: memref<16x32xf32, #tpu.memory_space<vmem>>, %arg4: memref<32x96xbf16, #tpu.memory_space<vmem>>, %arg5: memref<1x96xf32, #tpu.memory_space<vmem>>, %arg6: memref<16x96xf32, #tpu.memory_space<vmem>>, %arg7: memref<16x96xf32, #tpu.memory_space<vmem>>) attributes {dimension_semantics = [#tpu.dimension_semantics<parallel>, #tpu.dimension_semantics<parallel>, #tpu.dimension_semantics<arbitrary>], iteration_bounds = array<i64: 1, 1, 1>, scalar_prefetch = 0 : i64, scratch_operands = 1 : i64, tpu.core_type = #tpu.core_type<tc>, window_params = [{transform_indices = @transform_0, window_bounds = array<i64: 16, 32>}, {transform_indices = @transform_1, window_bounds = array<i64: 32, 96>}, {transform_indices = @transform_2, window_bounds = array<i64: 1, 96>}, {transform_indices = @transform_3, window_bounds = array<i64: 16, 96>}]} {
    %c0_i32 = arith.constant 0 : i32
    %0 = arith.cmpi eq, %arg2, %c0_i32 : i32
    %1 = arith.extui %0 : i1 to i32
    %c0_i32_0 = arith.constant 0 : i32
    %2 = arith.cmpi ne, %1, %c0_i32_0 : i32
    scf.if %2 {
      %cst_10 = arith.constant 0.000000e+00 : f32
      %13 = vector.broadcast %cst_10 : f32 to vector<16x96xf32>
      %c0_11 = arith.constant 0 : index
      %c0_12 = arith.constant 0 : index
      %14 = vector.load %arg7[%c0_11, %c0_12] : memref<16x96xf32, #tpu.memory_space<vmem>>, vector<16x96xf32>
      tpu.vector_store %arg7[%c0_11, %c0_12], %13 {strides = array<i32>} : memref<16x96xf32, #tpu.memory_space<vmem>>, vector<16x96xf32>,
    } else {
    }
    %c0 = arith.constant 0 : index
    %c0_1 = arith.constant 0 : index
    %3 = vector.load %arg7[%c0, %c0_1] : memref<16x96xf32, #tpu.memory_space<vmem>>, vector<16x96xf32>
    %c0_2 = arith.constant 0 : index
    %c0_3 = arith.constant 0 : index
    %4 = vector.load %arg3[%c0_2, %c0_3] : memref<16x32xf32, #tpu.memory_space<vmem>>, vector<16x32xf32>
    %5 = arith.truncf %4 : vector<16x32xf32> to vector<16x32xbf16>
    %c0_4 = arith.constant 0 : index
    %c0_5 = arith.constant 0 : index
    %6 = vector.load %arg4[%c0_4, %c0_5] : memref<32x96xbf16, #tpu.memory_space<vmem>>, vector<32x96xbf16>
    %cst = arith.constant dense<0.000000e+00> : vector<16x96xf32>
    %7 = tpu.matmul %5, %6, %cst {dimension_numbers = #tpu.dot_dimension_numbers<[1], [0], [0], [1], [0, 0, 1, 1], [], []>} : vector<16x32xbf16>, vector<32x96xbf16>, vector<16x96xf32> -> vector<16x96xf32>
    %8 = arith.addf %3, %7 : vector<16x96xf32>
    %c0_6 = arith.constant 0 : index
    %c0_7 = arith.constant 0 : index
    %9 = vector.load %arg7[%c0_6, %c0_7] : memref<16x96xf32, #tpu.memory_space<vmem>>, vector<16x96xf32>
    tpu.vector_store %arg7[%c0_6, %c0_7], %8 {strides = array<i32>} : memref<16x96xf32, #tpu.memory_space<vmem>>, vector<16x96xf32>,
    %c0_i32_8 = arith.constant 0 : i32
    %10 = arith.cmpi eq, %arg2, %c0_i32_8 : i32
    %11 = arith.extui %10 : i1 to i32
    %c0_i32_9 = arith.constant 0 : i32
    %12 = arith.cmpi ne, %11, %c0_i32_9 : i32
    scf.if %12 {
      %c0_10 = arith.constant 0 : index
      %c0_11 = arith.constant 0 : index
      %13 = vector.load %arg7[%c0_10, %c0_11] : memref<16x96xf32, #tpu.memory_space<vmem>>, vector<16x96xf32>
      %c0_12 = arith.constant 0 : index
      %c0_13 = arith.constant 0 : index
      %14 = vector.load %arg5[%c0_12, %c0_13] : memref<1x96xf32, #tpu.memory_space<vmem>>, vector<1x96xf32>
      %15 = vector.broadcast %14 : vector<1x96xf32> to vector<16x96xf32>
      %16 = arith.addf %13, %15 : vector<16x96xf32>
      %c0_14 = arith.constant 0 : index
      %c0_15 = arith.constant 0 : index
      %17 = vector.load %arg6[%c0_14, %c0_15] : memref<16x96xf32, #tpu.memory_space<vmem>>, vector<16x96xf32>
      tpu.vector_store %arg6[%c0_14, %c0_15], %16 {strides = array<i32>} : memref<16x96xf32, #tpu.memory_space<vmem>>, vector<16x96xf32>,
    } else {
    }
    return
  }
  func.func @transform_0(%arg0: i32, %arg1: i32, %arg2: i32) -> (i32, i32) {
    %c0_i32 = arith.constant 0 : i32
    return %arg0, %arg2 : i32, i32
  }
  func.func @transform_1(%arg0: i32, %arg1: i32, %arg2: i32) -> (i32, i32) {
    %c0_i32 = arith.constant 0 : i32
    return %arg2, %arg1 : i32, i32
  }
  func.func @transform_2(%arg0: i32, %arg1: i32, %arg2: i32) -> (i32, i32) {
    %c0_i32 = arith.constant 0 : i32
    %c0_i32_0 = arith.constant 0 : i32
    return %c0_i32, %arg1 : i32, i32
  }
  func.func @transform_3(%arg0: i32, %arg1: i32, %arg2: i32) -> (i32, i32) {
    %c0_i32 = arith.constant 0 : i32
    return %arg0, %arg1 : i32, i32
  }
}

module attributes {stable_mosaic.version = 11 : i64} {
  func.func @_layernorm_kernel(%arg0: i32, %arg1: memref<16x32xf32, #tpu.memory_space<vmem>>, %arg2: memref<1x32xf32, #tpu.memory_space<vmem>>, %arg3: memref<1x32xf32, #tpu.memory_space<vmem>>, %arg4: memref<16x32xf32, #tpu.memory_space<vmem>>) attributes {dimension_semantics = [#tpu.dimension_semantics<parallel>], iteration_bounds = array<i64: 1>, scalar_prefetch = 0 : i64, scratch_operands = 0 : i64, tpu.core_type = #tpu.core_type<tc>, window_params = [{transform_indices = @transform_0, window_bounds = array<i64: 16, 32>}, {pipeline_mode = #tpu.pipeline_mode<synchronous>, transform_indices = @transform_1, window_bounds = array<i64: 1, 32>}, {pipeline_mode = #tpu.pipeline_mode<synchronous>, transform_indices = @transform_2, window_bounds = array<i64: 1, 32>}, {transform_indices = @transform_3, window_bounds = array<i64: 16, 32>}]} {
    %c0 = arith.constant 0 : index
    %c0_0 = arith.constant 0 : index
    %0 = vector.load %arg1[%c0, %c0_0] : memref<16x32xf32, #tpu.memory_space<vmem>>, vector<16x32xf32>
    %cst = arith.constant dense<0.000000e+00> : vector<16xf32>
    %1 = vector.multi_reduction <add>, %0, %cst [1] : vector<16x32xf32> to vector<16xf32>
    %2 = vector.shape_cast %1 : vector<16xf32> to vector<16x1xf32>
    %cst_1 = arith.constant 3.200000e+01 : f32
    %3 = vector.broadcast %cst_1 : f32 to vector<16x1xf32>
    %4 = arith.divf %2, %3 : vector<16x1xf32>
    %5 = vector.broadcast %4 : vector<16x1xf32> to vector<16x32xf32>
    %6 = arith.subf %0, %5 : vector<16x32xf32>
    %7 = arith.mulf %6, %6 : vector<16x32xf32>
    %cst_2 = arith.constant dense<0.000000e+00> : vector<16xf32>
    %8 = vector.multi_reduction <add>, %7, %cst_2 [1] : vector<16x32xf32> to vector<16xf32>
    %9 = vector.shape_cast %8 : vector<16xf32> to vector<16x1xf32>
    %cst_3 = arith.constant 3.200000e+01 : f32
    %10 = vector.broadcast %cst_3 : f32 to vector<16x1xf32>
    %11 = arith.divf %9, %10 : vector<16x1xf32>
    %12 = vector.broadcast %4 : vector<16x1xf32> to vector<16x32xf32>
    %13 = arith.subf %0, %12 : vector<16x32xf32>
    %cst_4 = arith.constant 9.99999974E-6 : f32
    %14 = vector.broadcast %cst_4 : f32 to vector<16x1xf32>
    %15 = arith.addf %11, %14 : vector<16x1xf32>
    %16 = math.rsqrt %15 : vector<16x1xf32>
    %17 = vector.broadcast %16 : vector<16x1xf32> to vector<16x32xf32>
    %18 = arith.mulf %13, %17 : vector<16x32xf32>
    %c0_5 = arith.constant 0 : index
    %c0_6 = arith.constant 0 : index
    %19 = vector.load %arg2[%c0_5, %c0_6] : memref<1x32xf32, #tpu.memory_space<vmem>>, vector<1x32xf32>
    %20 = vector.broadcast %19 : vector<1x32xf32> to vector<16x32xf32>
    %21 = arith.mulf %18, %20 : vector<16x32xf32>
    %c0_7 = arith.constant 0 : index
    %c0_8 = arith.constant 0 : index
    %22 = vector.load %arg3[%c0_7, %c0_8] : memref<1x32xf32, #tpu.memory_space<vmem>>, vector<1x32xf32>
    %23 = vector.broadcast %22 : vector<1x32xf32> to vector<16x32xf32>
    %24 = arith.addf %21, %23 : vector<16x32xf32>
    %c0_9 = arith.constant 0 : index
    %c0_10 = arith.constant 0 : index
    %25 = vector.load %arg4[%c0_9, %c0_10] : memref<16x32xf32, #tpu.memory_space<vmem>>, vector<16x32xf32>
    tpu.vector_store %arg4[%c0_9, %c0_10], %24 {strides = array<i32>} : memref<16x32xf32, #tpu.memory_space<vmem>>, vector<16x32xf32>,
    return
  }
  func.func @transform_0(%arg0: i32) -> (i32, i32) {
    %c0_i32 = arith.constant 0 : i32
    %c0_i32_0 = arith.constant 0 : i32
    return %arg0, %c0_i32 : i32, i32
  }
  func.func @transform_1(%arg0: i32) -> (i32, i32) {
    %c0_i32 = arith.constant 0 : i32
    %c0_i32_0 = arith.constant 0 : i32
    %c0_i32_1 = arith.constant 0 : i32
    return %c0_i32, %c0_i32_0 : i32, i32
  }
  func.func @transform_2(%arg0: i32) -> (i32, i32) {
    %c0_i32 = arith.constant 0 : i32
    %c0_i32_0 = arith.constant 0 : i32
    %c0_i32_1 = arith.constant 0 : i32
    return %c0_i32, %c0_i32_0 : i32, i32
  }
  func.func @transform_3(%arg0: i32) -> (i32, i32) {
    %c0_i32 = arith.constant 0 : i32
    %c0_i32_0 = arith.constant 0 : i32
    return %arg0, %c0_i32 : i32, i32
  }
}

module attributes {stable_mosaic.version = 11 : i64} {
  func.func @_linear_kernel(%arg0: i32, %arg1: i32, %arg2: i32, %arg3: memref<16x32xf32, #tpu.memory_space<vmem>>, %arg4: memref<32x32xbf16, #tpu.memory_space<vmem>>, %arg5: memref<1x32xf32, #tpu.memory_space<vmem>>, %arg6: memref<16x32xf32, #tpu.memory_space<vmem>>, %arg7: memref<16x32xf32, #tpu.memory_space<vmem>>) attributes {dimension_semantics = [#tpu.dimension_semantics<parallel>, #tpu.dimension_semantics<parallel>, #tpu.dimension_semantics<arbitrary>], iteration_bounds = array<i64: 1, 1, 1>, scalar_prefetch = 0 : i64, scratch_operands = 1 : i64, tpu.core_type = #tpu.core_type<tc>, window_params = [{transform_indices = @transform_0, window_bounds = array<i64: 16, 32>}, {transform_indices = @transform_1, window_bounds = array<i64: 32, 32>}, {transform_indices = @transform_2, window_bounds = array<i64: 1, 32>}, {transform_indices = @transform_3, window_bounds = array<i64: 16, 32>}]} {
    %c0_i32 = arith.constant 0 : i32
    %0 = arith.cmpi eq, %arg2, %c0_i32 : i32
    %1 = arith.extui %0 : i1 to i32
    %c0_i32_0 = arith.constant 0 : i32
    %2 = arith.cmpi ne, %1, %c0_i32_0 : i32
    scf.if %2 {
      %cst_10 = arith.constant 0.000000e+00 : f32
      %13 = vector.broadcast %cst_10 : f32 to vector<16x32xf32>
      %c0_11 = arith.constant 0 : index
      %c0_12 = arith.constant 0 : index
      %14 = vector.load %arg7[%c0_11, %c0_12] : memref<16x32xf32, #tpu.memory_space<vmem>>, vector<16x32xf32>
      tpu.vector_store %arg7[%c0_11, %c0_12], %13 {strides = array<i32>} : memref<16x32xf32, #tpu.memory_space<vmem>>, vector<16x32xf32>,
    } else {
    }
    %c0 = arith.constant 0 : index
    %c0_1 = arith.constant 0 : index
    %3 = vector.load %arg7[%c0, %c0_1] : memref<16x32xf32, #tpu.memory_space<vmem>>, vector<16x32xf32>
    %c0_2 = arith.constant 0 : index
    %c0_3 = arith.constant 0 : index
    %4 = vector.load %arg3[%c0_2, %c0_3] : memref<16x32xf32, #tpu.memory_space<vmem>>, vector<16x32xf32>
    %5 = arith.truncf %4 : vector<16x32xf32> to vector<16x32xbf16>
    %c0_4 = arith.constant 0 : index
    %c0_5 = arith.constant 0 : index
    %6 = vector.load %arg4[%c0_4, %c0_5] : memref<32x32xbf16, #tpu.memory_space<vmem>>, vector<32x32xbf16>
    %cst = arith.constant dense<0.000000e+00> : vector<16x32xf32>
    %7 = tpu.matmul %5, %6, %cst {dimension_numbers = #tpu.dot_dimension_numbers<[1], [0], [0], [1], [0, 0, 1, 1], [], []>} : vector<16x32xbf16>, vector<32x32xbf16>, vector<16x32xf32> -> vector<16x32xf32>
    %8 = arith.addf %3, %7 : vector<16x32xf32>
    %c0_6 = arith.constant 0 : index
    %c0_7 = arith.constant 0 : index
    %9 = vector.load %arg7[%c0_6, %c0_7] : memref<16x32xf32, #tpu.memory_space<vmem>>, vector<16x32xf32>
    tpu.vector_store %arg7[%c0_6, %c0_7], %8 {strides = array<i32>} : memref<16x32xf32, #tpu.memory_space<vmem>>, vector<16x32xf32>,
    %c0_i32_8 = arith.constant 0 : i32
    %10 = arith.cmpi eq, %arg2, %c0_i32_8 : i32
    %11 = arith.extui %10 : i1 to i32
    %c0_i32_9 = arith.constant 0 : i32
    %12 = arith.cmpi ne, %11, %c0_i32_9 : i32
    scf.if %12 {
      %c0_10 = arith.constant 0 : index
      %c0_11 = arith.constant 0 : index
      %13 = vector.load %arg7[%c0_10, %c0_11] : memref<16x32xf32, #tpu.memory_space<vmem>>, vector<16x32xf32>
      %c0_12 = arith.constant 0 : index
      %c0_13 = arith.constant 0 : index
      %14 = vector.load %arg5[%c0_12, %c0_13] : memref<1x32xf32, #tpu.memory_space<vmem>>, vector<1x32xf32>
      %15 = vector.broadcast %14 : vector<1x32xf32> to vector<16x32xf32>
      %16 = arith.addf %13, %15 : vector<16x32xf32>
      %c0_14 = arith.constant 0 : index
      %c0_15 = arith.constant 0 : index
      %17 = vector.load %arg6[%c0_14, %c0_15] : memref<16x32xf32, #tpu.memory_space<vmem>>, vector<16x32xf32>
      tpu.vector_store %arg6[%c0_14, %c0_15], %16 {strides = array<i32>} : memref<16x32xf32, #tpu.memory_space<vmem>>, vector<16x32xf32>,
    } else {
    }
    return
  }
  func.func @transform_0(%arg0: i32, %arg1: i32, %arg2: i32) -> (i32, i32) {
    %c0_i32 = arith.constant 0 : i32
    return %arg0, %arg2 : i32, i32
  }
  func.func @transform_1(%arg0: i32, %arg1: i32, %arg2: i32) -> (i32, i32) {
    %c0_i32 = arith.constant 0 : i32
    return %arg2, %arg1 : i32, i32
  }
  func.func @transform_2(%arg0: i32, %arg1: i32, %arg2: i32) -> (i32, i32) {
    %c0_i32 = arith.constant 0 : i32
    %c0_i32_0 = arith.constant 0 : i32
    return %c0_i32, %arg1 : i32, i32
  }
  func.func @transform_3(%arg0: i32, %arg1: i32, %arg2: i32) -> (i32, i32) {
    %c0_i32 = arith.constant 0 : i32
    return %arg0, %arg1 : i32, i32
  }
}

module attributes {stable_mosaic.version = 11 : i64} {
  func.func @_linear_kernel(%arg0: i32, %arg1: i32, %arg2: i32, %arg3: memref<32x32xf32, #tpu.memory_space<vmem>>, %arg4: memref<32x64xbf16, #tpu.memory_space<vmem>>, %arg5: memref<1x64xf32, #tpu.memory_space<vmem>>, %arg6: memref<32x64xf32, #tpu.memory_space<vmem>>, %arg7: memref<32x64xf32, #tpu.memory_space<vmem>>) attributes {dimension_semantics = [#tpu.dimension_semantics<parallel>, #tpu.dimension_semantics<parallel>, #tpu.dimension_semantics<arbitrary>], iteration_bounds = array<i64: 1, 1, 1>, scalar_prefetch = 0 : i64, scratch_operands = 1 : i64, tpu.core_type = #tpu.core_type<tc>, window_params = [{transform_indices = @transform_0, window_bounds = array<i64: 32, 32>}, {transform_indices = @transform_1, window_bounds = array<i64: 32, 64>}, {transform_indices = @transform_2, window_bounds = array<i64: 1, 64>}, {transform_indices = @transform_3, window_bounds = array<i64: 32, 64>}]} {
    %c0_i32 = arith.constant 0 : i32
    %0 = arith.cmpi eq, %arg2, %c0_i32 : i32
    %1 = arith.extui %0 : i1 to i32
    %c0_i32_0 = arith.constant 0 : i32
    %2 = arith.cmpi ne, %1, %c0_i32_0 : i32
    scf.if %2 {
      %cst_10 = arith.constant 0.000000e+00 : f32
      %13 = vector.broadcast %cst_10 : f32 to vector<32x64xf32>
      %c0_11 = arith.constant 0 : index
      %c0_12 = arith.constant 0 : index
      %14 = vector.load %arg7[%c0_11, %c0_12] : memref<32x64xf32, #tpu.memory_space<vmem>>, vector<32x64xf32>
      tpu.vector_store %arg7[%c0_11, %c0_12], %13 {strides = array<i32>} : memref<32x64xf32, #tpu.memory_space<vmem>>, vector<32x64xf32>,
    } else {
    }
    %c0 = arith.constant 0 : index
    %c0_1 = arith.constant 0 : index
    %3 = vector.load %arg7[%c0, %c0_1] : memref<32x64xf32, #tpu.memory_space<vmem>>, vector<32x64xf32>
    %c0_2 = arith.constant 0 : index
    %c0_3 = arith.constant 0 : index
    %4 = vector.load %arg3[%c0_2, %c0_3] : memref<32x32xf32, #tpu.memory_space<vmem>>, vector<32x32xf32>
    %5 = arith.truncf %4 : vector<32x32xf32> to vector<32x32xbf16>
    %c0_4 = arith.constant 0 : index
    %c0_5 = arith.constant 0 : index
    %6 = vector.load %arg4[%c0_4, %c0_5] : memref<32x64xbf16, #tpu.memory_space<vmem>>, vector<32x64xbf16>
    %cst = arith.constant dense<0.000000e+00> : vector<32x64xf32>
    %7 = tpu.matmul %5, %6, %cst {dimension_numbers = #tpu.dot_dimension_numbers<[1], [0], [0], [1], [0, 0, 1, 1], [], []>} : vector<32x32xbf16>, vector<32x64xbf16>, vector<32x64xf32> -> vector<32x64xf32>
    %8 = arith.addf %3, %7 : vector<32x64xf32>
    %c0_6 = arith.constant 0 : index
    %c0_7 = arith.constant 0 : index
    %9 = vector.load %arg7[%c0_6, %c0_7] : memref<32x64xf32, #tpu.memory_space<vmem>>, vector<32x64xf32>
    tpu.vector_store %arg7[%c0_6, %c0_7], %8 {strides = array<i32>} : memref<32x64xf32, #tpu.memory_space<vmem>>, vector<32x64xf32>,
    %c0_i32_8 = arith.constant 0 : i32
    %10 = arith.cmpi eq, %arg2, %c0_i32_8 : i32
    %11 = arith.extui %10 : i1 to i32
    %c0_i32_9 = arith.constant 0 : i32
    %12 = arith.cmpi ne, %11, %c0_i32_9 : i32
    scf.if %12 {
      %c0_10 = arith.constant 0 : index
      %c0_11 = arith.constant 0 : index
      %13 = vector.load %arg7[%c0_10, %c0_11] : memref<32x64xf32, #tpu.memory_space<vmem>>, vector<32x64xf32>
      %c0_12 = arith.constant 0 : index
      %c0_13 = arith.constant 0 : index
      %14 = vector.load %arg5[%c0_12, %c0_13] : memref<1x64xf32, #tpu.memory_space<vmem>>, vector<1x64xf32>
      %15 = vector.broadcast %14 : vector<1x64xf32> to vector<32x64xf32>
      %16 = arith.addf %13, %15 : vector<32x64xf32>
      %c0_14 = arith.constant 0 : index
      %c0_15 = arith.constant 0 : index
      %17 = vector.load %arg6[%c0_14, %c0_15] : memref<32x64xf32, #tpu.memory_space<vmem>>, vector<32x64xf32>
      tpu.vector_store %arg6[%c0_14, %c0_15], %16 {strides = array<i32>} : memref<32x64xf32, #tpu.memory_space<vmem>>, vector<32x64xf32>,
    } else {
    }
    return
  }
  func.func @transform_0(%arg0: i32, %arg1: i32, %arg2: i32) -> (i32, i32) {
    %c0_i32 = arith.constant 0 : i32
    return %arg0, %arg2 : i32, i32
  }
  func.func @transform_1(%arg0: i32, %arg1: i32, %arg2: i32) -> (i32, i32) {
    %c0_i32 = arith.constant 0 : i32
    return %arg2, %arg1 : i32, i32
  }
  func.func @transform_2(%arg0: i32, %arg1: i32, %arg2: i32) -> (i32, i32) {
    %c0_i32 = arith.constant 0 : i32
    %c0_i32_0 = arith.constant 0 : i32
    return %c0_i32, %arg1 : i32, i32
  }
  func.func @transform_3(%arg0: i32, %arg1: i32, %arg2: i32) -> (i32, i32) {
    %c0_i32 = arith.constant 0 : i32
    return %arg0, %arg1 : i32, i32
  }
}

module attributes {stable_mosaic.version = 11 : i64} {
  func.func @_attention_kernel(%arg0: i32, %arg1: i32, %arg2: memref<1x8x32xf32, #tpu.memory_space<vmem>>, %arg3: memref<1x16x32xf32, #tpu.memory_space<vmem>>, %arg4: memref<1x16x32xf32, #tpu.memory_space<vmem>>, %arg5: memref<1x8x32xf32, #tpu.memory_space<vmem>>) attributes {dimension_semantics = [#tpu.dimension_semantics<parallel>, #tpu.dimension_semantics<parallel>], iteration_bounds = array<i64: 2, 1>, scalar_prefetch = 0 : i64, scratch_operands = 0 : i64, tpu.core_type = #tpu.core_type<tc>, window_params = [{transform_indices = @transform_0, window_bounds = array<i64: 1, 8, 32>}, {transform_indices = @transform_1, window_bounds = array<i64: 1, 16, 32>}, {transform_indices = @transform_2, window_bounds = array<i64: 1, 16, 32>}, {transform_indices = @transform_3, window_bounds = array<i64: 1, 8, 32>}]} {
    %c0 = arith.constant 0 : index
    %c0_0 = arith.constant 0 : index
    %c0_1 = arith.constant 0 : index
    %0 = vector.load %arg2[%c0, %c0_0, %c0_1] : memref<1x8x32xf32, #tpu.memory_space<vmem>>, vector<1x8x32xf32>
    %1 = vector.shape_cast %0 : vector<1x8x32xf32> to vector<8x32xf32>
    %cst = arith.constant 0.353553385 : f32
    %2 = vector.broadcast %cst : f32 to vector<8x32xf32>
    %3 = arith.mulf %1, %2 : vector<8x32xf32>
    %4 = arith.truncf %3 : vector<8x32xf32> to vector<8x32xbf16>
    %c0_2 = arith.constant 0 : index
    %c0_3 = arith.constant 0 : index
    %c0_4 = arith.constant 0 : index
    %5 = vector.load %arg3[%c0_2, %c0_3, %c0_4] : memref<1x16x32xf32, #tpu.memory_space<vmem>>, vector<1x16x32xf32>
    %6 = vector.shape_cast %5 : vector<1x16x32xf32> to vector<16x32xf32>
    %7 = arith.truncf %6 : vector<16x32xf32> to vector<16x32xbf16>
    %c0_5 = arith.constant 0 : index
    %c0_6 = arith.constant 0 : index
    %c0_7 = arith.constant 0 : index
    %8 = vector.load %arg4[%c0_5, %c0_6, %c0_7] : memref<1x16x32xf32, #tpu.memory_space<vmem>>, vector<1x16x32xf32>
    %9 = vector.shape_cast %8 : vector<1x16x32xf32> to vector<16x32xf32>
    %10 = arith.truncf %9 : vector<16x32xf32> to vector<16x32xbf16>
    %11 = vector.extract_strided_slice %4 {offsets = [0, 0], sizes = [8, 8], strides = [1, 1]} : vector<8x32xbf16> to vector<8x8xbf16>
    %12 = vector.extract_strided_slice %7 {offsets = [0, 0], sizes = [16, 8], strides = [1, 1]} : vector<16x32xbf16> to vector<16x8xbf16>
    %13 = vector.extract_strided_slice %10 {offsets = [0, 0], sizes = [16, 8], strides = [1, 1]} : vector<16x32xbf16> to vector<16x8xbf16>
    %cst_8 = arith.constant dense<0.000000e+00> : vector<8x16xf32>
    %14 = tpu.matmul %11, %12, %cst_8 {dimension_numbers = #tpu.dot_dimension_numbers<[1], [1], [0], [0], [0, 0, 1, 0], [], []>} : vector<8x8xbf16>, vector<16x8xbf16>, vector<8x16xf32> -> vector<8x16xf32>
    %cst_9 = arith.constant dense<0xFF800000> : vector<8xf32>
    %15 = vector.multi_reduction <maximumf>, %14, %cst_9 [1] : vector<8x16xf32> to vector<8xf32>
    %16 = vector.shape_cast %15 : vector<8xf32> to vector<8x1xf32>
    %17 = vector.broadcast %16 : vector<8x1xf32> to vector<8x16xf32>
    %18 = arith.subf %14, %17 : vector<8x16xf32>
    %19 = math.exp %18 : vector<8x16xf32>
    %cst_10 = arith.constant dense<0.000000e+00> : vector<8xf32>
    %20 = vector.multi_reduction <add>, %19, %cst_10 [1] : vector<8x16xf32> to vector<8xf32>
    %21 = vector.shape_cast %20 : vector<8xf32> to vector<8x1xf32>
    %22 = tpu.reciprocal %21 {approx = true} : vector<8x1xf32> -> vector<8x1xf32>
    %23 = vector.broadcast %22 : vector<8x1xf32> to vector<8x16xf32>
    %24 = arith.mulf %19, %23 : vector<8x16xf32>
    %25 = arith.truncf %24 : vector<8x16xf32> to vector<8x16xbf16>
    %cst_11 = arith.constant dense<0.000000e+00> : vector<8x8xf32>
    %26 = tpu.matmul %25, %13, %cst_11 {dimension_numbers = #tpu.dot_dimension_numbers<[1], [0], [0], [1], [0, 0, 1, 1], [], []>} : vector<8x16xbf16>, vector<16x8xbf16>, vector<8x8xf32> -> vector<8x8xf32>
    %27 = vector.extract_strided_slice %4 {offsets = [0, 8], sizes = [8, 8], strides = [1, 1]} : vector<8x32xbf16> to vector<8x8xbf16>
    %28 = vector.extract_strided_slice %7 {offsets = [0, 8], sizes = [16, 8], strides = [1, 1]} : vector<16x32xbf16> to vector<16x8xbf16>
    %29 = vector.extract_strided_slice %10 {offsets = [0, 8], sizes = [16, 8], strides = [1, 1]} : vector<16x32xbf16> to vector<16x8xbf16>
    %cst_12 = arith.constant dense<0.000000e+00> : vector<8x16xf32>
    %30 = tpu.matmul %27, %28, %cst_12 {dimension_numbers = #tpu.dot_dimension_numbers<[1], [1], [0], [0], [0, 0, 1, 0], [], []>} : vector<8x8xbf16>, vector<16x8xbf16>, vector<8x16xf32> -> vector<8x16xf32>
    %cst_13 = arith.constant dense<0xFF800000> : vector<8xf32>
    %31 = vector.multi_reduction <maximumf>, %30, %cst_13 [1] : vector<8x16xf32> to vector<8xf32>
    %32 = vector.shape_cast %31 : vector<8xf32> to vector<8x1xf32>
    %33 = vector.broadcast %32 : vector<8x1xf32> to vector<8x16xf32>
    %34 = arith.subf %30, %33 : vector<8x16xf32>
    %35 = math.exp %34 : vector<8x16xf32>
    %cst_14 = arith.constant dense<0.000000e+00> : vector<8xf32>
    %36 = vector.multi_reduction <add>, %35, %cst_14 [1] : vector<8x16xf32> to vector<8xf32>
    %37 = vector.shape_cast %36 : vector<8xf32> to vector<8x1xf32>
    %38 = tpu.reciprocal %37 {approx = true} : vector<8x1xf32> -> vector<8x1xf32>
    %39 = vector.broadcast %38 : vector<8x1xf32> to vector<8x16xf32>
    %40 = arith.mulf %35, %39 : vector<8x16xf32>
    %41 = arith.truncf %40 : vector<8x16xf32> to vector<8x16xbf16>
    %cst_15 = arith.constant dense<0.000000e+00> : vector<8x8xf32>
    %42 = tpu.matmul %41, %29, %cst_15 {dimension_numbers = #tpu.dot_dimension_numbers<[1], [0], [0], [1], [0, 0, 1, 1], [], []>} : vector<8x16xbf16>, vector<16x8xbf16>, vector<8x8xf32> -> vector<8x8xf32>
    %43 = vector.extract_strided_slice %4 {offsets = [0, 16], sizes = [8, 8], strides = [1, 1]} : vector<8x32xbf16> to vector<8x8xbf16>
    %44 = vector.extract_strided_slice %7 {offsets = [0, 16], sizes = [16, 8], strides = [1, 1]} : vector<16x32xbf16> to vector<16x8xbf16>
    %45 = vector.extract_strided_slice %10 {offsets = [0, 16], sizes = [16, 8], strides = [1, 1]} : vector<16x32xbf16> to vector<16x8xbf16>
    %cst_16 = arith.constant dense<0.000000e+00> : vector<8x16xf32>
    %46 = tpu.matmul %43, %44, %cst_16 {dimension_numbers = #tpu.dot_dimension_numbers<[1], [1], [0], [0], [0, 0, 1, 0], [], []>} : vector<8x8xbf16>, vector<16x8xbf16>, vector<8x16xf32> -> vector<8x16xf32>
    %cst_17 = arith.constant dense<0xFF800000> : vector<8xf32>
    %47 = vector.multi_reduction <maximumf>, %46, %cst_17 [1] : vector<8x16xf32> to vector<8xf32>
    %48 = vector.shape_cast %47 : vector<8xf32> to vector<8x1xf32>
    %49 = vector.broadcast %48 : vector<8x1xf32> to vector<8x16xf32>
    %50 = arith.subf %46, %49 : vector<8x16xf32>
    %51 = math.exp %50 : vector<8x16xf32>
    %cst_18 = arith.constant dense<0.000000e+00> : vector<8xf32>
    %52 = vector.multi_reduction <add>, %51, %cst_18 [1] : vector<8x16xf32> to vector<8xf32>
    %53 = vector.shape_cast %52 : vector<8xf32> to vector<8x1xf32>
    %54 = tpu.reciprocal %53 {approx = true} : vector<8x1xf32> -> vector<8x1xf32>
    %55 = vector.broadcast %54 : vector<8x1xf32> to vector<8x16xf32>
    %56 = arith.mulf %51, %55 : vector<8x16xf32>
    %57 = arith.truncf %56 : vector<8x16xf32> to vector<8x16xbf16>
    %cst_19 = arith.constant dense<0.000000e+00> : vector<8x8xf32>
    %58 = tpu.matmul %57, %45, %cst_19 {dimension_numbers = #tpu.dot_dimension_numbers<[1], [0], [0], [1], [0, 0, 1, 1], [], []>} : vector<8x16xbf16>, vector<16x8xbf16>, vector<8x8xf32> -> vector<8x8xf32>
    %59 = vector.extract_strided_slice %4 {offsets = [0, 24], sizes = [8, 8], strides = [1, 1]} : vector<8x32xbf16> to vector<8x8xbf16>
    %60 = vector.extract_strided_slice %7 {offsets = [0, 24], sizes = [16, 8], strides = [1, 1]} : vector<16x32xbf16> to vector<16x8xbf16>
    %61 = vector.extract_strided_slice %10 {offsets = [0, 24], sizes = [16, 8], strides = [1, 1]} : vector<16x32xbf16> to vector<16x8xbf16>
    %cst_20 = arith.constant dense<0.000000e+00> : vector<8x16xf32>
    %62 = tpu.matmul %59, %60, %cst_20 {dimension_numbers = #tpu.dot_dimension_numbers<[1], [1], [0], [0], [0, 0, 1, 0], [], []>} : vector<8x8xbf16>, vector<16x8xbf16>, vector<8x16xf32> -> vector<8x16xf32>
    %cst_21 = arith.constant dense<0xFF800000> : vector<8xf32>
    %63 = vector.multi_reduction <maximumf>, %62, %cst_21 [1] : vector<8x16xf32> to vector<8xf32>
    %64 = vector.shape_cast %63 : vector<8xf32> to vector<8x1xf32>
    %65 = vector.broadcast %64 : vector<8x1xf32> to vector<8x16xf32>
    %66 = arith.subf %62, %65 : vector<8x16xf32>
    %67 = math.exp %66 : vector<8x16xf32>
    %cst_22 = arith.constant dense<0.000000e+00> : vector<8xf32>
    %68 = vector.multi_reduction <add>, %67, %cst_22 [1] : vector<8x16xf32> to vector<8xf32>
    %69 = vector.shape_cast %68 : vector<8xf32> to vector<8x1xf32>
    %70 = tpu.reciprocal %69 {approx = true} : vector<8x1xf32> -> vector<8x1xf32>
    %71 = vector.broadcast %70 : vector<8x1xf32> to vector<8x16xf32>
    %72 = arith.mulf %67, %71 : vector<8x16xf32>
    %73 = arith.truncf %72 : vector<8x16xf32> to vector<8x16xbf16>
    %cst_23 = arith.constant dense<0.000000e+00> : vector<8x8xf32>
    %74 = tpu.matmul %73, %61, %cst_23 {dimension_numbers = #tpu.dot_dimension_numbers<[1], [0], [0], [1], [0, 0, 1, 1], [], []>} : vector<8x16xbf16>, vector<16x8xbf16>, vector<8x8xf32> -> vector<8x8xf32>
    %75 = tpu.concatenate %26, %42, %58, %74 in 1 : vector<8x8xf32>, vector<8x8xf32>, vector<8x8xf32>, vector<8x8xf32> -> vector<8x32xf32>
    %c0_24 = arith.constant 0 : index
    %c0_25 = arith.constant 0 : index
    %c0_26 = arith.constant 0 : index
    %76 = vector.load %arg5[%c0_24, %c0_25, %c0_26] : memref<1x8x32xf32, #tpu.memory_space<vmem>>, vector<1x8x32xf32>
    %77 = vector.shape_cast %76 : vector<1x8x32xf32> to vector<8x32xf32>
    %78 = vector.shape_cast %75 : vector<8x32xf32> to vector<1x8x32xf32>
    tpu.vector_store %arg5[%c0_24, %c0_25, %c0_26], %78 {strides = array<i32>} : memref<1x8x32xf32, #tpu.memory_space<vmem>>, vector<1x8x32xf32>,
    return
  }
  func.func @transform_0(%arg0: i32, %arg1: i32) -> (i32, i32, i32) {
    %c0_i32 = arith.constant 0 : i32
    %c0_i32_0 = arith.constant 0 : i32
    return %arg0, %c0_i32, %arg1 : i32, i32, i32
  }
  func.func @transform_1(%arg0: i32, %arg1: i32) -> (i32, i32, i32) {
    %c0_i32 = arith.constant 0 : i32
    %c0_i32_0 = arith.constant 0 : i32
    return %arg0, %c0_i32, %arg1 : i32, i32, i32
  }
  func.func @transform_2(%arg0: i32, %arg1: i32) -> (i32, i32, i32) {
    %c0_i32 = arith.constant 0 : i32
    %c0_i32_0 = arith.constant 0 : i32
    return %arg0, %c0_i32, %arg1 : i32, i32, i32
  }
  func.func @transform_3(%arg0: i32, %arg1: i32) -> (i32, i32, i32) {
    %c0_i32 = arith.constant 0 : i32
    %c0_i32_0 = arith.constant 0 : i32
    return %arg0, %c0_i32, %arg1 : i32, i32, i32
  }
}

module attributes {stable_mosaic.version = 11 : i64} {
  func.func @_linear_kernel(%arg0: i32, %arg1: i32, %arg2: i32, %arg3: memref<16x32xf32, #tpu.memory_space<vmem>>, %arg4: memref<32x64xbf16, #tpu.memory_space<vmem>>, %arg5: memref<1x64xf32, #tpu.memory_space<vmem>>, %arg6: memref<16x64xf32, #tpu.memory_space<vmem>>, %arg7: memref<16x64xf32, #tpu.memory_space<vmem>>) attributes {dimension_semantics = [#tpu.dimension_semantics<parallel>, #tpu.dimension_semantics<parallel>, #tpu.dimension_semantics<arbitrary>], iteration_bounds = array<i64: 1, 1, 1>, scalar_prefetch = 0 : i64, scratch_operands = 1 : i64, tpu.core_type = #tpu.core_type<tc>, window_params = [{transform_indices = @transform_0, window_bounds = array<i64: 16, 32>}, {transform_indices = @transform_1, window_bounds = array<i64: 32, 64>}, {transform_indices = @transform_2, window_bounds = array<i64: 1, 64>}, {transform_indices = @transform_3, window_bounds = array<i64: 16, 64>}]} {
    %c0_i32 = arith.constant 0 : i32
    %0 = arith.cmpi eq, %arg2, %c0_i32 : i32
    %1 = arith.extui %0 : i1 to i32
    %c0_i32_0 = arith.constant 0 : i32
    %2 = arith.cmpi ne, %1, %c0_i32_0 : i32
    scf.if %2 {
      %cst_10 = arith.constant 0.000000e+00 : f32
      %13 = vector.broadcast %cst_10 : f32 to vector<16x64xf32>
      %c0_11 = arith.constant 0 : index
      %c0_12 = arith.constant 0 : index
      %14 = vector.load %arg7[%c0_11, %c0_12] : memref<16x64xf32, #tpu.memory_space<vmem>>, vector<16x64xf32>
      tpu.vector_store %arg7[%c0_11, %c0_12], %13 {strides = array<i32>} : memref<16x64xf32, #tpu.memory_space<vmem>>, vector<16x64xf32>,
    } else {
    }
    %c0 = arith.constant 0 : index
    %c0_1 = arith.constant 0 : index
    %3 = vector.load %arg7[%c0, %c0_1] : memref<16x64xf32, #tpu.memory_space<vmem>>, vector<16x64xf32>
    %c0_2 = arith.constant 0 : index
    %c0_3 = arith.constant 0 : index
    %4 = vector.load %arg3[%c0_2, %c0_3] : memref<16x32xf32, #tpu.memory_space<vmem>>, vector<16x32xf32>
    %5 = arith.truncf %4 : vector<16x32xf32> to vector<16x32xbf16>
    %c0_4 = arith.constant 0 : index
    %c0_5 = arith.constant 0 : index
    %6 = vector.load %arg4[%c0_4, %c0_5] : memref<32x64xbf16, #tpu.memory_space<vmem>>, vector<32x64xbf16>
    %cst = arith.constant dense<0.000000e+00> : vector<16x64xf32>
    %7 = tpu.matmul %5, %6, %cst {dimension_numbers = #tpu.dot_dimension_numbers<[1], [0], [0], [1], [0, 0, 1, 1], [], []>} : vector<16x32xbf16>, vector<32x64xbf16>, vector<16x64xf32> -> vector<16x64xf32>
    %8 = arith.addf %3, %7 : vector<16x64xf32>
    %c0_6 = arith.constant 0 : index
    %c0_7 = arith.constant 0 : index
    %9 = vector.load %arg7[%c0_6, %c0_7] : memref<16x64xf32, #tpu.memory_space<vmem>>, vector<16x64xf32>
    tpu.vector_store %arg7[%c0_6, %c0_7], %8 {strides = array<i32>} : memref<16x64xf32, #tpu.memory_space<vmem>>, vector<16x64xf32>,
    %c0_i32_8 = arith.constant 0 : i32
    %10 = arith.cmpi eq, %arg2, %c0_i32_8 : i32
    %11 = arith.extui %10 : i1 to i32
    %c0_i32_9 = arith.constant 0 : i32
    %12 = arith.cmpi ne, %11, %c0_i32_9 : i32
    scf.if %12 {
      %c0_10 = arith.constant 0 : index
      %c0_11 = arith.constant 0 : index
      %13 = vector.load %arg7[%c0_10, %c0_11] : memref<16x64xf32, #tpu.memory_space<vmem>>, vector<16x64xf32>
      %c0_12 = arith.constant 0 : index
      %c0_13 = arith.constant 0 : index
      %14 = vector.load %arg5[%c0_12, %c0_13] : memref<1x64xf32, #tpu.memory_space<vmem>>, vector<1x64xf32>
      %15 = vector.broadcast %14 : vector<1x64xf32> to vector<16x64xf32>
      %16 = arith.addf %13, %15 : vector<16x64xf32>
      %cst_14 = arith.constant 5.000000e-01 : f32
      %17 = vector.broadcast %cst_14 : f32 to vector<16x64xf32>
      %18 = arith.mulf %17, %16 : vector<16x64xf32>
      %cst_15 = arith.constant 0.707106769 : f32
      %19 = vector.broadcast %cst_15 : f32 to vector<16x64xf32>
      %20 = arith.mulf %16, %19 : vector<16x64xf32>
      %21 = math.erf %20 : vector<16x64xf32>
      %cst_16 = arith.constant 1.000000e+00 : f32
      %22 = vector.broadcast %cst_16 : f32 to vector<16x64xf32>
      %23 = arith.addf %22, %21 : vector<16x64xf32>
      %24 = arith.mulf %18, %23 : vector<16x64xf32>
      %c0_17 = arith.constant 0 : index
      %c0_18 = arith.constant 0 : index
      %25 = vector.load %arg6[%c0_17, %c0_18] : memref<16x64xf32, #tpu.memory_space<vmem>>, vector<16x64xf32>
      tpu.vector_store %arg6[%c0_17, %c0_18], %24 {strides = array<i32>} : memref<16x64xf32, #tpu.memory_space<vmem>>, vector<16x64xf32>,
    } else {
    }
    return
  }
  func.func @transform_0(%arg0: i32, %arg1: i32, %arg2: i32) -> (i32, i32) {
    %c0_i32 = arith.constant 0 : i32
    return %arg0, %arg2 : i32, i32
  }
  func.func @transform_1(%arg0: i32, %arg1: i32, %arg2: i32) -> (i32, i32) {
    %c0_i32 = arith.constant 0 : i32
    return %arg2, %arg1 : i32, i32
  }
  func.func @transform_2(%arg0: i32, %arg1: i32, %arg2: i32) -> (i32, i32) {
    %c0_i32 = arith.constant 0 : i32
    %c0_i32_0 = arith.constant 0 : i32
    return %c0_i32, %arg1 : i32, i32
  }
  func.func @transform_3(%arg0: i32, %arg1: i32, %arg2: i32) -> (i32, i32) {
    %c0_i32 = arith.constant 0 : i32
    return %arg0, %arg1 : i32, i32
  }
}

module attributes {stable_mosaic.version = 11 : i64} {
  func.func @_linear_kernel(%arg0: i32, %arg1: i32, %arg2: i32, %arg3: memref<16x64xf32, #tpu.memory_space<vmem>>, %arg4: memref<64x32xbf16, #tpu.memory_space<vmem>>, %arg5: memref<1x32xf32, #tpu.memory_space<vmem>>, %arg6: memref<16x32xf32, #tpu.memory_space<vmem>>, %arg7: memref<16x32xf32, #tpu.memory_space<vmem>>, %arg8: memref<16x32xf32, #tpu.memory_space<vmem>>) attributes {dimension_semantics = [#tpu.dimension_semantics<parallel>, #tpu.dimension_semantics<parallel>, #tpu.dimension_semantics<arbitrary>], iteration_bounds = array<i64: 1, 1, 1>, scalar_prefetch = 0 : i64, scratch_operands = 1 : i64, tpu.core_type = #tpu.core_type<tc>, window_params = [{transform_indices = @transform_0, window_bounds = array<i64: 16, 64>}, {transform_indices = @transform_1, window_bounds = array<i64: 64, 32>}, {transform_indices = @transform_2, window_bounds = array<i64: 1, 32>}, {transform_indices = @transform_3, window_bounds = array<i64: 16, 32>}, {transform_indices = @transform_4, window_bounds = array<i64: 16, 32>}]} {
    %c0_i32 = arith.constant 0 : i32
    %0 = arith.cmpi eq, %arg2, %c0_i32 : i32
    %1 = arith.extui %0 : i1 to i32
    %c0_i32_0 = arith.constant 0 : i32
    %2 = arith.cmpi ne, %1, %c0_i32_0 : i32
    scf.if %2 {
      %cst_10 = arith.constant 0.000000e+00 : f32
      %13 = vector.broadcast %cst_10 : f32 to vector<16x32xf32>
      %c0_11 = arith.constant 0 : index
      %c0_12 = arith.constant 0 : index
      %14 = vector.load %arg8[%c0_11, %c0_12] : memref<16x32xf32, #tpu.memory_space<vmem>>, vector<16x32xf32>
      tpu.vector_store %arg8[%c0_11, %c0_12], %13 {strides = array<i32>} : memref<16x32xf32, #tpu.memory_space<vmem>>, vector<16x32xf32>,
    } else {
    }
    %c0 = arith.constant 0 : index
    %c0_1 = arith.constant 0 : index
    %3 = vector.load %arg8[%c0, %c0_1] : memref<16x32xf32, #tpu.memory_space<vmem>>, vector<16x32xf32>
    %c0_2 = arith.constant 0 : index
    %c0_3 = arith.constant 0 : index
    %4 = vector.load %arg3[%c0_2, %c0_3] : memref<16x64xf32, #tpu.memory_space<vmem>>, vector<16x64xf32>
    %5 = arith.truncf %4 : vector<16x64xf32> to vector<16x64xbf16>
    %c0_4 = arith.constant 0 : index
    %c0_5 = arith.constant 0 : index
    %6 = vector.load %arg4[%c0_4, %c0_5] : memref<64x32xbf16, #tpu.memory_space<vmem>>, vector<64x32xbf16>
    %cst = arith.constant dense<0.000000e+00> : vector<16x32xf32>
    %7 = tpu.matmul %5, %6, %cst {dimension_numbers = #tpu.dot_dimension_numbers<[1], [0], [0], [1], [0, 0, 1, 1], [], []>} : vector<16x64xbf16>, vector<64x32xbf16>, vector<16x32xf32> -> vector<16x32xf32>
    %8 = arith.addf %3, %7 : vector<16x32xf32>
    %c0_6 = arith.constant 0 : index
    %c0_7 = arith.constant 0 : index
    %9 = vector.load %arg8[%c0_6, %c0_7] : memref<16x32xf32, #tpu.memory_space<vmem>>, vector<16x32xf32>
    tpu.vector_store %arg8[%c0_6, %c0_7], %8 {strides = array<i32>} : memref<16x32xf32, #tpu.memory_space<vmem>>, vector<16x32xf32>,
    %c0_i32_8 = arith.constant 0 : i32
    %10 = arith.cmpi eq, %arg2, %c0_i32_8 : i32
    %11 = arith.extui %10 : i1 to i32
    %c0_i32_9 = arith.constant 0 : i32
    %12 = arith.cmpi ne, %11, %c0_i32_9 : i32
    scf.if %12 {
      %c0_10 = arith.constant 0 : index
      %c0_11 = arith.constant 0 : index
      %13 = vector.load %arg8[%c0_10, %c0_11] : memref<16x32xf32, #tpu.memory_space<vmem>>, vector<16x32xf32>
      %c0_12 = arith.constant 0 : index
      %c0_13 = arith.constant 0 : index
      %14 = vector.load %arg5[%c0_12, %c0_13] : memref<1x32xf32, #tpu.memory_space<vmem>>, vector<1x32xf32>
      %15 = vector.broadcast %14 : vector<1x32xf32> to vector<16x32xf32>
      %16 = arith.addf %13, %15 : vector<16x32xf32>
      %c0_14 = arith.constant 0 : index
      %c0_15 = arith.constant 0 : index
      %17 = vector.load %arg6[%c0_14, %c0_15] : memref<16x32xf32, #tpu.memory_space<vmem>>, vector<16x32xf32>
      %18 = arith.addf %16, %17 : vector<16x32xf32>
      %c0_16 = arith.constant 0 : index
      %c0_17 = arith.constant 0 : index
      %19 = vector.load %arg7[%c0_16, %c0_17] : memref<16x32xf32, #tpu.memory_space<vmem>>, vector<16x32xf32>
      tpu.vector_store %arg7[%c0_16, %c0_17], %18 {strides = array<i32>} : memref<16x32xf32, #tpu.memory_space<vmem>>, vector<16x32xf32>,
    } else {
    }
    return
  }
  func.func @transform_0(%arg0: i32, %arg1: i32, %arg2: i32) -> (i32, i32) {
    %c0_i32 = arith.constant 0 : i32
    return %arg0, %arg2 : i32, i32
  }
  func.func @transform_1(%arg0: i32, %arg1: i32, %arg2: i32) -> (i32, i32) {
    %c0_i32 = arith.constant 0 : i32
    return %arg2, %arg1 : i32, i32
  }
  func.func @transform_2(%arg0: i32, %arg1: i32, %arg2: i32) -> (i32, i32) {
    %c0_i32 = arith.constant 0 : i32
    %c0_i32_0 = arith.constant 0 : i32
    return %c0_i32, %arg1 : i32, i32
  }
  func.func @transform_3(%arg0: i32, %arg1: i32, %arg2: i32) -> (i32, i32) {
    %c0_i32 = arith.constant 0 : i32
    return %arg0, %arg1 : i32, i32
  }
  func.func @transform_4(%arg0: i32, %arg1: i32, %arg2: i32) -> (i32, i32) {
    %c0_i32 = arith.constant 0 : i32
    return %arg0, %arg1 : i32, i32
  }
}

module attributes {stable_mosaic.version = 11 : i64} {
  func.func @_layernorm_kernel(%arg0: i32, %arg1: memref<16x32xf32, #tpu.memory_space<vmem>>, %arg2: memref<1x32xf32, #tpu.memory_space<vmem>>, %arg3: memref<1x32xf32, #tpu.memory_space<vmem>>, %arg4: memref<16x32xf32, #tpu.memory_space<vmem>>) attributes {dimension_semantics = [#tpu.dimension_semantics<parallel>], iteration_bounds = array<i64: 1>, scalar_prefetch = 0 : i64, scratch_operands = 0 : i64, tpu.core_type = #tpu.core_type<tc>, window_params = [{transform_indices = @transform_0, window_bounds = array<i64: 16, 32>}, {pipeline_mode = #tpu.pipeline_mode<synchronous>, transform_indices = @transform_1, window_bounds = array<i64: 1, 32>}, {pipeline_mode = #tpu.pipeline_mode<synchronous>, transform_indices = @transform_2, window_bounds = array<i64: 1, 32>}, {transform_indices = @transform_3, window_bounds = array<i64: 16, 32>}]} {
    %c0 = arith.constant 0 : index
    %c0_0 = arith.constant 0 : index
    %0 = vector.load %arg1[%c0, %c0_0] : memref<16x32xf32, #tpu.memory_space<vmem>>, vector<16x32xf32>
    %cst = arith.constant dense<0.000000e+00> : vector<16xf32>
    %1 = vector.multi_reduction <add>, %0, %cst [1] : vector<16x32xf32> to vector<16xf32>
    %2 = vector.shape_cast %1 : vector<16xf32> to vector<16x1xf32>
    %cst_1 = arith.constant 3.200000e+01 : f32
    %3 = vector.broadcast %cst_1 : f32 to vector<16x1xf32>
    %4 = arith.divf %2, %3 : vector<16x1xf32>
    %5 = vector.broadcast %4 : vector<16x1xf32> to vector<16x32xf32>
    %6 = arith.subf %0, %5 : vector<16x32xf32>
    %7 = arith.mulf %6, %6 : vector<16x32xf32>
    %cst_2 = arith.constant dense<0.000000e+00> : vector<16xf32>
    %8 = vector.multi_reduction <add>, %7, %cst_2 [1] : vector<16x32xf32> to vector<16xf32>
    %9 = vector.shape_cast %8 : vector<16xf32> to vector<16x1xf32>
    %cst_3 = arith.constant 3.200000e+01 : f32
    %10 = vector.broadcast %cst_3 : f32 to vector<16x1xf32>
    %11 = arith.divf %9, %10 : vector<16x1xf32>
    %12 = vector.broadcast %4 : vector<16x1xf32> to vector<16x32xf32>
    %13 = arith.subf %0, %12 : vector<16x32xf32>
    %cst_4 = arith.constant 9.99999974E-6 : f32
    %14 = vector.broadcast %cst_4 : f32 to vector<16x1xf32>
    %15 = arith.addf %11, %14 : vector<16x1xf32>
    %16 = math.rsqrt %15 : vector<16x1xf32>
    %17 = vector.broadcast %16 : vector<16x1xf32> to vector<16x32xf32>
    %18 = arith.mulf %13, %17 : vector<16x32xf32>
    %c0_5 = arith.constant 0 : index
    %c0_6 = arith.constant 0 : index
    %19 = vector.load %arg2[%c0_5, %c0_6] : memref<1x32xf32, #tpu.memory_space<vmem>>, vector<1x32xf32>
    %20 = vector.broadcast %19 : vector<1x32xf32> to vector<16x32xf32>
    %21 = arith.mulf %18, %20 : vector<16x32xf32>
    %c0_7 = arith.constant 0 : index
    %c0_8 = arith.constant 0 : index
    %22 = vector.load %arg3[%c0_7, %c0_8] : memref<1x32xf32, #tpu.memory_space<vmem>>, vector<1x32xf32>
    %23 = vector.broadcast %22 : vector<1x32xf32> to vector<16x32xf32>
    %24 = arith.addf %21, %23 : vector<16x32xf32>
    %c0_9 = arith.constant 0 : index
    %c0_10 = arith.constant 0 : index
    %25 = vector.load %arg4[%c0_9, %c0_10] : memref<16x32xf32, #tpu.memory_space<vmem>>, vector<16x32xf32>
    tpu.vector_store %arg4[%c0_9, %c0_10], %24 {strides = array<i32>} : memref<16x32xf32, #tpu.memory_space<vmem>>, vector<16x32xf32>,
    return
  }
  func.func @transform_0(%arg0: i32) -> (i32, i32) {
    %c0_i32 = arith.constant 0 : i32
    %c0_i32_0 = arith.constant 0 : i32
    return %arg0, %c0_i32 : i32, i32
  }
  func.func @transform_1(%arg0: i32) -> (i32, i32) {
    %c0_i32 = arith.constant 0 : i32
    %c0_i32_0 = arith.constant 0 : i32
    %c0_i32_1 = arith.constant 0 : i32
    return %c0_i32, %c0_i32_0 : i32, i32
  }
  func.func @transform_2(%arg0: i32) -> (i32, i32) {
    %c0_i32 = arith.constant 0 : i32
    %c0_i32_0 = arith.constant 0 : i32
    %c0_i32_1 = arith.constant 0 : i32
    return %c0_i32, %c0_i32_0 : i32, i32
  }
  func.func @transform_3(%arg0: i32) -> (i32, i32) {
    %c0_i32 = arith.constant 0 : i32
    %c0_i32_0 = arith.constant 0 : i32
    return %arg0, %c0_i32 : i32, i32
  }
}

</mosaic_0001>

<llo_original>
// kernel: _lambda_.26
$region0: #{_lambda_.26}
  #allocation0 [shape = 'u32[]', space=smem, size = 0x4, offset = 0x4, fixed_abs, tag = 'smem constant byte address 0x4 - core index']
  #allocation1 [shape = 'u32[144,128]{1,0:T(1,128)}', space=vmem, size = 0x12000, scoped, tag = 'internal scratch']
  #allocation2 [shape = 'f32[16,96]{1,0:T(8,128)}', space=vmem, size = 0x2000, scoped, tag = 'scratch operand']
  %s0 = inlined_call_operand.vmem [shape: f32[16,32], index: 0, kind: input, shape index: {}]
  %s1 = inlined_call_operand.vmem [shape: bf16[32,96], index: 1, kind: input, shape index: {}]
  %s2 = inlined_call_operand.vmem [shape: f32[1,96], index: 2, kind: input, shape index: {}]
  %s3 = inlined_call_operand.vmem [shape: f32[16,96], index: 3, kind: output, shape index: {}]
  %s4 = sld [smem:[#allocation0]]
  $region30: #{_lambda_.26} parent=0
    _
  %s6 = ssub.s32 1, %s4
  %s7 = scalar_select 0, %s6, %s4
  // Predicated region
  $region2: #{_lambda_.26} parent=0 // pred_check
    _
  $region3: #{_lambda_.26} parent=0 // pred_check_branch
    %9 = sbr.rel (0) target = $region5
  $region4: #{_lambda_.26} parent=0 // pred_region
    _
  $region5: #{_lambda_.26} parent=0 // pred_fallthru
    _
  // Predicated region
  $region6: #{_lambda_.26} parent=0 // pred_check
    _
  $region7: #{_lambda_.26} parent=0 // pred_check_branch
    %11 = sbr.rel (0) target = $region9
  $region8: #{_lambda_.26} parent=0 // pred_region
    _
  $region9: #{_lambda_.26} parent=0 // pred_fallthru
    _
  // Predicated region
  $region10: #{_lambda_.26} parent=0 // pred_check
    _
  $region11: #{_lambda_.26} parent=0 // pred_check_branch
    %13 = sbr.rel (0) target = $region13
  $region12: #{_lambda_.26} parent=0 // pred_region
    _
  $region13: #{_lambda_.26} parent=0 // pred_fallthru
    _
  %p15 = scmp.eq.s32.totalorder 0, 0
  // Predicated region
  $region14: #{_lambda_.26} parent=0 // pred_check
    %p16 = pneg %p15
  $region15: #{_lambda_.26} parent=0 // pred_check_branch
    %18 = sbr.rel (%p16) target = $region17
  $region16: #{_lambda_.26} parent=0 // pred_region
    %vm19 = vcmask 785408
    %20 = vst.msk [vmem:[#allocation2] sm:$0xff] %vm19, 0.0
    %21 = vst.msk [vmem:[#allocation2 + $0x8] sm:$0xff] %vm19, 0.0
  $region17: #{_lambda_.26} parent=0 // pred_fallthru
    _
  %v22 = vld [vmem:[#allocation2] sm:$0xff]
  %v23 = vld [vmem:[#allocation2 + $0x8] sm:$0xff]
  %v24 = vld [vmem:[%s0] sm:$0xff]
  %v25 = vld [vmem:[%s0 + $0x8] sm:$0xff]
  %v26 = vpack.c.bf16 %v25, %v24
  %v27 = vld [vmem:[%s1] sm:$0xf]
  %v28 = vld [vmem:[%s1 + $0x4] sm:$0xf]
  %v29 = vld [vmem:[%s1 + $0x8] sm:$0xf]
  %v30 = vld [vmem:[%s1 + $0xc] sm:$0xf]
  %v35 = vunpack.c.l.b16 %v27
  %v36 = vunpack.c.l.b16 %v28
  %v37 = vunpack.c.l.b16 %v29
  %v38 = vunpack.c.l.b16 %v30
  %v39 = vpack.c.b16 %v36, %v35
  %v40 = vpack.c.b16 %v38, %v37
  %vm43 = vcmask 261120
  %v45 = vsel %vm43, %v26, 0
  %47 = vmatprep.subr.bf16.mxu0 0
  %48 = vmatpush1.bf16.msra.mxu0 0
  %49 = vmatprep.subr.bf16.mxu0 0
  %50 = vmatpush1.bf16.msra.mxu0 0
  %51 = vmatprep.subr.bf16.mxu0 0
  %52 = vmatpush1.bf16.msra.mxu0 0
  %53 = vmatprep.subr.bf16.mxu0 0
  %54 = vmatpush1.bf16.msra.mxu0 0
  %55 = vmatprep.subr.bf16.mxu0 0
  %56 = vmatpush1.bf16.msra.mxu0 0
  %57 = vmatprep.subr.bf16.mxu0 0
  %58 = vmatpush1.bf16.msra.mxu0 0
  %59 = vmatprep.subr.bf16.mxu0 0
  %60 = vmatpush1.bf16.msra.mxu0 %v40
  %61 = vmatprep.subr.bf16.mxu0 0
  %62 = vmatpush1.bf16.msra.mxu0 %v39
  %63 = vmatprep.subr.bf16.mxu0 0
  %64 = vmatpush2.bf16.msra.mxu0 0
  %65 = vmatprep.subr.bf16.mxu0 0
  %66 = vmatpush2.bf16.msra.mxu0 0
  %67 = vmatprep.subr.bf16.mxu0 0
  %68 = vmatpush2.bf16.msra.mxu0 0
  %69 = vmatprep.subr.bf16.mxu0 0
  %70 = vmatpush2.bf16.msra.mxu0 0
  %71 = vmatprep.subr.bf16.mxu0 0
  %72 = vmatpush2.bf16.msra.mxu0 0
  %73 = vmatprep.subr.bf16.mxu0 0
  %74 = vmatpush2.bf16.msra.mxu0 0
  %75 = vmatprep.subr.bf16.mxu0 0
  %76 = vmatpush2.bf16.msra.mxu0 0
  %77 = vmatprep.subr.bf16.mxu0 0
  %78 = vmatpush2.bf16.msra.mxu0 0
  %79 = vmatprep.mubr.bf16.mxu0 0
  %80 = vmatmul.mubr.bf16.gmra.mxu0 %v45
  %v81 = vpop.f32.mrf.mxu0
  %v82 = vadd.f32 0.0, %v81
  %v83 = vpop.f32.mrf.mxu0
  %v84 = vpop.f32.mrf.mxu0
  %v85 = vadd.f32 0.0, %v84
  %v86 = vpop.f32.mrf.mxu0
  %87 = vdwg.mxu0
  %v88 = vadd.f32 %v22, %v82
  %v89 = vadd.f32 %v23, %v85
  %vm90 = vcmask 785408
  %91 = vst.msk [vmem:[#allocation2] sm:$0xff] %vm90, %v88
  %92 = vst.msk [vmem:[#allocation2 + $0x8] sm:$0xff] %vm90, %v89
  // Predicated region
  $region18: #{_lambda_.26} parent=0 // pred_check
    %p93 = pneg %p15
  $region19: #{_lambda_.26} parent=0 // pred_check_branch
    %95 = sbr.rel (%p93) target = $region21
  $region20: #{_lambda_.26} parent=0 // pred_region
    %v96 = vld [vmem:[#allocation2] sm:$0xff]
    %v97 = vld [vmem:[#allocation2 + $0x8] sm:$0xff]
    %v98 = vld [vmem:[%s2] sm:$0x1]
    %v100 = vlaneseq
    %v101 = vshrl.u32 %v100, 7
    %v102 = vsub.s32 0, %v101
    %v103 = vrot.slane %v98, %v102
    %v105 = vadd.f32 %v96, %v103
    %v106 = vadd.f32 %v97, %v103
    %107 = vst.msk [vmem:[%s3] sm:$0xff] %vm90, %v105
    %108 = vst.msk [vmem:[%s3 + $0x8] sm:$0xff] %vm90, %v106
  $region21: #{_lambda_.26} parent=0 // pred_fallthru
    _
  // Predicated region
  $region22: #{_lambda_.26} parent=0 // pred_check
    _
  $region23: #{_lambda_.26} parent=0 // pred_check_branch
    %110 = sbr.rel (0) target = $region25
  $region24: #{_lambda_.26} parent=0 // pred_region
    _
  $region25: #{_lambda_.26} parent=0 // pred_fallthru
    _
  // Predicated region
  $region26: #{_lambda_.26} parent=0 // pred_check
    _
  $region27: #{_lambda_.26} parent=0 // pred_check_branch
    %112 = sbr.rel (0) target = $region29
  $region28: #{_lambda_.26} parent=0 // pred_region
    _
  $region29: #{_lambda_.26} parent=0 // pred_fallthru
    _

// kernel: _lambda_.25
$region0: #{_lambda_.25}
  #allocation0 [shape = 'u32[]', space=smem, size = 0x4, offset = 0x4, fixed_abs, tag = 'smem constant byte address 0x4 - core index']
  #allocation1 [shape = 'u32[144,128]{1,0:T(1,128)}', space=vmem, size = 0x12000, scoped, tag = 'internal scratch']
  %s0 = inlined_call_operand.vmem [shape: f32[16,32], index: 0, kind: input, shape index: {}]
  %s1 = inlined_call_operand.vmem [shape: f32[1,32], index: 1, kind: input, shape index: {}]
  %s2 = inlined_call_operand.vmem [shape: f32[1,32], index: 2, kind: input, shape index: {}]
  %s3 = inlined_call_operand.vmem [shape: f32[16,32], index: 3, kind: output, shape index: {}]
  %s4 = sld [smem:[#allocation0]]
  $region22: #{_lambda_.25} parent=0
    _
  %s6 = ssub.s32 1, %s4
  %s7 = scalar_select 0, %s6, %s4
  // Predicated region
  $region2: #{_lambda_.25} parent=0 // pred_check
    _
  $region3: #{_lambda_.25} parent=0 // pred_check_branch
    %9 = sbr.rel (0) target = $region5
  $region4: #{_lambda_.25} parent=0 // pred_region
    _
  $region5: #{_lambda_.25} parent=0 // pred_fallthru
    _
  // Predicated region
  $region6: #{_lambda_.25} parent=0 // pred_check
    _
  $region7: #{_lambda_.25} parent=0 // pred_check_branch
    %11 = sbr.rel (0) target = $region9
  $region8: #{_lambda_.25} parent=0 // pred_region
    _
  $region9: #{_lambda_.25} parent=0 // pred_fallthru
    _
  // Predicated region
  $region10: #{_lambda_.25} parent=0 // pred_check
    _
  $region11: #{_lambda_.25} parent=0 // pred_check_branch
    %13 = sbr.rel (0) target = $region13
  $region12: #{_lambda_.25} parent=0 // pred_region
    _
  $region13: #{_lambda_.25} parent=0 // pred_fallthru
    _
  %v14 = vld [vmem:[%s0] sm:$0xff]
  %v15 = vld [vmem:[%s0 + $0x8] sm:$0xff]
  %vm16 = vcmask 261120
  %v17 = vsel %vm16, %v14, 0.0
  %18 = vadd.xlane.f32.xlu0 %v17
  %v19 = vpop.xlane.xlu0 %18
  %v20 = vsel %vm16, %v15, 0.0
  %21 = vadd.xlane.f32.xlu0 %v20
  %v22 = vpop.xlane.xlu0 %21
  %v23 = vrcp.pop 32.0
  %v24 = vmul.f32 %v19, %v23
  %v25 = vmul.f32 %v22, %v23
  %v26 = vsub.f32 %v14, %v24
  %v27 = vsub.f32 %v15, %v25
  %v28 = vmul.f32 %v26, %v26
  %v29 = vmul.f32 %v27, %v27
  %v30 = vsel %vm16, %v28, 0.0
  %31 = vadd.xlane.f32.xlu0 %v30
  %v32 = vpop.xlane.xlu0 %31
  %v33 = vsel %vm16, %v29, 0.0
  %34 = vadd.xlane.f32.xlu0 %v33
  %v35 = vpop.xlane.xlu0 %34
  %v36 = vmul.f32 %v32, %v23
  %v37 = vmul.f32 %v35, %v23
  %v38 = vadd.f32 %v36, 1e-05
  %v39 = vadd.f32 %v37, 1e-05
  %v40 = vrsqrt.pop %v38
  %v41 = vrsqrt.pop %v39
  %v42 = vmul.f32 %v26, %v40
  %v43 = vmul.f32 %v27, %v41
  %v44 = vld [vmem:[%s1] sm:$0x1]
  %v46 = vlaneseq
  %v47 = vshrl.u32 %v46, 7
  %v48 = vsub.s32 0, %v47
  %v49 = vrot.slane %v44, %v48
  %v51 = vmul.f32 %v42, %v49
  %v52 = vmul.f32 %v43, %v49
  %v53 = vld [vmem:[%s2] sm:$0x1]
  %v55 = vlaneseq
  %v56 = vshrl.u32 %v55, 7
  %v57 = vsub.s32 0, %v56
  %v58 = vrot.slane %v53, %v57
  %v60 = vadd.f32 %v51, %v58
  %v61 = vadd.f32 %v52, %v58
  %62 = vst.msk [vmem:[%s3] sm:$0xff] %vm16, %v60
  %63 = vst.msk [vmem:[%s3 + $0x8] sm:$0xff] %vm16, %v61
  // Predicated region
  $region14: #{_lambda_.25} parent=0 // pred_check
    _
  $region15: #{_lambda_.25} parent=0 // pred_check_branch
    %65 = sbr.rel (0) target = $region17
  $region16: #{_lambda_.25} parent=0 // pred_region
    _
  $region17: #{_lambda_.25} parent=0 // pred_fallthru
    _
  // Predicated region
  $region18: #{_lambda_.25} parent=0 // pred_check
    _
  $region19: #{_lambda_.25} parent=0 // pred_check_branch
    %67 = sbr.rel (0) target = $region21
  $region20: #{_lambda_.25} parent=0 // pred_region
    _
  $region21: #{_lambda_.25} parent=0 // pred_fallthru
    _

// kernel: _lambda_.28
$region0: #{_lambda_.28}
  #allocation0 [shape = 'u32[]', space=smem, size = 0x4, offset = 0x4, fixed_abs, tag = 'smem constant byte address 0x4 - core index']
  #allocation1 [shape = 'u32[144,128]{1,0:T(1,128)}', space=vmem, size = 0x12000, scoped, tag = 'internal scratch']
  #allocation2 [shape = 'f32[16,32]{1,0:T(8,128)}', space=vmem, size = 0x2000, scoped, tag = 'scratch operand']
  %s0 = inlined_call_operand.vmem [shape: f32[16,32], index: 0, kind: input, shape index: {}]
  %s1 = inlined_call_operand.vmem [shape: bf16[32,32], index: 1, kind: input, shape index: {}]
  %s2 = inlined_call_operand.vmem [shape: f32[1,32], index: 2, kind: input, shape index: {}]
  %s3 = inlined_call_operand.vmem [shape: f32[16,32], index: 3, kind: input, shape index: {}]
  %s4 = inlined_call_operand.vmem [shape: f32[16,32], index: 4, kind: output, shape index: {}]
  %s5 = sld [smem:[#allocation0]]
  $region34: #{_lambda_.28} parent=0
    _
  %s7 = ssub.s32 1, %s5
  %s8 = scalar_select 0, %s7, %s5
  // Predicated region
  $region2: #{_lambda_.28} parent=0 // pred_check
    _
  $region3: #{_lambda_.28} parent=0 // pred_check_branch
    %10 = sbr.rel (0) target = $region5
  $region4: #{_lambda_.28} parent=0 // pred_region
    _
  $region5: #{_lambda_.28} parent=0 // pred_fallthru
    _
  // Predicated region
  $region6: #{_lambda_.28} parent=0 // pred_check
    _
  $region7: #{_lambda_.28} parent=0 // pred_check_branch
    %12 = sbr.rel (0) target = $region9
  $region8: #{_lambda_.28} parent=0 // pred_region
    _
  $region9: #{_lambda_.28} parent=0 // pred_fallthru
    _
  // Predicated region
  $region10: #{_lambda_.28} parent=0 // pred_check
    _
  $region11: #{_lambda_.28} parent=0 // pred_check_branch
    %14 = sbr.rel (0) target = $region13
  $region12: #{_lambda_.28} parent=0 // pred_region
    _
  $region13: #{_lambda_.28} parent=0 // pred_fallthru
    _
  // Predicated region
  $region14: #{_lambda_.28} parent=0 // pred_check
    _
  $region15: #{_lambda_.28} parent=0 // pred_check_branch
    %16 = sbr.rel (0) target = $region17
  $region16: #{_lambda_.28} parent=0 // pred_region
    _
  $region17: #{_lambda_.28} parent=0 // pred_fallthru
    _
  %p18 = scmp.eq.s32.totalorder 0, 0
  // Predicated region
  $region18: #{_lambda_.28} parent=0 // pred_check
    %p19 = pneg %p18
  $region19: #{_lambda_.28} parent=0 // pred_check_branch
    %21 = sbr.rel (%p19) target = $region21
  $region20: #{_lambda_.28} parent=0 // pred_region
    %vm22 = vcmask 261120
    %23 = vst.msk [vmem:[#allocation2] sm:$0xff] %vm22, 0.0
    %24 = vst.msk [vmem:[#allocation2 + $0x8] sm:$0xff] %vm22, 0.0
  $region21: #{_lambda_.28} parent=0 // pred_fallthru
    _
  %v25 = vld [vmem:[#allocation2] sm:$0xff]
  %v26 = vld [vmem:[#allocation2 + $0x8] sm:$0xff]
  %v27 = vld [vmem:[%s0] sm:$0xff]
  %v28 = vld [vmem:[%s0 + $0x8] sm:$0xff]
  %v29 = vpack.c.bf16 %v28, %v27
  %v30 = vld [vmem:[%s1] sm:$0xf]
  %v31 = vld [vmem:[%s1 + $0x4] sm:$0xf]
  %v32 = vld [vmem:[%s1 + $0x8] sm:$0xf]
  %v33 = vld [vmem:[%s1 + $0xc] sm:$0xf]
  %v38 = vunpack.c.l.b16 %v30
  %v39 = vunpack.c.l.b16 %v31
  %v40 = vunpack.c.l.b16 %v32
  %v41 = vunpack.c.l.b16 %v33
  %v42 = vpack.c.b16 %v39, %v38
  %v43 = vpack.c.b16 %v41, %v40
  %vm46 = vcmask 261120
  %v48 = vsel %vm46, %v29, 0
  %50 = vmatprep.subr.bf16.mxu0 0
  %51 = vmatpush1.bf16.msra.mxu0 0
  %52 = vmatprep.subr.bf16.mxu0 0
  %53 = vmatpush1.bf16.msra.mxu0 0
  %54 = vmatprep.subr.bf16.mxu0 0
  %55 = vmatpush1.bf16.msra.mxu0 0
  %56 = vmatprep.subr.bf16.mxu0 0
  %57 = vmatpush1.bf16.msra.mxu0 0
  %58 = vmatprep.subr.bf16.mxu0 0
  %59 = vmatpush1.bf16.msra.mxu0 0
  %60 = vmatprep.subr.bf16.mxu0 0
  %61 = vmatpush1.bf16.msra.mxu0 0
  %62 = vmatprep.subr.bf16.mxu0 0
  %63 = vmatpush1.bf16.msra.mxu0 %v43
  %64 = vmatprep.subr.bf16.mxu0 0
  %65 = vmatpush1.bf16.msra.mxu0 %v42
  %66 = vmatprep.subr.bf16.mxu0 0
  %67 = vmatpush2.bf16.msra.mxu0 0
  %68 = vmatprep.subr.bf16.mxu0 0
  %69 = vmatpush2.bf16.msra.mxu0 0
  %70 = vmatprep.subr.bf16.mxu0 0
  %71 = vmatpush2.bf16.msra.mxu0 0
  %72 = vmatprep.subr.bf16.mxu0 0
  %73 = vmatpush2.bf16.msra.mxu0 0
  %74 = vmatprep.subr.bf16.mxu0 0
  %75 = vmatpush2.bf16.msra.mxu0 0
  %76 = vmatprep.subr.bf16.mxu0 0
  %77 = vmatpush2.bf16.msra.mxu0 0
  %78 = vmatprep.subr.bf16.mxu0 0
  %79 = vmatpush2.bf16.msra.mxu0 0
  %80 = vmatprep.subr.bf16.mxu0 0
  %81 = vmatpush2.bf16.msra.mxu0 0
  %82 = vmatprep.mubr.bf16.mxu0 0
  %83 = vmatmul.mubr.bf16.gmra.mxu0 %v48
  %v84 = vpop.f32.mrf.mxu0
  %v85 = vadd.f32 0.0, %v84
  %v86 = vpop.f32.mrf.mxu0
  %v87 = vpop.f32.mrf.mxu0
  %v88 = vadd.f32 0.0, %v87
  %v89 = vpop.f32.mrf.mxu0
  %90 = vdwg.mxu0
  %v91 = vadd.f32 %v25, %v85
  %v92 = vadd.f32 %v26, %v88
  %93 = vst.msk [vmem:[#allocation2] sm:$0xff] %vm46, %v91
  %94 = vst.msk [vmem:[#allocation2 + $0x8] sm:$0xff] %vm46, %v92
  // Predicated region
  $region22: #{_lambda_.28} parent=0 // pred_check
    %p95 = pneg %p18
  $region23: #{_lambda_.28} parent=0 // pred_check_branch
    %97 = sbr.rel (%p95) target = $region25
  $region24: #{_lambda_.28} parent=0 // pred_region
    %v98 = vld [vmem:[#allocation2] sm:$0xff]
    %v99 = vld [vmem:[#allocation2 + $0x8] sm:$0xff]
    %v100 = vld [vmem:[%s2] sm:$0x1]
    %v102 = vlaneseq
    %v103 = vshrl.u32 %v102, 7
    %v104 = vsub.s32 0, %v103
    %v105 = vrot.slane %v100, %v104
    %v107 = vadd.f32 %v98, %v105
    %v108 = vadd.f32 %v99, %v105
    %v109 = vld [vmem:[%s3] sm:$0xff]
    %v110 = vld [vmem:[%s3 + $0x8] sm:$0xff]
    %v111 = vadd.f32 %v107, %v109
    %v112 = vadd.f32 %v108, %v110
    %113 = vst.msk [vmem:[%s4] sm:$0xff] %vm46, %v111
    %114 = vst.msk [vmem:[%s4 + $0x8] sm:$0xff] %vm46, %v112
  $region25: #{_lambda_.28} parent=0 // pred_fallthru
    _
  // Predicated region
  $region26: #{_lambda_.28} parent=0 // pred_check
    _
  $region27: #{_lambda_.28} parent=0 // pred_check_branch
    %116 = sbr.rel (0) target = $region29
  $region28: #{_lambda_.28} parent=0 // pred_region
    _
  $region29: #{_lambda_.28} parent=0 // pred_fallthru
    _
  // Predicated region
  $region30: #{_lambda_.28} parent=0 // pred_check
    _
  $region31: #{_lambda_.28} parent=0 // pred_check_branch
    %118 = sbr.rel (0) target = $region33
  $region32: #{_lambda_.28} parent=0 // pred_region
    _
  $region33: #{_lambda_.28} parent=0 // pred_fallthru
    _

// kernel: _lambda_.27
$region0: #{_lambda_.27}
  #allocation0 [shape = 'u32[]', space=smem, size = 0x4, offset = 0x4, fixed_abs, tag = 'smem constant byte address 0x4 - core index']
  #allocation1 [shape = 'u32[144,128]{1,0:T(1,128)}', space=vmem, size = 0x12000, scoped, tag = 'internal scratch']
  %s0 = inlined_call_operand.vmem [shape: f32[2,8,32], index: 0, kind: input, shape index: {}]
  %s1 = inlined_call_operand.vmem [shape: f32[2,8,32], index: 1, kind: input, shape index: {}]
  %s2 = inlined_call_operand.vmem [shape: f32[2,8,32], index: 2, kind: input, shape index: {}]
  %s3 = inlined_call_operand.vmem [shape: f32[2,8,32], index: 3, kind: output, shape index: {}]
  %s4 = sld [smem:[#allocation0]]
  $region45: #{_lambda_.27} parent=0
    _
  %s6 = ssub.s32 1, %s4
  %s7 = scalar_select 0, %s6, %s4
  loop: start=0, step=1, limit=4
  $region2: #{_lambda_.27} parent=0 // loop_pre_header
    _
  $region3: #{_lambda_.27} parent=0 // loop_header
    %s9 = sphi 0, %s13
    %p10 = scmp.ge.s32.totalorder %s9, 4
    %s16 = sphi 0, %s28
    %s17 = sphi 0, %s24
    %s18 = sphi 0, %s16
    %s19 = sphi 0, %s17
    %s20 = sphi 0, %s18
    %s21 = sphi 0, %s19
    %s33 = sphi 0, %s35
    %s36 = sphi 0, %s33
    %s37 = sphi 0, %s36
    %s53 = sphi 0, %s37
    %s61 = sphi 0, %s63
    %s64 = sphi 0, %s61
    %s65 = sphi 0, %s64
    %s81 = sphi 0, %s65
    %s89 = sphi 0, %s91
    %s92 = sphi 0, %s89
    %s93 = sphi 0, %s92
    %s109 = sphi 0, %s93
    %s117 = sphi 0, %s119
    %s120 = sphi 0, %s117
    %s121 = sphi 0, %s120
    %s137 = sphi 0, %s121
  $region4: #{_lambda_.27} parent=0 // loop_header_branch
    %12 = sbr.rel (%p10) target = $region8
  $region5: #{_lambda_.27} parent=0 // loop_body
    %s14 = ssub.s32 %s9, 1
    %s15 = ssub.s32 %s9, 2
    %s22 = sadd.s32 1, %s17
    %p23 = scmp.ge.s32.totalorder %s22, 1
    %s24 = scalar_select %p23, 0, %s22
    %s25 = sadd.s32 1, %s16
    %s26 = scalar_select %p23, %s25, %s16
    %p27 = scmp.ge.s32.totalorder %s26, 2
    %s28 = scalar_select %p27, 0, %s26
    %s29 = ssub.s32 %s16, %s28
    %s30 = ssub.s32 %s17, %s24
    %s31 = sor.u32 %s29, %s30
    %p32 = scmp.eq.s32.totalorder %s31, 0
    %s34 = sadd.s32 %s33, 1
    %s35 = scalar_select %p32, %s33, %s34
    %p38 = pneg %p32
    %p39 = scmp.eq.s32.totalorder %s9, 1
    %p40 = por %p38, %p39
    %p41 = scmp.ne.s32.totalorder %s33, %s36
    %p42 = scmp.eq.s32.totalorder %s9, 0
    %p43 = por %p41, %p42
    %p44 = scmp.ne.s32.totalorder %s33, %s36
    %p45 = scmp.eq.s32.totalorder %s14, 1
    %p46 = por %p44, %p45
    %p47 = scmp.ne.s32.totalorder %s36, %s37
    %p48 = scmp.eq.s32.totalorder %s14, 0
    %p49 = por %p47, %p48
    %p50 = scmp.ne.s32.totalorder %s36, %s37
    %p51 = scmp.eq.s32.totalorder %s15, 1
    %p52 = por %p50, %p51
    %p54 = scmp.ne.s32.totalorder %s37, %s53
    %p55 = scmp.eq.s32.totalorder %s15, 0
    %p56 = por %p54, %p55
    %s57 = ssub.s32 %s16, %s28
    %s58 = ssub.s32 %s17, %s24
    %s59 = sor.u32 %s57, %s58
    %p60 = scmp.eq.s32.totalorder %s59, 0
    %s62 = sadd.s32 %s61, 1
    %s63 = scalar_select %p60, %s61, %s62
    %p66 = pneg %p60
    %p67 = scmp.eq.s32.totalorder %s9, 1
    %p68 = por %p66, %p67
    %p69 = scmp.ne.s32.totalorder %s61, %s64
    %p70 = scmp.eq.s32.totalorder %s9, 0
    %p71 = por %p69, %p70
    %p72 = scmp.ne.s32.totalorder %s61, %s64
    %p73 = scmp.eq.s32.totalorder %s14, 1
    %p74 = por %p72, %p73
    %p75 = scmp.ne.s32.totalorder %s64, %s65
    %p76 = scmp.eq.s32.totalorder %s14, 0
    %p77 = por %p75, %p76
    %p78 = scmp.ne.s32.totalorder %s64, %s65
    %p79 = scmp.eq.s32.totalorder %s15, 1
    %p80 = por %p78, %p79
    %p82 = scmp.ne.s32.totalorder %s65, %s81
    %p83 = scmp.eq.s32.totalorder %s15, 0
    %p84 = por %p82, %p83
    %s85 = ssub.s32 %s16, %s28
    %s86 = ssub.s32 %s17, %s24
    %s87 = sor.u32 %s85, %s86
    %p88 = scmp.eq.s32.totalorder %s87, 0
    %s90 = sadd.s32 %s89, 1
    %s91 = scalar_select %p88, %s89, %s90
    %p94 = pneg %p88
    %p95 = scmp.eq.s32.totalorder %s9, 1
    %p96 = por %p94, %p95
    %p97 = scmp.ne.s32.totalorder %s89, %s92
    %p98 = scmp.eq.s32.totalorder %s9, 0
    %p99 = por %p97, %p98
    %p100 = scmp.ne.s32.totalorder %s89, %s92
    %p101 = scmp.eq.s32.totalorder %s14, 1
    %p102 = por %p100, %p101
    %p103 = scmp.ne.s32.totalorder %s92, %s93
    %p104 = scmp.eq.s32.totalorder %s14, 0
    %p105 = por %p103, %p104
    %p106 = scmp.ne.s32.totalorder %s92, %s93
    %p107 = scmp.eq.s32.totalorder %s15, 1
    %p108 = por %p106, %p107
    %p110 = scmp.ne.s32.totalorder %s93, %s109
    %p111 = scmp.eq.s32.totalorder %s15, 0
    %p112 = por %p110, %p111
    %s113 = ssub.s32 %s16, %s28
    %s114 = ssub.s32 %s17, %s24
    %s115 = sor.u32 %s113, %s114
    %p116 = scmp.eq.s32.totalorder %s115, 0
    %s118 = sadd.s32 %s117, 1
    %s119 = scalar_select %p116, %s117, %s118
    %p122 = pneg %p116
    %p123 = scmp.eq.s32.totalorder %s9, 1
    %p124 = por %p122, %p123
    %p125 = scmp.ne.s32.totalorder %s117, %s120
    %p126 = scmp.eq.s32.totalorder %s9, 0
    %p127 = por %p125, %p126
    %p128 = scmp.ne.s32.totalorder %s117, %s120
    %p129 = scmp.eq.s32.totalorder %s14, 1
    %p130 = por %p128, %p129
    %p131 = scmp.ne.s32.totalorder %s120, %s121
    %p132 = scmp.eq.s32.totalorder %s14, 0
    %p133 = por %p131, %p132
    %p134 = scmp.ne.s32.totalorder %s120, %s121
    %p135 = scmp.eq.s32.totalorder %s15, 1
    %p136 = por %p134, %p135
    %p138 = scmp.ne.s32.totalorder %s121, %s137
    %p139 = scmp.eq.s32.totalorder %s15, 0
    %p140 = por %p138, %p139
    %p141 = scmp.le.s32.totalorder 1, %s9
    %p142 = scmp.lt.s32.totalorder %s9, 3
    %p143 = pnand %p141, %p142
    %p144 = pneg %p143
    // Predicated region
    $region9: #{_lambda_.27} parent=5 // pred_check
      _
    $region10: #{_lambda_.27} parent=5 // pred_check_branch
      %146 = sbr.rel (%p143) target = $region12
    $region11: #{_lambda_.27} parent=5 // pred_region
      %s147 = ssub.s32 %s9, 1
    $region12: #{_lambda_.27} parent=5 // pred_fallthru
      _
    %p148 = scmp.lt.s32.totalorder %s9, 2
    // Predicated region
    $region13: #{_lambda_.27} parent=5 // pred_check
      %p149 = pneg %p148
    $region14: #{_lambda_.27} parent=5 // pred_check_branch
      %151 = sbr.rel (%p149) target = $region16
    $region15: #{_lambda_.27} parent=5 // pred_region
      // Predicated region
      $region17: #{_lambda_.27} parent=15 // pred_check
        %p152 = pneg %p43
      $region18: #{_lambda_.27} parent=15 // pred_check_branch
        %154 = sbr.rel (%p152) target = $region20
      $region19: #{_lambda_.27} parent=15 // pred_region
        %p155 = scmp.lt.s32.totalorder %s16, 1
        %s156 = scalar_select %p155, %s16, 1
        %p157 = scmp.lt.s32.totalorder %s17, 0
        %s158 = scalar_select %p157, %s17, 0
        %s159 = sadd.s32 %s158, %s156
        %s160 = smul.addr %s159, 8
        %s161 = scalar_lea.vmem %s0, %s160
      $region20: #{_lambda_.27} parent=15 // pred_fallthru
        _
      // Predicated region
      $region21: #{_lambda_.27} parent=15 // pred_check
        %p162 = pneg %p71
      $region22: #{_lambda_.27} parent=15 // pred_check_branch
        %164 = sbr.rel (%p162) target = $region24
      $region23: #{_lambda_.27} parent=15 // pred_region
        %p165 = scmp.lt.s32.totalorder %s16, 1
        %s166 = scalar_select %p165, %s16, 1
        %p167 = scmp.lt.s32.totalorder %s17, 0
        %s168 = scalar_select %p167, %s17, 0
        %s169 = sadd.s32 %s168, %s166
        %s170 = smul.addr %s169, 8
        %s171 = scalar_lea.vmem %s1, %s170
      $region24: #{_lambda_.27} parent=15 // pred_fallthru
        _
      // Predicated region
      $region25: #{_lambda_.27} parent=15 // pred_check
        %p172 = pneg %p99
      $region26: #{_lambda_.27} parent=15 // pred_check_branch
        %174 = sbr.rel (%p172) target = $region28
      $region27: #{_lambda_.27} parent=15 // pred_region
        %p175 = scmp.lt.s32.totalorder %s16, 1
        %s176 = scalar_select %p175, %s16, 1
        %p177 = scmp.lt.s32.totalorder %s17, 0
        %s178 = scalar_select %p177, %s17, 0
        %s179 = sadd.s32 %s178, %s176
        %s180 = smul.addr %s179, 8
        %s181 = scalar_lea.vmem %s2, %s180
      $region28: #{_lambda_.27} parent=15 // pred_fallthru
        _
    $region16: #{_lambda_.27} parent=5 // pred_fallthru
      _
    %p182 = scmp.le.s32.totalorder 1, %s9
    %p183 = scmp.lt.s32.totalorder %s9, 3
    %p184 = pnand %p182, %p183
    %p185 = pneg %p184
    // Predicated region
    $region29: #{_lambda_.27} parent=5 // pred_check
      _
    $region30: #{_lambda_.27} parent=5 // pred_check_branch
      %187 = sbr.rel (%p184) target = $region32
    $region31: #{_lambda_.27} parent=5 // pred_region
      %s188 = ssub.s32 %s9, 1
      %p189 = scmp.lt.s32.totalorder %s18, 1
      %s190 = scalar_select %p189, %s18, 1
      %p191 = scmp.lt.s32.totalorder %s19, 0
      %s192 = scalar_select %p191, %s19, 0
      %s193 = sadd.s32 %s192, %s190
      %s194 = smul.addr %s193, 8
      %s195 = scalar_lea.vmem %s0, %s194
      %p196 = pneg %p49
      %p197 = pneg %p46
      %p198 = scmp.lt.s32.totalorder %s18, 1
      %s199 = scalar_select %p198, %s18, 1
      %p200 = scmp.lt.s32.totalorder %s19, 0
      %s201 = scalar_select %p200, %s19, 0
      %s202 = sadd.s32 %s201, %s199
      %s203 = smul.addr %s202, 8
      %s204 = scalar_lea.vmem %s1, %s203
      %p205 = pneg %p77
      %p206 = pneg %p74
      %p207 = scmp.lt.s32.totalorder %s18, 1
      %s208 = scalar_select %p207, %s18, 1
      %p209 = scmp.lt.s32.totalorder %s19, 0
      %s210 = scalar_select %p209, %s19, 0
      %s211 = sadd.s32 %s210, %s208
      %s212 = smul.addr %s211, 8
      %s213 = scalar_lea.vmem %s2, %s212
      %p214 = pneg %p105
      %p215 = pneg %p102
      %p216 = pneg %p133
      %p217 = pneg %p130
      %p218 = scmp.lt.s32.totalorder %s18, 1
      %s219 = scalar_select %p218, %s18, 1
      %p220 = scmp.lt.s32.totalorder %s19, 0
      %s221 = scalar_select %p220, %s19, 0
      %s222 = sadd.s32 %s221, %s219
      %s223 = smul.addr %s222, 8
      %s224 = scalar_lea.vmem %s3, %s223
      %p225 = scmp.lt.s32.totalorder %s18, 1
      %s226 = scalar_select %p225, %s18, 1
      %p227 = scmp.lt.s32.totalorder %s19, 0
      %s228 = scalar_select %p227, %s19, 0
      %s229 = sadd.s32 %s228, %s226
      %s230 = smul.addr %s229, 8
      %s231 = scalar_lea.vmem %s0, %s230
      %p232 = scmp.lt.s32.totalorder %s18, 1
      %s233 = scalar_select %p232, %s18, 1
      %p234 = scmp.lt.s32.totalorder %s19, 0
      %s235 = scalar_select %p234, %s19, 0
      %s236 = sadd.s32 %s235, %s233
      %s237 = smul.addr %s236, 8
      %s238 = scalar_lea.vmem %s1, %s237
      %p239 = scmp.lt.s32.totalorder %s18, 1
      %s240 = scalar_select %p239, %s18, 1
      %p241 = scmp.lt.s32.totalorder %s19, 0
      %s242 = scalar_select %p241, %s19, 0
      %s243 = sadd.s32 %s242, %s240
      %s244 = smul.addr %s243, 8
      %s245 = scalar_lea.vmem %s2, %s244
      %p246 = scmp.lt.s32.totalorder %s18, 1
      %s247 = scalar_select %p246, %s18, 1
      %p248 = scmp.lt.s32.totalorder %s19, 0
      %s249 = scalar_select %p248, %s19, 0
      %s250 = sadd.s32 %s249, %s247
      %s251 = smul.addr %s250, 8
      %s252 = scalar_lea.vmem %s3, %s251
      %v254 = vld [vmem:[%s231] sm:$0xff]
      %v255 = vmul.f32 %v254, 0.35355338
      %v256 = vpack.c.bf16 %v255, %v255
      %v257 = vld [vmem:[%s238] sm:$0xff]
      %v258 = vpack.c.bf16 %v257, %v257
      %v259 = vld [vmem:[%s245] sm:$0xff]
      %v260 = vpack.c.bf16 %v259, %v259
      %v261 = vlaneseq
      %v262 = vshrl.u32 %v261, 7
      %v263 = vlaneseq
      %v264 = vand.u32 %v263, 127
      %vm265 = vcmp.le.s32.totalorder %v264, %v262
      %vm266 = vcmask 64512
      %v268 = vsel %vm266, %v256, 0
      %v271 = vsel %vm266, %v258, 0
      %273 = vmatprep.subr.bf16.mxu0 0
      %274 = vmatpush1.bf16.xpose.msra.mxu0 0
      %275 = vmatprep.subr.bf16.mxu0 0
      %276 = vmatpush1.bf16.xpose.msra.mxu0 0
      %277 = vmatprep.subr.bf16.mxu0 0
      %278 = vmatpush1.bf16.xpose.msra.mxu0 0
      %279 = vmatprep.subr.bf16.mxu0 0
      %280 = vmatpush1.bf16.xpose.msra.mxu0 0
      %281 = vmatprep.subr.bf16.mxu0 0
      %282 = vmatpush1.bf16.xpose.msra.mxu0 0
      %283 = vmatprep.subr.bf16.mxu0 0
      %284 = vmatpush1.bf16.xpose.msra.mxu0 0
      %285 = vmatprep.subr.bf16.mxu0 0
      %286 = vmatpush1.bf16.xpose.msra.mxu0 0
      %287 = vmatprep.subr.bf16.mxu0 0
      %288 = vmatpush1.bf16.xpose.msra.mxu0 %v271
      %289 = vmatprep.subr.bf16.mxu0 0
      %290 = vmatpush2.bf16.xpose.msra.mxu0 0
      %291 = vmatprep.subr.bf16.mxu0 0
      %292 = vmatpush2.bf16.xpose.msra.mxu0 0
      %293 = vmatprep.subr.bf16.mxu0 0
      %294 = vmatpush2.bf16.xpose.msra.mxu0 0
      %295 = vmatprep.subr.bf16.mxu0 0
      %296 = vmatpush2.bf16.xpose.msra.mxu0 0
      %297 = vmatprep.subr.bf16.mxu0 0
      %298 = vmatpush2.bf16.xpose.msra.mxu0 0
      %299 = vmatprep.subr.bf16.mxu0 0
      %300 = vmatpush2.bf16.xpose.msra.mxu0 0
      %301 = vmatprep.subr.bf16.mxu0 0
      %302 = vmatpush2.bf16.xpose.msra.mxu0 0
      %303 = vmatprep.subr.bf16.mxu0 0
      %304 = vmatpush2.bf16.xpose.msra.mxu0 0
      %305 = vmatprep.mubr.bf16.mxu0 0
      %306 = vmatmul.mubr.bf16.gmra.mxu0 %v268
      %v307 = vpop.f32.mrf.mxu0
      %v308 = vadd.f32 0.0, %v307
      %v309 = vpop.f32.mrf.mxu0
      %v310 = vpop.f32.mrf.mxu0
      %v311 = vpop.f32.mrf.mxu0
      %312 = vdwg.mxu0
      %v313 = vsel %vm265, %v308, -3.4028235e+38
      %v314 = vsel %vm266, %v313, -inf
      %315 = vmax.xlane.f32.xlu0 %v314
      %v316 = vpop.xlane.xlu0 %315
      %v317 = vsub.f32 %v313, %v316
      %v318 = vmul.f32 %v317, 1.442695
      %v319 = vpow.pop %v318
      %v320 = vsel %vm266, %v319, 0.0
      %321 = vadd.xlane.f32.xlu0 %v320
      %v322 = vpop.xlane.xlu0 %321
      %v323 = vrcp.pop %v322
      %v324 = vmul.f32 %v319, %v323
      %v325 = vpack.c.bf16 %v324, %v324
      %v327 = vsel %vm266, %v325, 0
      %vm329 = vcmask 1043456
      %v331 = vsel %vm329, %v260, 0
      %333 = vmatprep.subr.bf16.mxu0 0
      %334 = vmatpush1.bf16.msra.mxu0 0
      %335 = vmatprep.subr.bf16.mxu0 0
      %336 = vmatpush1.bf16.msra.mxu0 0
      %337 = vmatprep.subr.bf16.mxu0 0
      %338 = vmatpush1.bf16.msra.mxu0 0
      %339 = vmatprep.subr.bf16.mxu0 0
      %340 = vmatpush1.bf16.msra.mxu0 0
      %341 = vmatprep.subr.bf16.mxu0 0
      %342 = vmatpush1.bf16.msra.mxu0 0
      %343 = vmatprep.subr.bf16.mxu0 0
      %344 = vmatpush1.bf16.msra.mxu0 0
      %345 = vmatprep.subr.bf16.mxu0 0
      %346 = vmatpush1.bf16.msra.mxu0 0
      %347 = vmatprep.subr.bf16.mxu0 0
      %348 = vmatpush1.bf16.msra.mxu0 %v331
      %349 = vmatprep.subr.bf16.mxu0 0
      %350 = vmatpush2.bf16.msra.mxu0 0
      %351 = vmatprep.subr.bf16.mxu0 0
      %352 = vmatpush2.bf16.msra.mxu0 0
      %353 = vmatprep.subr.bf16.mxu0 0
      %354 = vmatpush2.bf16.msra.mxu0 0
      %355 = vmatprep.subr.bf16.mxu0 0
      %356 = vmatpush2.bf16.msra.mxu0 0
      %357 = vmatprep.subr.bf16.mxu0 0
      %358 = vmatpush2.bf16.msra.mxu0 0
      %359 = vmatprep.subr.bf16.mxu0 0
      %360 = vmatpush2.bf16.msra.mxu0 0
      %361 = vmatprep.subr.bf16.mxu0 0
      %362 = vmatpush2.bf16.msra.mxu0 0
      %363 = vmatprep.subr.bf16.mxu0 0
      %364 = vmatpush2.bf16.msra.mxu0 0
      %365 = vmatprep.mubr.bf16.mxu0 0
      %366 = vmatmul.mubr.bf16.gmra.mxu0 %v327
      %v367 = vpop.f32.mrf.mxu0
      %v368 = vadd.f32 0.0, %v367
      %v369 = vpop.f32.mrf.mxu0
      %v370 = vpop.f32.mrf.mxu0
      %v371 = vpop.f32.mrf.mxu0
      %372 = vdwg.mxu0
      %374 = vrot.lane.b32.xlu0 %v256, 120
      %v375 = vpop.permute.xlu0 %374
      %377 = vrot.lane.b32.xlu0 %v258, 120
      %v378 = vpop.permute.xlu0 %377
      %v380 = vsel %vm266, %v375, 0
      %v383 = vsel %vm266, %v378, 0
      %385 = vmatprep.subr.bf16.mxu0 0
      %386 = vmatpush1.bf16.xpose.msra.mxu0 0
      %387 = vmatprep.subr.bf16.mxu0 0
      %388 = vmatpush1.bf16.xpose.msra.mxu0 0
      %389 = vmatprep.subr.bf16.mxu0 0
      %390 = vmatpush1.bf16.xpose.msra.mxu0 0
      %391 = vmatprep.subr.bf16.mxu0 0
      %392 = vmatpush1.bf16.xpose.msra.mxu0 0
      %393 = vmatprep.subr.bf16.mxu0 0
      %394 = vmatpush1.bf16.xpose.msra.mxu0 0
      %395 = vmatprep.subr.bf16.mxu0 0
      %396 = vmatpush1.bf16.xpose.msra.mxu0 0
      %397 = vmatprep.subr.bf16.mxu0 0
      %398 = vmatpush1.bf16.xpose.msra.mxu0 0
      %399 = vmatprep.subr.bf16.mxu0 0
      %400 = vmatpush1.bf16.xpose.msra.mxu0 %v383
      %401 = vmatprep.subr.bf16.mxu0 0
      %402 = vmatpush2.bf16.xpose.msra.mxu0 0
      %403 = vmatprep.subr.bf16.mxu0 0
      %404 = vmatpush2.bf16.xpose.msra.mxu0 0
      %405 = vmatprep.subr.bf16.mxu0 0
      %406 = vmatpush2.bf16.xpose.msra.mxu0 0
      %407 = vmatprep.subr.bf16.mxu0 0
      %408 = vmatpush2.bf16.xpose.msra.mxu0 0
      %409 = vmatprep.subr.bf16.mxu0 0
      %410 = vmatpush2.bf16.xpose.msra.mxu0 0
      %411 = vmatprep.subr.bf16.mxu0 0
      %412 = vmatpush2.bf16.xpose.msra.mxu0 0
      %413 = vmatprep.subr.bf16.mxu0 0
      %414 = vmatpush2.bf16.xpose.msra.mxu0 0
      %415 = vmatprep.subr.bf16.mxu0 0
      %416 = vmatpush2.bf16.xpose.msra.mxu0 0
      %417 = vmatprep.mubr.bf16.mxu0 0
      %418 = vmatmul.mubr.bf16.gmra.mxu0 %v380
      %v419 = vpop.f32.mrf.mxu0
      %v420 = vadd.f32 0.0, %v419
      %v421 = vpop.f32.mrf.mxu0
      %v422 = vpop.f32.mrf.mxu0
      %v423 = vpop.f32.mrf.mxu0
      %424 = vdwg.mxu0
      %v425 = vsel %vm265, %v420, -3.4028235e+38
      %v426 = vsel %vm266, %v425, -inf
      %427 = vmax.xlane.f32.xlu0 %v426
      %v428 = vpop.xlane.xlu0 %427
      %v429 = vsub.f32 %v425, %v428
      %v430 = vmul.f32 %v429, 1.442695
      %v431 = vpow.pop %v430
      %v432 = vsel %vm266, %v431, 0.0
      %433 = vadd.xlane.f32.xlu0 %v432
      %v434 = vpop.xlane.xlu0 %433
      %v435 = vrcp.pop %v434
      %v436 = vmul.f32 %v431, %v435
      %v437 = vpack.c.bf16 %v436, %v436
      %439 = vrot.lane.b32.xlu0 %v260, 120
      %v440 = vpop.permute.xlu0 %439
      %v442 = vsel %vm266, %v437, 0
      %v445 = vsel %vm329, %v440, 0
      %447 = vmatprep.subr.bf16.mxu0 0
      %448 = vmatpush1.bf16.msra.mxu0 0
      %449 = vmatprep.subr.bf16.mxu0 0
      %450 = vmatpush1.bf16.msra.mxu0 0
      %451 = vmatprep.subr.bf16.mxu0 0
      %452 = vmatpush1.bf16.msra.mxu0 0
      %453 = vmatprep.subr.bf16.mxu0 0
      %454 = vmatpush1.bf16.msra.mxu0 0
      %455 = vmatprep.subr.bf16.mxu0 0
      %456 = vmatpush1.bf16.msra.mxu0 0
      %457 = vmatprep.subr.bf16.mxu0 0
      %458 = vmatpush1.bf16.msra.mxu0 0
      %459 = vmatprep.subr.bf16.mxu0 0
      %460 = vmatpush1.bf16.msra.mxu0 0
      %461 = vmatprep.subr.bf16.mxu0 0
      %462 = vmatpush1.bf16.msra.mxu0 %v445
      %463 = vmatprep.subr.bf16.mxu0 0
      %464 = vmatpush2.bf16.msra.mxu0 0
      %465 = vmatprep.subr.bf16.mxu0 0
      %466 = vmatpush2.bf16.msra.mxu0 0
      %467 = vmatprep.subr.bf16.mxu0 0
      %468 = vmatpush2.bf16.msra.mxu0 0
      %469 = vmatprep.subr.bf16.mxu0 0
      %470 = vmatpush2.bf16.msra.mxu0 0
      %471 = vmatprep.subr.bf16.mxu0 0
      %472 = vmatpush2.bf16.msra.mxu0 0
      %473 = vmatprep.subr.bf16.mxu0 0
      %474 = vmatpush2.bf16.msra.mxu0 0
      %475 = vmatprep.subr.bf16.mxu0 0
      %476 = vmatpush2.bf16.msra.mxu0 0
      %477 = vmatprep.subr.bf16.mxu0 0
      %478 = vmatpush2.bf16.msra.mxu0 0
      %479 = vmatprep.mubr.bf16.mxu0 0
      %480 = vmatmul.mubr.bf16.gmra.mxu0 %v442
      %v481 = vpop.f32.mrf.mxu0
      %v482 = vadd.f32 0.0, %v481
      %v483 = vpop.f32.mrf.mxu0
      %v484 = vpop.f32.mrf.mxu0
      %v485 = vpop.f32.mrf.mxu0
      %486 = vdwg.mxu0
      %487 = vrot.lane.b32.xlu0 %v256, 112
      %v488 = vpop.permute.xlu0 %487
      %489 = vrot.lane.b32.xlu0 %v258, 112
      %v490 = vpop.permute.xlu0 %489
      %v492 = vsel %vm266, %v488, 0
      %v495 = vsel %vm266, %v490, 0
      %497 = vmatprep.subr.bf16.mxu0 0
      %498 = vmatpush1.bf16.xpose.msra.mxu0 0
      %499 = vmatprep.subr.bf16.mxu0 0
      %500 = vmatpush1.bf16.xpose.msra.mxu0 0
      %501 = vmatprep.subr.bf16.mxu0 0
      %502 = vmatpush1.bf16.xpose.msra.mxu0 0
      %503 = vmatprep.subr.bf16.mxu0 0
      %504 = vmatpush1.bf16.xpose.msra.mxu0 0
      %505 = vmatprep.subr.bf16.mxu0 0
      %506 = vmatpush1.bf16.xpose.msra.mxu0 0
      %507 = vmatprep.subr.bf16.mxu0 0
      %508 = vmatpush1.bf16.xpose.msra.mxu0 0
      %509 = vmatprep.subr.bf16.mxu0 0
      %510 = vmatpush1.bf16.xpose.msra.mxu0 0
      %511 = vmatprep.subr.bf16.mxu0 0
      %512 = vmatpush1.bf16.xpose.msra.mxu0 %v495
      %513 = vmatprep.subr.bf16.mxu0 0
      %514 = vmatpush2.bf16.xpose.msra.mxu0 0
      %515 = vmatprep.subr.bf16.mxu0 0
      %516 = vmatpush2.bf16.xpose.msra.mxu0 0
      %517 = vmatprep.subr.bf16.mxu0 0
      %518 = vmatpush2.bf16.xpose.msra.mxu0 0
      %519 = vmatprep.subr.bf16.mxu0 0
      %520 = vmatpush2.bf16.xpose.msra.mxu0 0
      %521 = vmatprep.subr.bf16.mxu0 0
      %522 = vmatpush2.bf16.xpose.msra.mxu0 0
      %523 = vmatprep.subr.bf16.mxu0 0
      %524 = vmatpush2.bf16.xpose.msra.mxu0 0
      %525 = vmatprep.subr.bf16.mxu0 0
      %526 = vmatpush2.bf16.xpose.msra.mxu0 0
      %527 = vmatprep.subr.bf16.mxu0 0
      %528 = vmatpush2.bf16.xpose.msra.mxu0 0
      %529 = vmatprep.mubr.bf16.mxu0 0
      %530 = vmatmul.mubr.bf16.gmra.mxu0 %v492
      %v531 = vpop.f32.mrf.mxu0
      %v532 = vadd.f32 0.0, %v531
      %v533 = vpop.f32.mrf.mxu0
      %v534 = vpop.f32.mrf.mxu0
      %v535 = vpop.f32.mrf.mxu0
      %536 = vdwg.mxu0
      %v537 = vsel %vm265, %v532, -3.4028235e+38
      %v538 = vsel %vm266, %v537, -inf
      %539 = vmax.xlane.f32.xlu0 %v538
      %v540 = vpop.xlane.xlu0 %539
      %v541 = vsub.f32 %v537, %v540
      %v542 = vmul.f32 %v541, 1.442695
      %v543 = vpow.pop %v542
      %v544 = vsel %vm266, %v543, 0.0
      %545 = vadd.xlane.f32.xlu0 %v544
      %v546 = vpop.xlane.xlu0 %545
      %v547 = vrcp.pop %v546
      %v548 = vmul.f32 %v543, %v547
      %v549 = vpack.c.bf16 %v548, %v548
      %550 = vrot.lane.b32.xlu0 %v260, 112
      %v551 = vpop.permute.xlu0 %550
      %v553 = vsel %vm266, %v549, 0
      %v556 = vsel %vm329, %v551, 0
      %558 = vmatprep.subr.bf16.mxu0 0
      %559 = vmatpush1.bf16.msra.mxu0 0
      %560 = vmatprep.subr.bf16.mxu0 0
      %561 = vmatpush1.bf16.msra.mxu0 0
      %562 = vmatprep.subr.bf16.mxu0 0
      %563 = vmatpush1.bf16.msra.mxu0 0
      %564 = vmatprep.subr.bf16.mxu0 0
      %565 = vmatpush1.bf16.msra.mxu0 0
      %566 = vmatprep.subr.bf16.mxu0 0
      %567 = vmatpush1.bf16.msra.mxu0 0
      %568 = vmatprep.subr.bf16.mxu0 0
      %569 = vmatpush1.bf16.msra.mxu0 0
      %570 = vmatprep.subr.bf16.mxu0 0
      %571 = vmatpush1.bf16.msra.mxu0 0
      %572 = vmatprep.subr.bf16.mxu0 0
      %573 = vmatpush1.bf16.msra.mxu0 %v556
      %574 = vmatprep.subr.bf16.mxu0 0
      %575 = vmatpush2.bf16.msra.mxu0 0
      %576 = vmatprep.subr.bf16.mxu0 0
      %577 = vmatpush2.bf16.msra.mxu0 0
      %578 = vmatprep.subr.bf16.mxu0 0
      %579 = vmatpush2.bf16.msra.mxu0 0
      %580 = vmatprep.subr.bf16.mxu0 0
      %581 = vmatpush2.bf16.msra.mxu0 0
      %582 = vmatprep.subr.bf16.mxu0 0
      %583 = vmatpush2.bf16.msra.mxu0 0
      %584 = vmatprep.subr.bf16.mxu0 0
      %585 = vmatpush2.bf16.msra.mxu0 0
      %586 = vmatprep.subr.bf16.mxu0 0
      %587 = vmatpush2.bf16.msra.mxu0 0
      %588 = vmatprep.subr.bf16.mxu0 0
      %589 = vmatpush2.bf16.msra.mxu0 0
      %590 = vmatprep.mubr.bf16.mxu0 0
      %591 = vmatmul.mubr.bf16.gmra.mxu0 %v553
      %v592 = vpop.f32.mrf.mxu0
      %v593 = vadd.f32 0.0, %v592
      %v594 = vpop.f32.mrf.mxu0
      %v595 = vpop.f32.mrf.mxu0
      %v596 = vpop.f32.mrf.mxu0
      %597 = vdwg.mxu0
      %598 = vrot.lane.b32.xlu0 %v256, 104
      %v599 = vpop.permute.xlu0 %598
      %600 = vrot.lane.b32.xlu0 %v258, 104
      %v601 = vpop.permute.xlu0 %600
      %v603 = vsel %vm266, %v599, 0
      %v606 = vsel %vm266, %v601, 0
      %608 = vmatprep.subr.bf16.mxu0 0
      %609 = vmatpush1.bf16.xpose.msra.mxu0 0
      %610 = vmatprep.subr.bf16.mxu0 0
      %611 = vmatpush1.bf16.xpose.msra.mxu0 0
      %612 = vmatprep.subr.bf16.mxu0 0
      %613 = vmatpush1.bf16.xpose.msra.mxu0 0
      %614 = vmatprep.subr.bf16.mxu0 0
      %615 = vmatpush1.bf16.xpose.msra.mxu0 0
      %616 = vmatprep.subr.bf16.mxu0 0
      %617 = vmatpush1.bf16.xpose.msra.mxu0 0
      %618 = vmatprep.subr.bf16.mxu0 0
      %619 = vmatpush1.bf16.xpose.msra.mxu0 0
      %620 = vmatprep.subr.bf16.mxu0 0
      %621 = vmatpush1.bf16.xpose.msra.mxu0 0
      %622 = vmatprep.subr.bf16.mxu0 0
      %623 = vmatpush1.bf16.xpose.msra.mxu0 %v606
      %624 = vmatprep.subr.bf16.mxu0 0
      %625 = vmatpush2.bf16.xpose.msra.mxu0 0
      %626 = vmatprep.subr.bf16.mxu0 0
      %627 = vmatpush2.bf16.xpose.msra.mxu0 0
      %628 = vmatprep.subr.bf16.mxu0 0
      %629 = vmatpush2.bf16.xpose.msra.mxu0 0
      %630 = vmatprep.subr.bf16.mxu0 0
      %631 = vmatpush2.bf16.xpose.msra.mxu0 0
      %632 = vmatprep.subr.bf16.mxu0 0
      %633 = vmatpush2.bf16.xpose.msra.mxu0 0
      %634 = vmatprep.subr.bf16.mxu0 0
      %635 = vmatpush2.bf16.xpose.msra.mxu0 0
      %636 = vmatprep.subr.bf16.mxu0 0
      %637 = vmatpush2.bf16.xpose.msra.mxu0 0
      %638 = vmatprep.subr.bf16.mxu0 0
      %639 = vmatpush2.bf16.xpose.msra.mxu0 0
      %640 = vmatprep.mubr.bf16.mxu0 0
      %641 = vmatmul.mubr.bf16.gmra.mxu0 %v603
      %v642 = vpop.f32.mrf.mxu0
      %v643 = vadd.f32 0.0, %v642
      %v644 = vpop.f32.mrf.mxu0
      %v645 = vpop.f32.mrf.mxu0
      %v646 = vpop.f32.mrf.mxu0
      %647 = vdwg.mxu0
      %v648 = vsel %vm265, %v643, -3.4028235e+38
      %v649 = vsel %vm266, %v648, -inf
      %650 = vmax.xlane.f32.xlu0 %v649
      %v651 = vpop.xlane.xlu0 %650
      %v652 = vsub.f32 %v648, %v651
      %v653 = vmul.f32 %v652, 1.442695
      %v654 = vpow.pop %v653
      %v655 = vsel %vm266, %v654, 0.0
      %656 = vadd.xlane.f32.xlu0 %v655
      %v657 = vpop.xlane.xlu0 %656
      %v658 = vrcp.pop %v657
      %v659 = vmul.f32 %v654, %v658
      %v660 = vpack.c.bf16 %v659, %v659
      %661 = vrot.lane.b32.xlu0 %v260, 104
      %v662 = vpop.permute.xlu0 %661
      %v664 = vsel %vm266, %v660, 0
      %v667 = vsel %vm329, %v662, 0
      %669 = vmatprep.subr.bf16.mxu0 0
      %670 = vmatpush1.bf16.msra.mxu0 0
      %671 = vmatprep.subr.bf16.mxu0 0
      %672 = vmatpush1.bf16.msra.mxu0 0
      %673 = vmatprep.subr.bf16.mxu0 0
      %674 = vmatpush1.bf16.msra.mxu0 0
      %675 = vmatprep.subr.bf16.mxu0 0
      %676 = vmatpush1.bf16.msra.mxu0 0
      %677 = vmatprep.subr.bf16.mxu0 0
      %678 = vmatpush1.bf16.msra.mxu0 0
      %679 = vmatprep.subr.bf16.mxu0 0
      %680 = vmatpush1.bf16.msra.mxu0 0
      %681 = vmatprep.subr.bf16.mxu0 0
      %682 = vmatpush1.bf16.msra.mxu0 0
      %683 = vmatprep.subr.bf16.mxu0 0
      %684 = vmatpush1.bf16.msra.mxu0 %v667
      %685 = vmatprep.subr.bf16.mxu0 0
      %686 = vmatpush2.bf16.msra.mxu0 0
      %687 = vmatprep.subr.bf16.mxu0 0
      %688 = vmatpush2.bf16.msra.mxu0 0
      %689 = vmatprep.subr.bf16.mxu0 0
      %690 = vmatpush2.bf16.msra.mxu0 0
      %691 = vmatprep.subr.bf16.mxu0 0
      %692 = vmatpush2.bf16.msra.mxu0 0
      %693 = vmatprep.subr.bf16.mxu0 0
      %694 = vmatpush2.bf16.msra.mxu0 0
      %695 = vmatprep.subr.bf16.mxu0 0
      %696 = vmatpush2.bf16.msra.mxu0 0
      %697 = vmatprep.subr.bf16.mxu0 0
      %698 = vmatpush2.bf16.msra.mxu0 0
      %699 = vmatprep.subr.bf16.mxu0 0
      %700 = vmatpush2.bf16.msra.mxu0 0
      %701 = vmatprep.mubr.bf16.mxu0 0
      %702 = vmatmul.mubr.bf16.gmra.mxu0 %v664
      %v703 = vpop.f32.mrf.mxu0
      %v704 = vadd.f32 0.0, %v703
      %v705 = vpop.f32.mrf.mxu0
      %v706 = vpop.f32.mrf.mxu0
      %v707 = vpop.f32.mrf.mxu0
      %708 = vdwg.mxu0
      %710 = vrot.lane.b32.xlu0 %v482, 8
      %v711 = vpop.permute.xlu0 %710
      %714 = vrot.lane.b32.xlu0 %v593, 16
      %v715 = vpop.permute.xlu0 %714
      %718 = vrot.lane.b32.xlu0 %v704, 24
      %v719 = vpop.permute.xlu0 %718
      %v721 = vsel %vm266, %v368, %v711
      %vm722 = vcmask 130048
      %v723 = vsel %vm722, %v721, %v715
      %vm724 = vcmask 195584
      %v725 = vsel %vm724, %v723, %v719
      %vm726 = vcmask 261120
      %727 = vst.msk [vmem:[%s252] sm:$0xff] %vm726, %v725
      %p728 = scmp.lt.s32.totalorder %s18, 1
      %s729 = scalar_select %p728, %s18, 1
      %p730 = scmp.lt.s32.totalorder %s19, 0
      %s731 = scalar_select %p730, %s19, 0
      %s732 = sadd.s32 %s731, %s729
      %s733 = smul.addr %s732, 8
      %s734 = scalar_lea.vmem %s3, %s733
      // Predicated region
      $region33: #{_lambda_.27} parent=31 // pred_check
        %p735 = pneg %p130
      $region34: #{_lambda_.27} parent=31 // pred_check_branch
        %737 = sbr.rel (%p735) target = $region36
      $region35: #{_lambda_.27} parent=31 // pred_region
        _
      $region36: #{_lambda_.27} parent=31 // pred_fallthru
        _
    $region32: #{_lambda_.27} parent=5 // pred_fallthru
      _
    %p738 = scmp.le.s32.totalorder 2, %s9
    // Predicated region
    $region37: #{_lambda_.27} parent=5 // pred_check
      %p739 = pneg %p738
    $region38: #{_lambda_.27} parent=5 // pred_check_branch
      %741 = sbr.rel (%p739) target = $region40
    $region39: #{_lambda_.27} parent=5 // pred_region
      %s742 = ssub.s32 %s9, 2
      // Predicated region
      $region41: #{_lambda_.27} parent=39 // pred_check
        %p743 = pneg %p136
      $region42: #{_lambda_.27} parent=39 // pred_check_branch
        %745 = sbr.rel (%p743) target = $region44
      $region43: #{_lambda_.27} parent=39 // pred_region
        %p746 = scmp.lt.s32.totalorder %s20, 1
        %s747 = scalar_select %p746, %s20, 1
        %p748 = scmp.lt.s32.totalorder %s21, 0
        %s749 = scalar_select %p748, %s21, 0
        %s750 = sadd.s32 %s749, %s747
        %s751 = smul.addr %s750, 8
        %s752 = scalar_lea.vmem %s3, %s751
      $region44: #{_lambda_.27} parent=39 // pred_fallthru
        _
    $region40: #{_lambda_.27} parent=5 // pred_fallthru
      _
  $region6: #{_lambda_.27} parent=0 // loop_footer
    %s13 = sadd.s32 1, %s9
  $region7: #{_lambda_.27} parent=0 // loop_footer_branch
    %8 = sbr.rel target = $region3
  $region8: #{_lambda_.27} parent=0 // loop_exit
    _

// kernel: _lambda_.30
$region0: #{_lambda_.30}
  #allocation0 [shape = 'u32[]', space=smem, size = 0x4, offset = 0x4, fixed_abs, tag = 'smem constant byte address 0x4 - core index']
  #allocation1 [shape = 'u32[144,128]{1,0:T(1,128)}', space=vmem, size = 0x12000, scoped, tag = 'internal scratch']
  #allocation2 [shape = 'f32[16,32]{1,0:T(8,128)}', space=vmem, size = 0x2000, scoped, tag = 'scratch operand']
  %s0 = inlined_call_operand.vmem [shape: f32[16,32], index: 0, kind: input, shape index: {}]
  %s1 = inlined_call_operand.vmem [shape: bf16[32,32], index: 1, kind: input, shape index: {}]
  %s2 = inlined_call_operand.vmem [shape: f32[1,32], index: 2, kind: input, shape index: {}]
  %s3 = inlined_call_operand.vmem [shape: f32[16,32], index: 3, kind: output, shape index: {}]
  %s4 = sld [smem:[#allocation0]]
  $region30: #{_lambda_.30} parent=0
    _
  %s6 = ssub.s32 1, %s4
  %s7 = scalar_select 0, %s6, %s4
  // Predicated region
  $region2: #{_lambda_.30} parent=0 // pred_check
    _
  $region3: #{_lambda_.30} parent=0 // pred_check_branch
    %9 = sbr.rel (0) target = $region5
  $region4: #{_lambda_.30} parent=0 // pred_region
    _
  $region5: #{_lambda_.30} parent=0 // pred_fallthru
    _
  // Predicated region
  $region6: #{_lambda_.30} parent=0 // pred_check
    _
  $region7: #{_lambda_.30} parent=0 // pred_check_branch
    %11 = sbr.rel (0) target = $region9
  $region8: #{_lambda_.30} parent=0 // pred_region
    _
  $region9: #{_lambda_.30} parent=0 // pred_fallthru
    _
  // Predicated region
  $region10: #{_lambda_.30} parent=0 // pred_check
    _
  $region11: #{_lambda_.30} parent=0 // pred_check_branch
    %13 = sbr.rel (0) target = $region13
  $region12: #{_lambda_.30} parent=0 // pred_region
    _
  $region13: #{_lambda_.30} parent=0 // pred_fallthru
    _
  %p15 = scmp.eq.s32.totalorder 0, 0
  // Predicated region
  $region14: #{_lambda_.30} parent=0 // pred_check
    %p16 = pneg %p15
  $region15: #{_lambda_.30} parent=0 // pred_check_branch
    %18 = sbr.rel (%p16) target = $region17
  $region16: #{_lambda_.30} parent=0 // pred_region
    %vm19 = vcmask 261120
    %20 = vst.msk [vmem:[#allocation2] sm:$0xff] %vm19, 0.0
    %21 = vst.msk [vmem:[#allocation2 + $0x8] sm:$0xff] %vm19, 0.0
  $region17: #{_lambda_.30} parent=0 // pred_fallthru
    _
  %v22 = vld [vmem:[#allocation2] sm:$0xff]
  %v23 = vld [vmem:[#allocation2 + $0x8] sm:$0xff]
  %v24 = vld [vmem:[%s0] sm:$0xff]
  %v25 = vld [vmem:[%s0 + $0x8] sm:$0xff]
  %v26 = vpack.c.bf16 %v25, %v24
  %v27 = vld [vmem:[%s1] sm:$0xf]
  %v28 = vld [vmem:[%s1 + $0x4] sm:$0xf]
  %v29 = vld [vmem:[%s1 + $0x8] sm:$0xf]
  %v30 = vld [vmem:[%s1 + $0xc] sm:$0xf]
  %v35 = vunpack.c.l.b16 %v27
  %v36 = vunpack.c.l.b16 %v28
  %v37 = vunpack.c.l.b16 %v29
  %v38 = vunpack.c.l.b16 %v30
  %v39 = vpack.c.b16 %v36, %v35
  %v40 = vpack.c.b16 %v38, %v37
  %vm43 = vcmask 261120
  %v45 = vsel %vm43, %v26, 0
  %47 = vmatprep.subr.bf16.mxu0 0
  %48 = vmatpush1.bf16.msra.mxu0 0
  %49 = vmatprep.subr.bf16.mxu0 0
  %50 = vmatpush1.bf16.msra.mxu0 0
  %51 = vmatprep.subr.bf16.mxu0 0
  %52 = vmatpush1.bf16.msra.mxu0 0
  %53 = vmatprep.subr.bf16.mxu0 0
  %54 = vmatpush1.bf16.msra.mxu0 0
  %55 = vmatprep.subr.bf16.mxu0 0
  %56 = vmatpush1.bf16.msra.mxu0 0
  %57 = vmatprep.subr.bf16.mxu0 0
  %58 = vmatpush1.bf16.msra.mxu0 0
  %59 = vmatprep.subr.bf16.mxu0 0
  %60 = vmatpush1.bf16.msra.mxu0 %v40
  %61 = vmatprep.subr.bf16.mxu0 0
  %62 = vmatpush1.bf16.msra.mxu0 %v39
  %63 = vmatprep.subr.bf16.mxu0 0
  %64 = vmatpush2.bf16.msra.mxu0 0
  %65 = vmatprep.subr.bf16.mxu0 0
  %66 = vmatpush2.bf16.msra.mxu0 0
  %67 = vmatprep.subr.bf16.mxu0 0
  %68 = vmatpush2.bf16.msra.mxu0 0
  %69 = vmatprep.subr.bf16.mxu0 0
  %70 = vmatpush2.bf16.msra.mxu0 0
  %71 = vmatprep.subr.bf16.mxu0 0
  %72 = vmatpush2.bf16.msra.mxu0 0
  %73 = vmatprep.subr.bf16.mxu0 0
  %74 = vmatpush2.bf16.msra.mxu0 0
  %75 = vmatprep.subr.bf16.mxu0 0
  %76 = vmatpush2.bf16.msra.mxu0 0
  %77 = vmatprep.subr.bf16.mxu0 0
  %78 = vmatpush2.bf16.msra.mxu0 0
  %79 = vmatprep.mubr.bf16.mxu0 0
  %80 = vmatmul.mubr.bf16.gmra.mxu0 %v45
  %v81 = vpop.f32.mrf.mxu0
  %v82 = vadd.f32 0.0, %v81
  %v83 = vpop.f32.mrf.mxu0
  %v84 = vpop.f32.mrf.mxu0
  %v85 = vadd.f32 0.0, %v84
  %v86 = vpop.f32.mrf.mxu0
  %87 = vdwg.mxu0
  %v88 = vadd.f32 %v22, %v82
  %v89 = vadd.f32 %v23, %v85
  %90 = vst.msk [vmem:[#allocation2] sm:$0xff] %vm43, %v88
  %91 = vst.msk [vmem:[#allocation2 + $0x8] sm:$0xff] %vm43, %v89
  // Predicated region
  $region18: #{_lambda_.30} parent=0 // pred_check
    %p92 = pneg %p15
  $region19: #{_lambda_.30} parent=0 // pred_check_branch
    %94 = sbr.rel (%p92) target = $region21
  $region20: #{_lambda_.30} parent=0 // pred_region
    %v95 = vld [vmem:[#allocation2] sm:$0xff]
    %v96 = vld [vmem:[#allocation2 + $0x8] sm:$0xff]
    %v97 = vld [vmem:[%s2] sm:$0x1]
    %v99 = vlaneseq
    %v100 = vshrl.u32 %v99, 7
    %v101 = vsub.s32 0, %v100
    %v102 = vrot.slane %v97, %v101
    %v104 = vadd.f32 %v95, %v102
    %v105 = vadd.f32 %v96, %v102
    %106 = vst.msk [vmem:[%s3] sm:$0xff] %vm43, %v104
    %107 = vst.msk [vmem:[%s3 + $0x8] sm:$0xff] %vm43, %v105
  $region21: #{_lambda_.30} parent=0 // pred_fallthru
    _
  // Predicated region
  $region22: #{_lambda_.30} parent=0 // pred_check
    _
  $region23: #{_lambda_.30} parent=0 // pred_check_branch
    %109 = sbr.rel (0) target = $region25
  $region24: #{_lambda_.30} parent=0 // pred_region
    _
  $region25: #{_lambda_.30} parent=0 // pred_fallthru
    _
  // Predicated region
  $region26: #{_lambda_.30} parent=0 // pred_check
    _
  $region27: #{_lambda_.30} parent=0 // pred_check_branch
    %111 = sbr.rel (0) target = $region29
  $region28: #{_lambda_.30} parent=0 // pred_region
    _
  $region29: #{_lambda_.30} parent=0 // pred_fallthru
    _

// kernel: _lambda_.31
$region0: #{_lambda_.31}
  #allocation0 [shape = 'u32[]', space=smem, size = 0x4, offset = 0x4, fixed_abs, tag = 'smem constant byte address 0x4 - core index']
  #allocation1 [shape = 'u32[144,128]{1,0:T(1,128)}', space=vmem, size = 0x12000, scoped, tag = 'internal scratch']
  #allocation2 [shape = 'f32[32,64]{1,0:T(8,128)}', space=vmem, size = 0x4000, scoped, tag = 'scratch operand']
  %s0 = inlined_call_operand.vmem [shape: f32[32,32], index: 0, kind: input, shape index: {}]
  %s1 = inlined_call_operand.vmem [shape: bf16[32,64], index: 1, kind: input, shape index: {}]
  %s2 = inlined_call_operand.vmem [shape: f32[1,64], index: 2, kind: input, shape index: {}]
  %s3 = inlined_call_operand.vmem [shape: f32[32,64], index: 3, kind: output, shape index: {}]
  %s4 = sld [smem:[#allocation0]]
  $region30: #{_lambda_.31} parent=0
    _
  %s6 = ssub.s32 1, %s4
  %s7 = scalar_select 0, %s6, %s4
  // Predicated region
  $region2: #{_lambda_.31} parent=0 // pred_check
    _
  $region3: #{_lambda_.31} parent=0 // pred_check_branch
    %9 = sbr.rel (0) target = $region5
  $region4: #{_lambda_.31} parent=0 // pred_region
    _
  $region5: #{_lambda_.31} parent=0 // pred_fallthru
    _
  // Predicated region
  $region6: #{_lambda_.31} parent=0 // pred_check
    _
  $region7: #{_lambda_.31} parent=0 // pred_check_branch
    %11 = sbr.rel (0) target = $region9
  $region8: #{_lambda_.31} parent=0 // pred_region
    _
  $region9: #{_lambda_.31} parent=0 // pred_fallthru
    _
  // Predicated region
  $region10: #{_lambda_.31} parent=0 // pred_check
    _
  $region11: #{_lambda_.31} parent=0 // pred_check_branch
    %13 = sbr.rel (0) target = $region13
  $region12: #{_lambda_.31} parent=0 // pred_region
    _
  $region13: #{_lambda_.31} parent=0 // pred_fallthru
    _
  %p15 = scmp.eq.s32.totalorder 0, 0
  // Predicated region
  $region14: #{_lambda_.31} parent=0 // pred_check
    %p16 = pneg %p15
  $region15: #{_lambda_.31} parent=0 // pred_check_branch
    %18 = sbr.rel (%p16) target = $region17
  $region16: #{_lambda_.31} parent=0 // pred_region
    %vm19 = vcmask 523264
    %20 = vst.msk [vmem:[#allocation2] sm:$0xff] %vm19, 0.0
    %21 = vst.msk [vmem:[#allocation2 + $0x8] sm:$0xff] %vm19, 0.0
    %22 = vst.msk [vmem:[#allocation2 + $0x10] sm:$0xff] %vm19, 0.0
    %23 = vst.msk [vmem:[#allocation2 + $0x18] sm:$0xff] %vm19, 0.0
  $region17: #{_lambda_.31} parent=0 // pred_fallthru
    _
  %v24 = vld [vmem:[#allocation2] sm:$0xff]
  %v25 = vld [vmem:[#allocation2 + $0x8] sm:$0xff]
  %v26 = vld [vmem:[#allocation2 + $0x10] sm:$0xff]
  %v27 = vld [vmem:[#allocation2 + $0x18] sm:$0xff]
  %v28 = vld [vmem:[%s0] sm:$0xff]
  %v29 = vld [vmem:[%s0 + $0x8] sm:$0xff]
  %v30 = vld [vmem:[%s0 + $0x10] sm:$0xff]
  %v31 = vld [vmem:[%s0 + $0x18] sm:$0xff]
  %v32 = vpack.c.bf16 %v29, %v28
  %v33 = vpack.c.bf16 %v31, %v30
  %v34 = vld [vmem:[%s1] sm:$0xf]
  %v35 = vld [vmem:[%s1 + $0x4] sm:$0xf]
  %v36 = vld [vmem:[%s1 + $0x8] sm:$0xf]
  %v37 = vld [vmem:[%s1 + $0xc] sm:$0xf]
  %v42 = vunpack.c.l.b16 %v34
  %v43 = vunpack.c.l.b16 %v35
  %v44 = vunpack.c.l.b16 %v36
  %v45 = vunpack.c.l.b16 %v37
  %v46 = vpack.c.b16 %v43, %v42
  %v47 = vpack.c.b16 %v45, %v44
  %vm50 = vcmask 261120
  %v52 = vsel %vm50, %v32, 0
  %v55 = vsel %vm50, %v33, 0
  %57 = vmatprep.subr.bf16.mxu0 0
  %58 = vmatpush1.bf16.msra.mxu0 0
  %59 = vmatprep.subr.bf16.mxu0 0
  %60 = vmatpush1.bf16.msra.mxu0 0
  %61 = vmatprep.subr.bf16.mxu0 0
  %62 = vmatpush1.bf16.msra.mxu0 0
  %63 = vmatprep.subr.bf16.mxu0 0
  %64 = vmatpush1.bf16.msra.mxu0 0
  %65 = vmatprep.subr.bf16.mxu0 0
  %66 = vmatpush1.bf16.msra.mxu0 0
  %67 = vmatprep.subr.bf16.mxu0 0
  %68 = vmatpush1.bf16.msra.mxu0 0
  %69 = vmatprep.subr.bf16.mxu0 0
  %70 = vmatpush1.bf16.msra.mxu0 %v47
  %71 = vmatprep.subr.bf16.mxu0 0
  %72 = vmatpush1.bf16.msra.mxu0 %v46
  %73 = vmatprep.subr.bf16.mxu0 0
  %74 = vmatpush2.bf16.msra.mxu0 0
  %75 = vmatprep.subr.bf16.mxu0 0
  %76 = vmatpush2.bf16.msra.mxu0 0
  %77 = vmatprep.subr.bf16.mxu0 0
  %78 = vmatpush2.bf16.msra.mxu0 0
  %79 = vmatprep.subr.bf16.mxu0 0
  %80 = vmatpush2.bf16.msra.mxu0 0
  %81 = vmatprep.subr.bf16.mxu0 0
  %82 = vmatpush2.bf16.msra.mxu0 0
  %83 = vmatprep.subr.bf16.mxu0 0
  %84 = vmatpush2.bf16.msra.mxu0 0
  %85 = vmatprep.subr.bf16.mxu0 0
  %86 = vmatpush2.bf16.msra.mxu0 0
  %87 = vmatprep.subr.bf16.mxu0 0
  %88 = vmatpush2.bf16.msra.mxu0 0
  %89 = vmatprep.mubr.bf16.mxu0 0
  %90 = vmatmul.mubr.bf16.gmra.mxu0 %v52
  %v91 = vpop.f32.mrf.mxu0
  %v92 = vadd.f32 0.0, %v91
  %v93 = vpop.f32.mrf.mxu0
  %v94 = vpop.f32.mrf.mxu0
  %v95 = vadd.f32 0.0, %v94
  %v96 = vpop.f32.mrf.mxu0
  %97 = vmatprep.mubr.bf16.mxu0 0
  %98 = vmatmul.mubr.bf16.gmra.mxu0 %v55
  %v99 = vpop.f32.mrf.mxu0
  %v100 = vadd.f32 0.0, %v99
  %v101 = vpop.f32.mrf.mxu0
  %v102 = vpop.f32.mrf.mxu0
  %v103 = vadd.f32 0.0, %v102
  %v104 = vpop.f32.mrf.mxu0
  %105 = vdwg.mxu0
  %v106 = vadd.f32 %v24, %v92
  %v107 = vadd.f32 %v25, %v95
  %v108 = vadd.f32 %v26, %v100
  %v109 = vadd.f32 %v27, %v103
  %vm110 = vcmask 523264
  %111 = vst.msk [vmem:[#allocation2] sm:$0xff] %vm110, %v106
  %112 = vst.msk [vmem:[#allocation2 + $0x8] sm:$0xff] %vm110, %v107
  %113 = vst.msk [vmem:[#allocation2 + $0x10] sm:$0xff] %vm110, %v108
  %114 = vst.msk [vmem:[#allocation2 + $0x18] sm:$0xff] %vm110, %v109
  // Predicated region
  $region18: #{_lambda_.31} parent=0 // pred_check
    %p115 = pneg %p15
  $region19: #{_lambda_.31} parent=0 // pred_check_branch
    %117 = sbr.rel (%p115) target = $region21
  $region20: #{_lambda_.31} parent=0 // pred_region
    %v118 = vld [vmem:[#allocation2] sm:$0xff]
    %v119 = vld [vmem:[#allocation2 + $0x8] sm:$0xff]
    %v120 = vld [vmem:[#allocation2 + $0x10] sm:$0xff]
    %v121 = vld [vmem:[#allocation2 + $0x18] sm:$0xff]
    %v122 = vld [vmem:[%s2] sm:$0x1]
    %v124 = vlaneseq
    %v125 = vshrl.u32 %v124, 7
    %v126 = vsub.s32 0, %v125
    %v127 = vrot.slane %v122, %v126
    %v129 = vadd.f32 %v118, %v127
    %v130 = vadd.f32 %v119, %v127
    %v131 = vadd.f32 %v120, %v127
    %v132 = vadd.f32 %v121, %v127
    %133 = vst.msk [vmem:[%s3] sm:$0xff] %vm110, %v129
    %134 = vst.msk [vmem:[%s3 + $0x8] sm:$0xff] %vm110, %v130
    %135 = vst.msk [vmem:[%s3 + $0x10] sm:$0xff] %vm110, %v131
    %136 = vst.msk [vmem:[%s3 + $0x18] sm:$0xff] %vm110, %v132
  $region21: #{_lambda_.31} parent=0 // pred_fallthru
    _
  // Predicated region
  $region22: #{_lambda_.31} parent=0 // pred_check
    _
  $region23: #{_lambda_.31} parent=0 // pred_check_branch
    %138 = sbr.rel (0) target = $region25
  $region24: #{_lambda_.31} parent=0 // pred_region
    _
  $region25: #{_lambda_.31} parent=0 // pred_fallthru
    _
  // Predicated region
  $region26: #{_lambda_.31} parent=0 // pred_check
    _
  $region27: #{_lambda_.31} parent=0 // pred_check_branch
    %140 = sbr.rel (0) target = $region29
  $region28: #{_lambda_.31} parent=0 // pred_region
    _
  $region29: #{_lambda_.31} parent=0 // pred_fallthru
    _

// kernel: _lambda_.32
$region0: #{_lambda_.32}
  #allocation0 [shape = 'u32[]', space=smem, size = 0x4, offset = 0x4, fixed_abs, tag = 'smem constant byte address 0x4 - core index']
  #allocation1 [shape = 'u32[144,128]{1,0:T(1,128)}', space=vmem, size = 0x12000, scoped, tag = 'internal scratch']
  %s0 = inlined_call_operand.vmem [shape: f32[2,8,32], index: 0, kind: input, shape index: {}]
  %s1 = inlined_call_operand.vmem [shape: f32[2,16,32], index: 1, kind: input, shape index: {}]
  %s2 = inlined_call_operand.vmem [shape: f32[2,16,32], index: 2, kind: input, shape index: {}]
  %s3 = inlined_call_operand.vmem [shape: f32[2,8,32], index: 3, kind: output, shape index: {}]
  %s4 = sld [smem:[#allocation0]]
  $region45: #{_lambda_.32} parent=0
    _
  %s6 = ssub.s32 1, %s4
  %s7 = scalar_select 0, %s6, %s4
  loop: start=0, step=1, limit=4
  $region2: #{_lambda_.32} parent=0 // loop_pre_header
    _
  $region3: #{_lambda_.32} parent=0 // loop_header
    %s9 = sphi 0, %s13
    %p10 = scmp.ge.s32.totalorder %s9, 4
    %s16 = sphi 0, %s28
    %s17 = sphi 0, %s24
    %s18 = sphi 0, %s16
    %s19 = sphi 0, %s17
    %s20 = sphi 0, %s18
    %s21 = sphi 0, %s19
    %s33 = sphi 0, %s35
    %s36 = sphi 0, %s33
    %s37 = sphi 0, %s36
    %s53 = sphi 0, %s37
    %s61 = sphi 0, %s63
    %s64 = sphi 0, %s61
    %s65 = sphi 0, %s64
    %s81 = sphi 0, %s65
    %s89 = sphi 0, %s91
    %s92 = sphi 0, %s89
    %s93 = sphi 0, %s92
    %s109 = sphi 0, %s93
    %s117 = sphi 0, %s119
    %s120 = sphi 0, %s117
    %s121 = sphi 0, %s120
    %s137 = sphi 0, %s121
  $region4: #{_lambda_.32} parent=0 // loop_header_branch
    %12 = sbr.rel (%p10) target = $region8
  $region5: #{_lambda_.32} parent=0 // loop_body
    %s14 = ssub.s32 %s9, 1
    %s15 = ssub.s32 %s9, 2
    %s22 = sadd.s32 1, %s17
    %p23 = scmp.ge.s32.totalorder %s22, 1
    %s24 = scalar_select %p23, 0, %s22
    %s25 = sadd.s32 1, %s16
    %s26 = scalar_select %p23, %s25, %s16
    %p27 = scmp.ge.s32.totalorder %s26, 2
    %s28 = scalar_select %p27, 0, %s26
    %s29 = ssub.s32 %s16, %s28
    %s30 = ssub.s32 %s17, %s24
    %s31 = sor.u32 %s29, %s30
    %p32 = scmp.eq.s32.totalorder %s31, 0
    %s34 = sadd.s32 %s33, 1
    %s35 = scalar_select %p32, %s33, %s34
    %p38 = pneg %p32
    %p39 = scmp.eq.s32.totalorder %s9, 1
    %p40 = por %p38, %p39
    %p41 = scmp.ne.s32.totalorder %s33, %s36
    %p42 = scmp.eq.s32.totalorder %s9, 0
    %p43 = por %p41, %p42
    %p44 = scmp.ne.s32.totalorder %s33, %s36
    %p45 = scmp.eq.s32.totalorder %s14, 1
    %p46 = por %p44, %p45
    %p47 = scmp.ne.s32.totalorder %s36, %s37
    %p48 = scmp.eq.s32.totalorder %s14, 0
    %p49 = por %p47, %p48
    %p50 = scmp.ne.s32.totalorder %s36, %s37
    %p51 = scmp.eq.s32.totalorder %s15, 1
    %p52 = por %p50, %p51
    %p54 = scmp.ne.s32.totalorder %s37, %s53
    %p55 = scmp.eq.s32.totalorder %s15, 0
    %p56 = por %p54, %p55
    %s57 = ssub.s32 %s16, %s28
    %s58 = ssub.s32 %s17, %s24
    %s59 = sor.u32 %s57, %s58
    %p60 = scmp.eq.s32.totalorder %s59, 0
    %s62 = sadd.s32 %s61, 1
    %s63 = scalar_select %p60, %s61, %s62
    %p66 = pneg %p60
    %p67 = scmp.eq.s32.totalorder %s9, 1
    %p68 = por %p66, %p67
    %p69 = scmp.ne.s32.totalorder %s61, %s64
    %p70 = scmp.eq.s32.totalorder %s9, 0
    %p71 = por %p69, %p70
    %p72 = scmp.ne.s32.totalorder %s61, %s64
    %p73 = scmp.eq.s32.totalorder %s14, 1
    %p74 = por %p72, %p73
    %p75 = scmp.ne.s32.totalorder %s64, %s65
    %p76 = scmp.eq.s32.totalorder %s14, 0
    %p77 = por %p75, %p76
    %p78 = scmp.ne.s32.totalorder %s64, %s65
    %p79 = scmp.eq.s32.totalorder %s15, 1
    %p80 = por %p78, %p79
    %p82 = scmp.ne.s32.totalorder %s65, %s81
    %p83 = scmp.eq.s32.totalorder %s15, 0
    %p84 = por %p82, %p83
    %s85 = ssub.s32 %s16, %s28
    %s86 = ssub.s32 %s17, %s24
    %s87 = sor.u32 %s85, %s86
    %p88 = scmp.eq.s32.totalorder %s87, 0
    %s90 = sadd.s32 %s89, 1
    %s91 = scalar_select %p88, %s89, %s90
    %p94 = pneg %p88
    %p95 = scmp.eq.s32.totalorder %s9, 1
    %p96 = por %p94, %p95
    %p97 = scmp.ne.s32.totalorder %s89, %s92
    %p98 = scmp.eq.s32.totalorder %s9, 0
    %p99 = por %p97, %p98
    %p100 = scmp.ne.s32.totalorder %s89, %s92
    %p101 = scmp.eq.s32.totalorder %s14, 1
    %p102 = por %p100, %p101
    %p103 = scmp.ne.s32.totalorder %s92, %s93
    %p104 = scmp.eq.s32.totalorder %s14, 0
    %p105 = por %p103, %p104
    %p106 = scmp.ne.s32.totalorder %s92, %s93
    %p107 = scmp.eq.s32.totalorder %s15, 1
    %p108 = por %p106, %p107
    %p110 = scmp.ne.s32.totalorder %s93, %s109
    %p111 = scmp.eq.s32.totalorder %s15, 0
    %p112 = por %p110, %p111
    %s113 = ssub.s32 %s16, %s28
    %s114 = ssub.s32 %s17, %s24
    %s115 = sor.u32 %s113, %s114
    %p116 = scmp.eq.s32.totalorder %s115, 0
    %s118 = sadd.s32 %s117, 1
    %s119 = scalar_select %p116, %s117, %s118
    %p122 = pneg %p116
    %p123 = scmp.eq.s32.totalorder %s9, 1
    %p124 = por %p122, %p123
    %p125 = scmp.ne.s32.totalorder %s117, %s120
    %p126 = scmp.eq.s32.totalorder %s9, 0
    %p127 = por %p125, %p126
    %p128 = scmp.ne.s32.totalorder %s117, %s120
    %p129 = scmp.eq.s32.totalorder %s14, 1
    %p130 = por %p128, %p129
    %p131 = scmp.ne.s32.totalorder %s120, %s121
    %p132 = scmp.eq.s32.totalorder %s14, 0
    %p133 = por %p131, %p132
    %p134 = scmp.ne.s32.totalorder %s120, %s121
    %p135 = scmp.eq.s32.totalorder %s15, 1
    %p136 = por %p134, %p135
    %p138 = scmp.ne.s32.totalorder %s121, %s137
    %p139 = scmp.eq.s32.totalorder %s15, 0
    %p140 = por %p138, %p139
    %p141 = scmp.le.s32.totalorder 1, %s9
    %p142 = scmp.lt.s32.totalorder %s9, 3
    %p143 = pnand %p141, %p142
    %p144 = pneg %p143
    // Predicated region
    $region9: #{_lambda_.32} parent=5 // pred_check
      _
    $region10: #{_lambda_.32} parent=5 // pred_check_branch
      %146 = sbr.rel (%p143) target = $region12
    $region11: #{_lambda_.32} parent=5 // pred_region
      %s147 = ssub.s32 %s9, 1
    $region12: #{_lambda_.32} parent=5 // pred_fallthru
      _
    %p148 = scmp.lt.s32.totalorder %s9, 2
    // Predicated region
    $region13: #{_lambda_.32} parent=5 // pred_check
      %p149 = pneg %p148
    $region14: #{_lambda_.32} parent=5 // pred_check_branch
      %151 = sbr.rel (%p149) target = $region16
    $region15: #{_lambda_.32} parent=5 // pred_region
      // Predicated region
      $region17: #{_lambda_.32} parent=15 // pred_check
        %p152 = pneg %p43
      $region18: #{_lambda_.32} parent=15 // pred_check_branch
        %154 = sbr.rel (%p152) target = $region20
      $region19: #{_lambda_.32} parent=15 // pred_region
        %p155 = scmp.lt.s32.totalorder %s16, 1
        %s156 = scalar_select %p155, %s16, 1
        %p157 = scmp.lt.s32.totalorder %s17, 0
        %s158 = scalar_select %p157, %s17, 0
        %s159 = sadd.s32 %s158, %s156
        %s160 = smul.addr %s159, 8
        %s161 = scalar_lea.vmem %s0, %s160
      $region20: #{_lambda_.32} parent=15 // pred_fallthru
        _
      // Predicated region
      $region21: #{_lambda_.32} parent=15 // pred_check
        %p162 = pneg %p71
      $region22: #{_lambda_.32} parent=15 // pred_check_branch
        %164 = sbr.rel (%p162) target = $region24
      $region23: #{_lambda_.32} parent=15 // pred_region
        %p165 = scmp.lt.s32.totalorder %s16, 1
        %s166 = scalar_select %p165, %s16, 1
        %p167 = scmp.lt.s32.totalorder %s17, 0
        %s168 = scalar_select %p167, %s17, 0
        %s169 = smul.addr %s166, 2
        %s170 = sadd.s32 %s168, %s169
        %s171 = smul.addr %s170, 8
        %s172 = scalar_lea.vmem %s1, %s171
      $region24: #{_lambda_.32} parent=15 // pred_fallthru
        _
      // Predicated region
      $region25: #{_lambda_.32} parent=15 // pred_check
        %p173 = pneg %p99
      $region26: #{_lambda_.32} parent=15 // pred_check_branch
        %175 = sbr.rel (%p173) target = $region28
      $region27: #{_lambda_.32} parent=15 // pred_region
        %p176 = scmp.lt.s32.totalorder %s16, 1
        %s177 = scalar_select %p176, %s16, 1
        %p178 = scmp.lt.s32.totalorder %s17, 0
        %s179 = scalar_select %p178, %s17, 0
        %s180 = smul.addr %s177, 2
        %s181 = sadd.s32 %s179, %s180
        %s182 = smul.addr %s181, 8
        %s183 = scalar_lea.vmem %s2, %s182
      $region28: #{_lambda_.32} parent=15 // pred_fallthru
        _
    $region16: #{_lambda_.32} parent=5 // pred_fallthru
      _
    %p184 = scmp.le.s32.totalorder 1, %s9
    %p185 = scmp.lt.s32.totalorder %s9, 3
    %p186 = pnand %p184, %p185
    %p187 = pneg %p186
    // Predicated region
    $region29: #{_lambda_.32} parent=5 // pred_check
      _
    $region30: #{_lambda_.32} parent=5 // pred_check_branch
      %189 = sbr.rel (%p186) target = $region32
    $region31: #{_lambda_.32} parent=5 // pred_region
      %s190 = ssub.s32 %s9, 1
      %p191 = scmp.lt.s32.totalorder %s18, 1
      %s192 = scalar_select %p191, %s18, 1
      %p193 = scmp.lt.s32.totalorder %s19, 0
      %s194 = scalar_select %p193, %s19, 0
      %s195 = sadd.s32 %s194, %s192
      %s196 = smul.addr %s195, 8
      %s197 = scalar_lea.vmem %s0, %s196
      %p198 = pneg %p49
      %p199 = pneg %p46
      %p200 = scmp.lt.s32.totalorder %s18, 1
      %s201 = scalar_select %p200, %s18, 1
      %p202 = scmp.lt.s32.totalorder %s19, 0
      %s203 = scalar_select %p202, %s19, 0
      %s204 = smul.addr %s201, 2
      %s205 = sadd.s32 %s203, %s204
      %s206 = smul.addr %s205, 8
      %s207 = scalar_lea.vmem %s1, %s206
      %p208 = pneg %p77
      %p209 = pneg %p74
      %p210 = scmp.lt.s32.totalorder %s18, 1
      %s211 = scalar_select %p210, %s18, 1
      %p212 = scmp.lt.s32.totalorder %s19, 0
      %s213 = scalar_select %p212, %s19, 0
      %s214 = smul.addr %s211, 2
      %s215 = sadd.s32 %s213, %s214
      %s216 = smul.addr %s215, 8
      %s217 = scalar_lea.vmem %s2, %s216
      %p218 = pneg %p105
      %p219 = pneg %p102
      %p220 = pneg %p133
      %p221 = pneg %p130
      %p222 = scmp.lt.s32.totalorder %s18, 1
      %s223 = scalar_select %p222, %s18, 1
      %p224 = scmp.lt.s32.totalorder %s19, 0
      %s225 = scalar_select %p224, %s19, 0
      %s226 = sadd.s32 %s225, %s223
      %s227 = smul.addr %s226, 8
      %s228 = scalar_lea.vmem %s3, %s227
      %p229 = scmp.lt.s32.totalorder %s18, 1
      %s230 = scalar_select %p229, %s18, 1
      %p231 = scmp.lt.s32.totalorder %s19, 0
      %s232 = scalar_select %p231, %s19, 0
      %s233 = sadd.s32 %s232, %s230
      %s234 = smul.addr %s233, 8
      %s235 = scalar_lea.vmem %s0, %s234
      %p236 = scmp.lt.s32.totalorder %s18, 1
      %s237 = scalar_select %p236, %s18, 1
      %p238 = scmp.lt.s32.totalorder %s19, 0
      %s239 = scalar_select %p238, %s19, 0
      %s240 = smul.addr %s237, 2
      %s241 = sadd.s32 %s239, %s240
      %s242 = smul.addr %s241, 8
      %s243 = scalar_lea.vmem %s1, %s242
      %p244 = scmp.lt.s32.totalorder %s18, 1
      %s245 = scalar_select %p244, %s18, 1
      %p246 = scmp.lt.s32.totalorder %s19, 0
      %s247 = scalar_select %p246, %s19, 0
      %s248 = smul.addr %s245, 2
      %s249 = sadd.s32 %s247, %s248
      %s250 = smul.addr %s249, 8
      %s251 = scalar_lea.vmem %s2, %s250
      %p252 = scmp.lt.s32.totalorder %s18, 1
      %s253 = scalar_select %p252, %s18, 1
      %p254 = scmp.lt.s32.totalorder %s19, 0
      %s255 = scalar_select %p254, %s19, 0
      %s256 = sadd.s32 %s255, %s253
      %s257 = smul.addr %s256, 8
      %s258 = scalar_lea.vmem %s3, %s257
      %v260 = vld [vmem:[%s235] sm:$0xff]
      %v261 = vmul.f32 %v260, 0.35355338
      %v262 = vpack.c.bf16 %v261, %v261
      %v263 = vld [vmem:[%s243] sm:$0xff]
      %v264 = vld [vmem:[%s243 + $0x8] sm:$0xff]
      %v265 = vpack.c.bf16 %v264, %v263
      %v266 = vld [vmem:[%s251] sm:$0xff]
      %v267 = vld [vmem:[%s251 + $0x8] sm:$0xff]
      %v268 = vpack.c.bf16 %v267, %v266
      %vm269 = vcmask 64512
      %v271 = vsel %vm269, %v262, 0
      %v274 = vsel %vm269, %v265, 0
      %276 = vmatprep.subr.bf16.mxu0 0
      %277 = vmatpush1.bf16.xpose.msra.mxu0 0
      %278 = vmatprep.subr.bf16.mxu0 0
      %279 = vmatpush1.bf16.xpose.msra.mxu0 0
      %280 = vmatprep.subr.bf16.mxu0 0
      %281 = vmatpush1.bf16.xpose.msra.mxu0 0
      %282 = vmatprep.subr.bf16.mxu0 0
      %283 = vmatpush1.bf16.xpose.msra.mxu0 0
      %284 = vmatprep.subr.bf16.mxu0 0
      %285 = vmatpush1.bf16.xpose.msra.mxu0 0
      %286 = vmatprep.subr.bf16.mxu0 0
      %287 = vmatpush1.bf16.xpose.msra.mxu0 0
      %288 = vmatprep.subr.bf16.mxu0 0
      %289 = vmatpush1.bf16.xpose.msra.mxu0 0
      %290 = vmatprep.subr.bf16.mxu0 0
      %291 = vmatpush1.bf16.xpose.msra.mxu0 %v274
      %292 = vmatprep.subr.bf16.mxu0 0
      %293 = vmatpush2.bf16.xpose.msra.mxu0 0
      %294 = vmatprep.subr.bf16.mxu0 0
      %295 = vmatpush2.bf16.xpose.msra.mxu0 0
      %296 = vmatprep.subr.bf16.mxu0 0
      %297 = vmatpush2.bf16.xpose.msra.mxu0 0
      %298 = vmatprep.subr.bf16.mxu0 0
      %299 = vmatpush2.bf16.xpose.msra.mxu0 0
      %300 = vmatprep.subr.bf16.mxu0 0
      %301 = vmatpush2.bf16.xpose.msra.mxu0 0
      %302 = vmatprep.subr.bf16.mxu0 0
      %303 = vmatpush2.bf16.xpose.msra.mxu0 0
      %304 = vmatprep.subr.bf16.mxu0 0
      %305 = vmatpush2.bf16.xpose.msra.mxu0 0
      %306 = vmatprep.subr.bf16.mxu0 0
      %307 = vmatpush2.bf16.xpose.msra.mxu0 0
      %308 = vmatprep.mubr.bf16.mxu0 0
      %309 = vmatmul.mubr.bf16.gmra.mxu0 %v271
      %v310 = vpop.f32.mrf.mxu0
      %v311 = vadd.f32 0.0, %v310
      %v312 = vpop.f32.mrf.mxu0
      %v313 = vpop.f32.mrf.mxu0
      %v314 = vpop.f32.mrf.mxu0
      %315 = vdwg.mxu0
      %vm316 = vcmask 130048
      %v317 = vsel %vm316, %v311, -inf
      %318 = vmax.xlane.f32.xlu0 %v317
      %v319 = vpop.xlane.xlu0 %318
      %v320 = vsub.f32 %v311, %v319
      %v321 = vmul.f32 %v320, 1.442695
      %v322 = vpow.pop %v321
      %v323 = vsel %vm316, %v322, 0.0
      %324 = vadd.xlane.f32.xlu0 %v323
      %v325 = vpop.xlane.xlu0 %324
      %v326 = vrcp.pop %v325
      %v327 = vmul.f32 %v322, %v326
      %v328 = vpack.c.bf16 %v327, %v327
      %v330 = vsel %vm316, %v328, 0
      %332 = vmatprep.subr.bf16.mxu0 0
      %333 = vmatpush1.bf16.msra.mxu0 0
      %334 = vmatprep.subr.bf16.mxu0 0
      %335 = vmatpush1.bf16.msra.mxu0 0
      %336 = vmatprep.subr.bf16.mxu0 0
      %337 = vmatpush1.bf16.msra.mxu0 0
      %338 = vmatprep.subr.bf16.mxu0 0
      %339 = vmatpush1.bf16.msra.mxu0 0
      %340 = vmatprep.subr.bf16.mxu0 0
      %341 = vmatpush1.bf16.msra.mxu0 0
      %342 = vmatprep.subr.bf16.mxu0 0
      %343 = vmatpush1.bf16.msra.mxu0 0
      %344 = vmatprep.subr.bf16.mxu0 0
      %345 = vmatpush1.bf16.msra.mxu0 0
      %346 = vmatprep.subr.bf16.mxu0 0
      %347 = vmatpush1.bf16.msra.mxu0 %v268
      %348 = vmatprep.subr.bf16.mxu0 0
      %349 = vmatpush2.bf16.msra.mxu0 0
      %350 = vmatprep.subr.bf16.mxu0 0
      %351 = vmatpush2.bf16.msra.mxu0 0
      %352 = vmatprep.subr.bf16.mxu0 0
      %353 = vmatpush2.bf16.msra.mxu0 0
      %354 = vmatprep.subr.bf16.mxu0 0
      %355 = vmatpush2.bf16.msra.mxu0 0
      %356 = vmatprep.subr.bf16.mxu0 0
      %357 = vmatpush2.bf16.msra.mxu0 0
      %358 = vmatprep.subr.bf16.mxu0 0
      %359 = vmatpush2.bf16.msra.mxu0 0
      %360 = vmatprep.subr.bf16.mxu0 0
      %361 = vmatpush2.bf16.msra.mxu0 0
      %362 = vmatprep.subr.bf16.mxu0 0
      %363 = vmatpush2.bf16.msra.mxu0 0
      %364 = vmatprep.mubr.bf16.mxu0 0
      %365 = vmatmul.mubr.bf16.gmra.mxu0 %v330
      %v366 = vpop.f32.mrf.mxu0
      %v367 = vadd.f32 0.0, %v366
      %v368 = vpop.f32.mrf.mxu0
      %v369 = vpop.f32.mrf.mxu0
      %v370 = vpop.f32.mrf.mxu0
      %371 = vdwg.mxu0
      %373 = vrot.lane.b32.xlu0 %v262, 120
      %v374 = vpop.permute.xlu0 %373
      %376 = vrot.lane.b32.xlu0 %v265, 120
      %v377 = vpop.permute.xlu0 %376
      %v379 = vsel %vm269, %v374, 0
      %v382 = vsel %vm269, %v377, 0
      %384 = vmatprep.subr.bf16.mxu0 0
      %385 = vmatpush1.bf16.xpose.msra.mxu0 0
      %386 = vmatprep.subr.bf16.mxu0 0
      %387 = vmatpush1.bf16.xpose.msra.mxu0 0
      %388 = vmatprep.subr.bf16.mxu0 0
      %389 = vmatpush1.bf16.xpose.msra.mxu0 0
      %390 = vmatprep.subr.bf16.mxu0 0
      %391 = vmatpush1.bf16.xpose.msra.mxu0 0
      %392 = vmatprep.subr.bf16.mxu0 0
      %393 = vmatpush1.bf16.xpose.msra.mxu0 0
      %394 = vmatprep.subr.bf16.mxu0 0
      %395 = vmatpush1.bf16.xpose.msra.mxu0 0
      %396 = vmatprep.subr.bf16.mxu0 0
      %397 = vmatpush1.bf16.xpose.msra.mxu0 0
      %398 = vmatprep.subr.bf16.mxu0 0
      %399 = vmatpush1.bf16.xpose.msra.mxu0 %v382
      %400 = vmatprep.subr.bf16.mxu0 0
      %401 = vmatpush2.bf16.xpose.msra.mxu0 0
      %402 = vmatprep.subr.bf16.mxu0 0
      %403 = vmatpush2.bf16.xpose.msra.mxu0 0
      %404 = vmatprep.subr.bf16.mxu0 0
      %405 = vmatpush2.bf16.xpose.msra.mxu0 0
      %406 = vmatprep.subr.bf16.mxu0 0
      %407 = vmatpush2.bf16.xpose.msra.mxu0 0
      %408 = vmatprep.subr.bf16.mxu0 0
      %409 = vmatpush2.bf16.xpose.msra.mxu0 0
      %410 = vmatprep.subr.bf16.mxu0 0
      %411 = vmatpush2.bf16.xpose.msra.mxu0 0
      %412 = vmatprep.subr.bf16.mxu0 0
      %413 = vmatpush2.bf16.xpose.msra.mxu0 0
      %414 = vmatprep.subr.bf16.mxu0 0
      %415 = vmatpush2.bf16.xpose.msra.mxu0 0
      %416 = vmatprep.mubr.bf16.mxu0 0
      %417 = vmatmul.mubr.bf16.gmra.mxu0 %v379
      %v418 = vpop.f32.mrf.mxu0
      %v419 = vadd.f32 0.0, %v418
      %v420 = vpop.f32.mrf.mxu0
      %v421 = vpop.f32.mrf.mxu0
      %v422 = vpop.f32.mrf.mxu0
      %423 = vdwg.mxu0
      %v424 = vsel %vm316, %v419, -inf
      %425 = vmax.xlane.f32.xlu0 %v424
      %v426 = vpop.xlane.xlu0 %425
      %v427 = vsub.f32 %v419, %v426
      %v428 = vmul.f32 %v427, 1.442695
      %v429 = vpow.pop %v428
      %v430 = vsel %vm316, %v429, 0.0
      %431 = vadd.xlane.f32.xlu0 %v430
      %v432 = vpop.xlane.xlu0 %431
      %v433 = vrcp.pop %v432
      %v434 = vmul.f32 %v429, %v433
      %v435 = vpack.c.bf16 %v434, %v434
      %437 = vrot.lane.b32.xlu0 %v268, 120
      %v438 = vpop.permute.xlu0 %437
      %v441 = vsel %vm316, %v435, 0
      %443 = vmatprep.subr.bf16.mxu0 0
      %444 = vmatpush1.bf16.msra.mxu0 0
      %445 = vmatprep.subr.bf16.mxu0 0
      %446 = vmatpush1.bf16.msra.mxu0 0
      %447 = vmatprep.subr.bf16.mxu0 0
      %448 = vmatpush1.bf16.msra.mxu0 0
      %449 = vmatprep.subr.bf16.mxu0 0
      %450 = vmatpush1.bf16.msra.mxu0 0
      %451 = vmatprep.subr.bf16.mxu0 0
      %452 = vmatpush1.bf16.msra.mxu0 0
      %453 = vmatprep.subr.bf16.mxu0 0
      %454 = vmatpush1.bf16.msra.mxu0 0
      %455 = vmatprep.subr.bf16.mxu0 0
      %456 = vmatpush1.bf16.msra.mxu0 0
      %457 = vmatprep.subr.bf16.mxu0 0
      %458 = vmatpush1.bf16.msra.mxu0 %v438
      %459 = vmatprep.subr.bf16.mxu0 0
      %460 = vmatpush2.bf16.msra.mxu0 0
      %461 = vmatprep.subr.bf16.mxu0 0
      %462 = vmatpush2.bf16.msra.mxu0 0
      %463 = vmatprep.subr.bf16.mxu0 0
      %464 = vmatpush2.bf16.msra.mxu0 0
      %465 = vmatprep.subr.bf16.mxu0 0
      %466 = vmatpush2.bf16.msra.mxu0 0
      %467 = vmatprep.subr.bf16.mxu0 0
      %468 = vmatpush2.bf16.msra.mxu0 0
      %469 = vmatprep.subr.bf16.mxu0 0
      %470 = vmatpush2.bf16.msra.mxu0 0
      %471 = vmatprep.subr.bf16.mxu0 0
      %472 = vmatpush2.bf16.msra.mxu0 0
      %473 = vmatprep.subr.bf16.mxu0 0
      %474 = vmatpush2.bf16.msra.mxu0 0
      %475 = vmatprep.mubr.bf16.mxu0 0
      %476 = vmatmul.mubr.bf16.gmra.mxu0 %v441
      %v477 = vpop.f32.mrf.mxu0
      %v478 = vadd.f32 0.0, %v477
      %v479 = vpop.f32.mrf.mxu0
      %v480 = vpop.f32.mrf.mxu0
      %v481 = vpop.f32.mrf.mxu0
      %482 = vdwg.mxu0
      %483 = vrot.lane.b32.xlu0 %v262, 112
      %v484 = vpop.permute.xlu0 %483
      %485 = vrot.lane.b32.xlu0 %v265, 112
      %v486 = vpop.permute.xlu0 %485
      %v488 = vsel %vm269, %v484, 0
      %v491 = vsel %vm269, %v486, 0
      %493 = vmatprep.subr.bf16.mxu0 0
      %494 = vmatpush1.bf16.xpose.msra.mxu0 0
      %495 = vmatprep.subr.bf16.mxu0 0
      %496 = vmatpush1.bf16.xpose.msra.mxu0 0
      %497 = vmatprep.subr.bf16.mxu0 0
      %498 = vmatpush1.bf16.xpose.msra.mxu0 0
      %499 = vmatprep.subr.bf16.mxu0 0
      %500 = vmatpush1.bf16.xpose.msra.mxu0 0
      %501 = vmatprep.subr.bf16.mxu0 0
      %502 = vmatpush1.bf16.xpose.msra.mxu0 0
      %503 = vmatprep.subr.bf16.mxu0 0
      %504 = vmatpush1.bf16.xpose.msra.mxu0 0
      %505 = vmatprep.subr.bf16.mxu0 0
      %506 = vmatpush1.bf16.xpose.msra.mxu0 0
      %507 = vmatprep.subr.bf16.mxu0 0
      %508 = vmatpush1.bf16.xpose.msra.mxu0 %v491
      %509 = vmatprep.subr.bf16.mxu0 0
      %510 = vmatpush2.bf16.xpose.msra.mxu0 0
      %511 = vmatprep.subr.bf16.mxu0 0
      %512 = vmatpush2.bf16.xpose.msra.mxu0 0
      %513 = vmatprep.subr.bf16.mxu0 0
      %514 = vmatpush2.bf16.xpose.msra.mxu0 0
      %515 = vmatprep.subr.bf16.mxu0 0
      %516 = vmatpush2.bf16.xpose.msra.mxu0 0
      %517 = vmatprep.subr.bf16.mxu0 0
      %518 = vmatpush2.bf16.xpose.msra.mxu0 0
      %519 = vmatprep.subr.bf16.mxu0 0
      %520 = vmatpush2.bf16.xpose.msra.mxu0 0
      %521 = vmatprep.subr.bf16.mxu0 0
      %522 = vmatpush2.bf16.xpose.msra.mxu0 0
      %523 = vmatprep.subr.bf16.mxu0 0
      %524 = vmatpush2.bf16.xpose.msra.mxu0 0
      %525 = vmatprep.mubr.bf16.mxu0 0
      %526 = vmatmul.mubr.bf16.gmra.mxu0 %v488
      %v527 = vpop.f32.mrf.mxu0
      %v528 = vadd.f32 0.0, %v527
      %v529 = vpop.f32.mrf.mxu0
      %v530 = vpop.f32.mrf.mxu0
      %v531 = vpop.f32.mrf.mxu0
      %532 = vdwg.mxu0
      %v533 = vsel %vm316, %v528, -inf
      %534 = vmax.xlane.f32.xlu0 %v533
      %v535 = vpop.xlane.xlu0 %534
      %v536 = vsub.f32 %v528, %v535
      %v537 = vmul.f32 %v536, 1.442695
      %v538 = vpow.pop %v537
      %v539 = vsel %vm316, %v538, 0.0
      %540 = vadd.xlane.f32.xlu0 %v539
      %v541 = vpop.xlane.xlu0 %540
      %v542 = vrcp.pop %v541
      %v543 = vmul.f32 %v538, %v542
      %v544 = vpack.c.bf16 %v543, %v543
      %545 = vrot.lane.b32.xlu0 %v268, 112
      %v546 = vpop.permute.xlu0 %545
      %v549 = vsel %vm316, %v544, 0
      %551 = vmatprep.subr.bf16.mxu0 0
      %552 = vmatpush1.bf16.msra.mxu0 0
      %553 = vmatprep.subr.bf16.mxu0 0
      %554 = vmatpush1.bf16.msra.mxu0 0
      %555 = vmatprep.subr.bf16.mxu0 0
      %556 = vmatpush1.bf16.msra.mxu0 0
      %557 = vmatprep.subr.bf16.mxu0 0
      %558 = vmatpush1.bf16.msra.mxu0 0
      %559 = vmatprep.subr.bf16.mxu0 0
      %560 = vmatpush1.bf16.msra.mxu0 0
      %561 = vmatprep.subr.bf16.mxu0 0
      %562 = vmatpush1.bf16.msra.mxu0 0
      %563 = vmatprep.subr.bf16.mxu0 0
      %564 = vmatpush1.bf16.msra.mxu0 0
      %565 = vmatprep.subr.bf16.mxu0 0
      %566 = vmatpush1.bf16.msra.mxu0 %v546
      %567 = vmatprep.subr.bf16.mxu0 0
      %568 = vmatpush2.bf16.msra.mxu0 0
      %569 = vmatprep.subr.bf16.mxu0 0
      %570 = vmatpush2.bf16.msra.mxu0 0
      %571 = vmatprep.subr.bf16.mxu0 0
      %572 = vmatpush2.bf16.msra.mxu0 0
      %573 = vmatprep.subr.bf16.mxu0 0
      %574 = vmatpush2.bf16.msra.mxu0 0
      %575 = vmatprep.subr.bf16.mxu0 0
      %576 = vmatpush2.bf16.msra.mxu0 0
      %577 = vmatprep.subr.bf16.mxu0 0
      %578 = vmatpush2.bf16.msra.mxu0 0
      %579 = vmatprep.subr.bf16.mxu0 0
      %580 = vmatpush2.bf16.msra.mxu0 0
      %581 = vmatprep.subr.bf16.mxu0 0
      %582 = vmatpush2.bf16.msra.mxu0 0
      %583 = vmatprep.mubr.bf16.mxu0 0
      %584 = vmatmul.mubr.bf16.gmra.mxu0 %v549
      %v585 = vpop.f32.mrf.mxu0
      %v586 = vadd.f32 0.0, %v585
      %v587 = vpop.f32.mrf.mxu0
      %v588 = vpop.f32.mrf.mxu0
      %v589 = vpop.f32.mrf.mxu0
      %590 = vdwg.mxu0
      %591 = vrot.lane.b32.xlu0 %v262, 104
      %v592 = vpop.permute.xlu0 %591
      %593 = vrot.lane.b32.xlu0 %v265, 104
      %v594 = vpop.permute.xlu0 %593
      %v596 = vsel %vm269, %v592, 0
      %v599 = vsel %vm269, %v594, 0
      %601 = vmatprep.subr.bf16.mxu0 0
      %602 = vmatpush1.bf16.xpose.msra.mxu0 0
      %603 = vmatprep.subr.bf16.mxu0 0
      %604 = vmatpush1.bf16.xpose.msra.mxu0 0
      %605 = vmatprep.subr.bf16.mxu0 0
      %606 = vmatpush1.bf16.xpose.msra.mxu0 0
      %607 = vmatprep.subr.bf16.mxu0 0
      %608 = vmatpush1.bf16.xpose.msra.mxu0 0
      %609 = vmatprep.subr.bf16.mxu0 0
      %610 = vmatpush1.bf16.xpose.msra.mxu0 0
      %611 = vmatprep.subr.bf16.mxu0 0
      %612 = vmatpush1.bf16.xpose.msra.mxu0 0
      %613 = vmatprep.subr.bf16.mxu0 0
      %614 = vmatpush1.bf16.xpose.msra.mxu0 0
      %615 = vmatprep.subr.bf16.mxu0 0
      %616 = vmatpush1.bf16.xpose.msra.mxu0 %v599
      %617 = vmatprep.subr.bf16.mxu0 0
      %618 = vmatpush2.bf16.xpose.msra.mxu0 0
      %619 = vmatprep.subr.bf16.mxu0 0
      %620 = vmatpush2.bf16.xpose.msra.mxu0 0
      %621 = vmatprep.subr.bf16.mxu0 0
      %622 = vmatpush2.bf16.xpose.msra.mxu0 0
      %623 = vmatprep.subr.bf16.mxu0 0
      %624 = vmatpush2.bf16.xpose.msra.mxu0 0
      %625 = vmatprep.subr.bf16.mxu0 0
      %626 = vmatpush2.bf16.xpose.msra.mxu0 0
      %627 = vmatprep.subr.bf16.mxu0 0
      %628 = vmatpush2.bf16.xpose.msra.mxu0 0
      %629 = vmatprep.subr.bf16.mxu0 0
      %630 = vmatpush2.bf16.xpose.msra.mxu0 0
      %631 = vmatprep.subr.bf16.mxu0 0
      %632 = vmatpush2.bf16.xpose.msra.mxu0 0
      %633 = vmatprep.mubr.bf16.mxu0 0
      %634 = vmatmul.mubr.bf16.gmra.mxu0 %v596
      %v635 = vpop.f32.mrf.mxu0
      %v636 = vadd.f32 0.0, %v635
      %v637 = vpop.f32.mrf.mxu0
      %v638 = vpop.f32.mrf.mxu0
      %v639 = vpop.f32.mrf.mxu0
      %640 = vdwg.mxu0
      %v641 = vsel %vm316, %v636, -inf
      %642 = vmax.xlane.f32.xlu0 %v641
      %v643 = vpop.xlane.xlu0 %642
      %v644 = vsub.f32 %v636, %v643
      %v645 = vmul.f32 %v644, 1.442695
      %v646 = vpow.pop %v645
      %v647 = vsel %vm316, %v646, 0.0
      %648 = vadd.xlane.f32.xlu0 %v647
      %v649 = vpop.xlane.xlu0 %648
      %v650 = vrcp.pop %v649
      %v651 = vmul.f32 %v646, %v650
      %v652 = vpack.c.bf16 %v651, %v651
      %653 = vrot.lane.b32.xlu0 %v268, 104
      %v654 = vpop.permute.xlu0 %653
      %v657 = vsel %vm316, %v652, 0
      %659 = vmatprep.subr.bf16.mxu0 0
      %660 = vmatpush1.bf16.msra.mxu0 0
      %661 = vmatprep.subr.bf16.mxu0 0
      %662 = vmatpush1.bf16.msra.mxu0 0
      %663 = vmatprep.subr.bf16.mxu0 0
      %664 = vmatpush1.bf16.msra.mxu0 0
      %665 = vmatprep.subr.bf16.mxu0 0
      %666 = vmatpush1.bf16.msra.mxu0 0
      %667 = vmatprep.subr.bf16.mxu0 0
      %668 = vmatpush1.bf16.msra.mxu0 0
      %669 = vmatprep.subr.bf16.mxu0 0
      %670 = vmatpush1.bf16.msra.mxu0 0
      %671 = vmatprep.subr.bf16.mxu0 0
      %672 = vmatpush1.bf16.msra.mxu0 0
      %673 = vmatprep.subr.bf16.mxu0 0
      %674 = vmatpush1.bf16.msra.mxu0 %v654
      %675 = vmatprep.subr.bf16.mxu0 0
      %676 = vmatpush2.bf16.msra.mxu0 0
      %677 = vmatprep.subr.bf16.mxu0 0
      %678 = vmatpush2.bf16.msra.mxu0 0
      %679 = vmatprep.subr.bf16.mxu0 0
      %680 = vmatpush2.bf16.msra.mxu0 0
      %681 = vmatprep.subr.bf16.mxu0 0
      %682 = vmatpush2.bf16.msra.mxu0 0
      %683 = vmatprep.subr.bf16.mxu0 0
      %684 = vmatpush2.bf16.msra.mxu0 0
      %685 = vmatprep.subr.bf16.mxu0 0
      %686 = vmatpush2.bf16.msra.mxu0 0
      %687 = vmatprep.subr.bf16.mxu0 0
      %688 = vmatpush2.bf16.msra.mxu0 0
      %689 = vmatprep.subr.bf16.mxu0 0
      %690 = vmatpush2.bf16.msra.mxu0 0
      %691 = vmatprep.mubr.bf16.mxu0 0
      %692 = vmatmul.mubr.bf16.gmra.mxu0 %v657
      %v693 = vpop.f32.mrf.mxu0
      %v694 = vadd.f32 0.0, %v693
      %v695 = vpop.f32.mrf.mxu0
      %v696 = vpop.f32.mrf.mxu0
      %v697 = vpop.f32.mrf.mxu0
      %698 = vdwg.mxu0
      %700 = vrot.lane.b32.xlu0 %v478, 8
      %v701 = vpop.permute.xlu0 %700
      %704 = vrot.lane.b32.xlu0 %v586, 16
      %v705 = vpop.permute.xlu0 %704
      %708 = vrot.lane.b32.xlu0 %v694, 24
      %v709 = vpop.permute.xlu0 %708
      %v711 = vsel %vm269, %v367, %v701
      %v712 = vsel %vm316, %v711, %v705
      %vm713 = vcmask 195584
      %v714 = vsel %vm713, %v712, %v709
      %vm715 = vcmask 261120
      %716 = vst.msk [vmem:[%s258] sm:$0xff] %vm715, %v714
      %p717 = scmp.lt.s32.totalorder %s18, 1
      %s718 = scalar_select %p717, %s18, 1
      %p719 = scmp.lt.s32.totalorder %s19, 0
      %s720 = scalar_select %p719, %s19, 0
      %s721 = sadd.s32 %s720, %s718
      %s722 = smul.addr %s721, 8
      %s723 = scalar_lea.vmem %s3, %s722
      // Predicated region
      $region33: #{_lambda_.32} parent=31 // pred_check
        %p724 = pneg %p130
      $region34: #{_lambda_.32} parent=31 // pred_check_branch
        %726 = sbr.rel (%p724) target = $region36
      $region35: #{_lambda_.32} parent=31 // pred_region
        _
      $region36: #{_lambda_.32} parent=31 // pred_fallthru
        _
    $region32: #{_lambda_.32} parent=5 // pred_fallthru
      _
    %p727 = scmp.le.s32.totalorder 2, %s9
    // Predicated region
    $region37: #{_lambda_.32} parent=5 // pred_check
      %p728 = pneg %p727
    $region38: #{_lambda_.32} parent=5 // pred_check_branch
      %730 = sbr.rel (%p728) target = $region40
    $region39: #{_lambda_.32} parent=5 // pred_region
      %s731 = ssub.s32 %s9, 2
      // Predicated region
      $region41: #{_lambda_.32} parent=39 // pred_check
        %p732 = pneg %p136
      $region42: #{_lambda_.32} parent=39 // pred_check_branch
        %734 = sbr.rel (%p732) target = $region44
      $region43: #{_lambda_.32} parent=39 // pred_region
        %p735 = scmp.lt.s32.totalorder %s20, 1
        %s736 = scalar_select %p735, %s20, 1
        %p737 = scmp.lt.s32.totalorder %s21, 0
        %s738 = scalar_select %p737, %s21, 0
        %s739 = sadd.s32 %s738, %s736
        %s740 = smul.addr %s739, 8
        %s741 = scalar_lea.vmem %s3, %s740
      $region44: #{_lambda_.32} parent=39 // pred_fallthru
        _
    $region40: #{_lambda_.32} parent=5 // pred_fallthru
      _
  $region6: #{_lambda_.32} parent=0 // loop_footer
    %s13 = sadd.s32 1, %s9
  $region7: #{_lambda_.32} parent=0 // loop_footer_branch
    %8 = sbr.rel target = $region3
  $region8: #{_lambda_.32} parent=0 // loop_exit
    _

// kernel: _lambda_.35
$region0: #{_lambda_.35}
  #allocation0 [shape = 'u32[]', space=smem, size = 0x4, offset = 0x4, fixed_abs, tag = 'smem constant byte address 0x4 - core index']
  #allocation1 [shape = 'u32[144,128]{1,0:T(1,128)}', space=vmem, size = 0x12000, scoped, tag = 'internal scratch']
  #allocation2 [shape = 'f32[16,64]{1,0:T(8,128)}', space=vmem, size = 0x2000, scoped, tag = 'scratch operand']
  %s0 = inlined_call_operand.vmem [shape: f32[16,32], index: 0, kind: input, shape index: {}]
  %s1 = inlined_call_operand.vmem [shape: bf16[32,64], index: 1, kind: input, shape index: {}]
  %s2 = inlined_call_operand.vmem [shape: f32[1,64], index: 2, kind: input, shape index: {}]
  %s3 = inlined_call_operand.vmem [shape: f32[16,64], index: 3, kind: output, shape index: {}]
  %s4 = sld [smem:[#allocation0]]
  $region30: #{_lambda_.35} parent=0
    _
  %s6 = ssub.s32 1, %s4
  %s7 = scalar_select 0, %s6, %s4
  // Predicated region
  $region2: #{_lambda_.35} parent=0 // pred_check
    _
  $region3: #{_lambda_.35} parent=0 // pred_check_branch
    %9 = sbr.rel (0) target = $region5
  $region4: #{_lambda_.35} parent=0 // pred_region
    _
  $region5: #{_lambda_.35} parent=0 // pred_fallthru
    _
  // Predicated region
  $region6: #{_lambda_.35} parent=0 // pred_check
    _
  $region7: #{_lambda_.35} parent=0 // pred_check_branch
    %11 = sbr.rel (0) target = $region9
  $region8: #{_lambda_.35} parent=0 // pred_region
    _
  $region9: #{_lambda_.35} parent=0 // pred_fallthru
    _
  // Predicated region
  $region10: #{_lambda_.35} parent=0 // pred_check
    _
  $region11: #{_lambda_.35} parent=0 // pred_check_branch
    %13 = sbr.rel (0) target = $region13
  $region12: #{_lambda_.35} parent=0 // pred_region
    _
  $region13: #{_lambda_.35} parent=0 // pred_fallthru
    _
  %p15 = scmp.eq.s32.totalorder 0, 0
  // Predicated region
  $region14: #{_lambda_.35} parent=0 // pred_check
    %p16 = pneg %p15
  $region15: #{_lambda_.35} parent=0 // pred_check_branch
    %18 = sbr.rel (%p16) target = $region17
  $region16: #{_lambda_.35} parent=0 // pred_region
    %vm19 = vcmask 523264
    %20 = vst.msk [vmem:[#allocation2] sm:$0xff] %vm19, 0.0
    %21 = vst.msk [vmem:[#allocation2 + $0x8] sm:$0xff] %vm19, 0.0
  $region17: #{_lambda_.35} parent=0 // pred_fallthru
    _
  %v22 = vld [vmem:[#allocation2] sm:$0xff]
  %v23 = vld [vmem:[#allocation2 + $0x8] sm:$0xff]
  %v24 = vld [vmem:[%s0] sm:$0xff]
  %v25 = vld [vmem:[%s0 + $0x8] sm:$0xff]
  %v26 = vpack.c.bf16 %v25, %v24
  %v27 = vld [vmem:[%s1] sm:$0xf]
  %v28 = vld [vmem:[%s1 + $0x4] sm:$0xf]
  %v29 = vld [vmem:[%s1 + $0x8] sm:$0xf]
  %v30 = vld [vmem:[%s1 + $0xc] sm:$0xf]
  %v35 = vunpack.c.l.b16 %v27
  %v36 = vunpack.c.l.b16 %v28
  %v37 = vunpack.c.l.b16 %v29
  %v38 = vunpack.c.l.b16 %v30
  %v39 = vpack.c.b16 %v36, %v35
  %v40 = vpack.c.b16 %v38, %v37
  %vm43 = vcmask 261120
  %v45 = vsel %vm43, %v26, 0
  %47 = vmatprep.subr.bf16.mxu0 0
  %48 = vmatpush1.bf16.msra.mxu0 0
  %49 = vmatprep.subr.bf16.mxu0 0
  %50 = vmatpush1.bf16.msra.mxu0 0
  %51 = vmatprep.subr.bf16.mxu0 0
  %52 = vmatpush1.bf16.msra.mxu0 0
  %53 = vmatprep.subr.bf16.mxu0 0
  %54 = vmatpush1.bf16.msra.mxu0 0
  %55 = vmatprep.subr.bf16.mxu0 0
  %56 = vmatpush1.bf16.msra.mxu0 0
  %57 = vmatprep.subr.bf16.mxu0 0
  %58 = vmatpush1.bf16.msra.mxu0 0
  %59 = vmatprep.subr.bf16.mxu0 0
  %60 = vmatpush1.bf16.msra.mxu0 %v40
  %61 = vmatprep.subr.bf16.mxu0 0
  %62 = vmatpush1.bf16.msra.mxu0 %v39
  %63 = vmatprep.subr.bf16.mxu0 0
  %64 = vmatpush2.bf16.msra.mxu0 0
  %65 = vmatprep.subr.bf16.mxu0 0
  %66 = vmatpush2.bf16.msra.mxu0 0
  %67 = vmatprep.subr.bf16.mxu0 0
  %68 = vmatpush2.bf16.msra.mxu0 0
  %69 = vmatprep.subr.bf16.mxu0 0
  %70 = vmatpush2.bf16.msra.mxu0 0
  %71 = vmatprep.subr.bf16.mxu0 0
  %72 = vmatpush2.bf16.msra.mxu0 0
  %73 = vmatprep.subr.bf16.mxu0 0
  %74 = vmatpush2.bf16.msra.mxu0 0
  %75 = vmatprep.subr.bf16.mxu0 0
  %76 = vmatpush2.bf16.msra.mxu0 0
  %77 = vmatprep.subr.bf16.mxu0 0
  %78 = vmatpush2.bf16.msra.mxu0 0
  %79 = vmatprep.mubr.bf16.mxu0 0
  %80 = vmatmul.mubr.bf16.gmra.mxu0 %v45
  %v81 = vpop.f32.mrf.mxu0
  %v82 = vadd.f32 0.0, %v81
  %v83 = vpop.f32.mrf.mxu0
  %v84 = vpop.f32.mrf.mxu0
  %v85 = vadd.f32 0.0, %v84
  %v86 = vpop.f32.mrf.mxu0
  %87 = vdwg.mxu0
  %v88 = vadd.f32 %v22, %v82
  %v89 = vadd.f32 %v23, %v85
  %vm90 = vcmask 523264
  %91 = vst.msk [vmem:[#allocation2] sm:$0xff] %vm90, %v88
  %92 = vst.msk [vmem:[#allocation2 + $0x8] sm:$0xff] %vm90, %v89
  // Predicated region
  $region18: #{_lambda_.35} parent=0 // pred_check
    %p93 = pneg %p15
  $region19: #{_lambda_.35} parent=0 // pred_check_branch
    %95 = sbr.rel (%p93) target = $region21
  $region20: #{_lambda_.35} parent=0 // pred_region
    %v96 = vld [vmem:[#allocation2] sm:$0xff]
    %v97 = vld [vmem:[#allocation2 + $0x8] sm:$0xff]
    %v98 = vld [vmem:[%s2] sm:$0x1]
    %v100 = vlaneseq
    %v101 = vshrl.u32 %v100, 7
    %v102 = vsub.s32 0, %v101
    %v103 = vrot.slane %v98, %v102
    %v105 = vadd.f32 %v96, %v103
    %v106 = vadd.f32 %v97, %v103
    %v107 = vmul.f32 %v105, 0.5
    %v108 = vmul.f32 %v106, 0.5
    %v109 = vmul.f32 %v105, 0.70710677
    %v110 = vmul.f32 %v106, 0.70710677
    %v111 = verf.f32.pop %v109
    %v112 = verf.f32.pop %v110
    %v113 = vadd.f32 %v111, 1.0
    %v114 = vadd.f32 %v112, 1.0
    %v115 = vmul.f32 %v107, %v113
    %v116 = vmul.f32 %v108, %v114
    %117 = vst.msk [vmem:[%s3] sm:$0xff] %vm90, %v115
    %118 = vst.msk [vmem:[%s3 + $0x8] sm:$0xff] %vm90, %v116
  $region21: #{_lambda_.35} parent=0 // pred_fallthru
    _
  // Predicated region
  $region22: #{_lambda_.35} parent=0 // pred_check
    _
  $region23: #{_lambda_.35} parent=0 // pred_check_branch
    %120 = sbr.rel (0) target = $region25
  $region24: #{_lambda_.35} parent=0 // pred_region
    _
  $region25: #{_lambda_.35} parent=0 // pred_fallthru
    _
  // Predicated region
  $region26: #{_lambda_.35} parent=0 // pred_check
    _
  $region27: #{_lambda_.35} parent=0 // pred_check_branch
    %122 = sbr.rel (0) target = $region29
  $region28: #{_lambda_.35} parent=0 // pred_region
    _
  $region29: #{_lambda_.35} parent=0 // pred_fallthru
    _

// kernel: _lambda_.36
$region0: #{_lambda_.36}
  #allocation0 [shape = 'u32[]', space=smem, size = 0x4, offset = 0x4, fixed_abs, tag = 'smem constant byte address 0x4 - core index']
  #allocation1 [shape = 'u32[144,128]{1,0:T(1,128)}', space=vmem, size = 0x12000, scoped, tag = 'internal scratch']
  #allocation2 [shape = 'f32[16,32]{1,0:T(8,128)}', space=vmem, size = 0x2000, scoped, tag = 'scratch operand']
  %s0 = inlined_call_operand.vmem [shape: f32[16,64], index: 0, kind: input, shape index: {}]
  %s1 = inlined_call_operand.vmem [shape: bf16[64,32], index: 1, kind: input, shape index: {}]
  %s2 = inlined_call_operand.vmem [shape: f32[1,32], index: 2, kind: input, shape index: {}]
  %s3 = inlined_call_operand.vmem [shape: f32[16,32], index: 3, kind: input, shape index: {}]
  %s4 = inlined_call_operand.vmem [shape: f32[16,32], index: 4, kind: output, shape index: {}]
  %s5 = sld [smem:[#allocation0]]
  $region34: #{_lambda_.36} parent=0
    _
  %s7 = ssub.s32 1, %s5
  %s8 = scalar_select 0, %s7, %s5
  // Predicated region
  $region2: #{_lambda_.36} parent=0 // pred_check
    _
  $region3: #{_lambda_.36} parent=0 // pred_check_branch
    %10 = sbr.rel (0) target = $region5
  $region4: #{_lambda_.36} parent=0 // pred_region
    _
  $region5: #{_lambda_.36} parent=0 // pred_fallthru
    _
  // Predicated region
  $region6: #{_lambda_.36} parent=0 // pred_check
    _
  $region7: #{_lambda_.36} parent=0 // pred_check_branch
    %12 = sbr.rel (0) target = $region9
  $region8: #{_lambda_.36} parent=0 // pred_region
    _
  $region9: #{_lambda_.36} parent=0 // pred_fallthru
    _
  // Predicated region
  $region10: #{_lambda_.36} parent=0 // pred_check
    _
  $region11: #{_lambda_.36} parent=0 // pred_check_branch
    %14 = sbr.rel (0) target = $region13
  $region12: #{_lambda_.36} parent=0 // pred_region
    _
  $region13: #{_lambda_.36} parent=0 // pred_fallthru
    _
  // Predicated region
  $region14: #{_lambda_.36} parent=0 // pred_check
    _
  $region15: #{_lambda_.36} parent=0 // pred_check_branch
    %16 = sbr.rel (0) target = $region17
  $region16: #{_lambda_.36} parent=0 // pred_region
    _
  $region17: #{_lambda_.36} parent=0 // pred_fallthru
    _
  %p18 = scmp.eq.s32.totalorder 0, 0
  // Predicated region
  $region18: #{_lambda_.36} parent=0 // pred_check
    %p19 = pneg %p18
  $region19: #{_lambda_.36} parent=0 // pred_check_branch
    %21 = sbr.rel (%p19) target = $region21
  $region20: #{_lambda_.36} parent=0 // pred_region
    %vm22 = vcmask 261120
    %23 = vst.msk [vmem:[#allocation2] sm:$0xff] %vm22, 0.0
    %24 = vst.msk [vmem:[#allocation2 + $0x8] sm:$0xff] %vm22, 0.0
  $region21: #{_lambda_.36} parent=0 // pred_fallthru
    _
  %v25 = vld [vmem:[#allocation2] sm:$0xff]
  %v26 = vld [vmem:[#allocation2 + $0x8] sm:$0xff]
  %v27 = vld [vmem:[%s0] sm:$0xff]
  %v28 = vld [vmem:[%s0 + $0x8] sm:$0xff]
  %v29 = vpack.c.bf16 %v28, %v27
  %v30 = vld [vmem:[%s1] sm:$0xf]
  %v31 = vld [vmem:[%s1 + $0x4] sm:$0xf]
  %v32 = vld [vmem:[%s1 + $0x8] sm:$0xf]
  %v33 = vld [vmem:[%s1 + $0xc] sm:$0xf]
  %v34 = vld [vmem:[%s1 + $0x10] sm:$0xf]
  %v35 = vld [vmem:[%s1 + $0x14] sm:$0xf]
  %v36 = vld [vmem:[%s1 + $0x18] sm:$0xf]
  %v37 = vld [vmem:[%s1 + $0x1c] sm:$0xf]
  %v46 = vunpack.c.l.b16 %v30
  %v47 = vunpack.c.l.b16 %v31
  %v48 = vunpack.c.l.b16 %v32
  %v49 = vunpack.c.l.b16 %v33
  %v50 = vunpack.c.l.b16 %v34
  %v51 = vunpack.c.l.b16 %v35
  %v52 = vunpack.c.l.b16 %v36
  %v53 = vunpack.c.l.b16 %v37
  %v54 = vpack.c.b16 %v47, %v46
  %v55 = vpack.c.b16 %v49, %v48
  %v56 = vpack.c.b16 %v51, %v50
  %v57 = vpack.c.b16 %v53, %v52
  %vm62 = vcmask 523264
  %v64 = vsel %vm62, %v29, 0
  %66 = vmatprep.subr.bf16.mxu0 0
  %67 = vmatpush1.bf16.msra.mxu0 0
  %68 = vmatprep.subr.bf16.mxu0 0
  %69 = vmatpush1.bf16.msra.mxu0 0
  %70 = vmatprep.subr.bf16.mxu0 0
  %71 = vmatpush1.bf16.msra.mxu0 0
  %72 = vmatprep.subr.bf16.mxu0 0
  %73 = vmatpush1.bf16.msra.mxu0 0
  %74 = vmatprep.subr.bf16.mxu0 0
  %75 = vmatpush1.bf16.msra.mxu0 %v57
  %76 = vmatprep.subr.bf16.mxu0 0
  %77 = vmatpush1.bf16.msra.mxu0 %v56
  %78 = vmatprep.subr.bf16.mxu0 0
  %79 = vmatpush1.bf16.msra.mxu0 %v55
  %80 = vmatprep.subr.bf16.mxu0 0
  %81 = vmatpush1.bf16.msra.mxu0 %v54
  %82 = vmatprep.subr.bf16.mxu0 0
  %83 = vmatpush2.bf16.msra.mxu0 0
  %84 = vmatprep.subr.bf16.mxu0 0
  %85 = vmatpush2.bf16.msra.mxu0 0
  %86 = vmatprep.subr.bf16.mxu0 0
  %87 = vmatpush2.bf16.msra.mxu0 0
  %88 = vmatprep.subr.bf16.mxu0 0
  %89 = vmatpush2.bf16.msra.mxu0 0
  %90 = vmatprep.subr.bf16.mxu0 0
  %91 = vmatpush2.bf16.msra.mxu0 0
  %92 = vmatprep.subr.bf16.mxu0 0
  %93 = vmatpush2.bf16.msra.mxu0 0
  %94 = vmatprep.subr.bf16.mxu0 0
  %95 = vmatpush2.bf16.msra.mxu0 0
  %96 = vmatprep.subr.bf16.mxu0 0
  %97 = vmatpush2.bf16.msra.mxu0 0
  %98 = vmatprep.mubr.bf16.mxu0 0
  %99 = vmatmul.mubr.bf16.gmra.mxu0 %v64
  %v100 = vpop.f32.mrf.mxu0
  %v101 = vadd.f32 0.0, %v100
  %v102 = vpop.f32.mrf.mxu0
  %v103 = vpop.f32.mrf.mxu0
  %v104 = vadd.f32 0.0, %v103
  %v105 = vpop.f32.mrf.mxu0
  %106 = vdwg.mxu0
  %v107 = vadd.f32 %v25, %v101
  %v108 = vadd.f32 %v26, %v104
  %vm109 = vcmask 261120
  %110 = vst.msk [vmem:[#allocation2] sm:$0xff] %vm109, %v107
  %111 = vst.msk [vmem:[#allocation2 + $0x8] sm:$0xff] %vm109, %v108
  // Predicated region
  $region22: #{_lambda_.36} parent=0 // pred_check
    %p112 = pneg %p18
  $region23: #{_lambda_.36} parent=0 // pred_check_branch
    %114 = sbr.rel (%p112) target = $region25
  $region24: #{_lambda_.36} parent=0 // pred_region
    %v115 = vld [vmem:[#allocation2] sm:$0xff]
    %v116 = vld [vmem:[#allocation2 + $0x8] sm:$0xff]
    %v117 = vld [vmem:[%s2] sm:$0x1]
    %v119 = vlaneseq
    %v120 = vshrl.u32 %v119, 7
    %v121 = vsub.s32 0, %v120
    %v122 = vrot.slane %v117, %v121
    %v124 = vadd.f32 %v115, %v122
    %v125 = vadd.f32 %v116, %v122
    %v126 = vld [vmem:[%s3] sm:$0xff]
    %v127 = vld [vmem:[%s3 + $0x8] sm:$0xff]
    %v128 = vadd.f32 %v124, %v126
    %v129 = vadd.f32 %v125, %v127
    %130 = vst.msk [vmem:[%s4] sm:$0xff] %vm109, %v128
    %131 = vst.msk [vmem:[%s4 + $0x8] sm:$0xff] %vm109, %v129
  $region25: #{_lambda_.36} parent=0 // pred_fallthru
    _
  // Predicated region
  $region26: #{_lambda_.36} parent=0 // pred_check
    _
  $region27: #{_lambda_.36} parent=0 // pred_check_branch
    %133 = sbr.rel (0) target = $region29
  $region28: #{_lambda_.36} parent=0 // pred_region
    _
  $region29: #{_lambda_.36} parent=0 // pred_fallthru
    _
  // Predicated region
  $region30: #{_lambda_.36} parent=0 // pred_check
    _
  $region31: #{_lambda_.36} parent=0 // pred_check_branch
    %135 = sbr.rel (0) target = $region33
  $region32: #{_lambda_.36} parent=0 // pred_region
    _
  $region33: #{_lambda_.36} parent=0 // pred_fallthru
    _

// kernel: _lambda_.49
$region0: #{_lambda_.49}
  #allocation0 [shape = 'u32[]', space=smem, size = 0x4, offset = 0x4, fixed_abs, tag = 'smem constant byte address 0x4 - core index']
  #allocation1 [shape = 'u32[144,128]{1,0:T(1,128)}', space=vmem, size = 0x12000, scoped, tag = 'internal scratch']
  %s0 = inlined_call_operand.vmem [shape: f32[16,32], index: 0, kind: input, shape index: {}]
  %s1 = inlined_call_operand.vmem [shape: f32[1,32], index: 1, kind: input, shape index: {}]
  %s2 = inlined_call_operand.vmem [shape: f32[1,32], index: 2, kind: input, shape index: {}]
  %s3 = inlined_call_operand.hbm [shape: f32[16,32], index: 3, kind: output, shape index: {}]
  %s4 = sld [smem:[#allocation0]]
  $region22: #{_lambda_.49} parent=0
    _
  %s6 = ssub.s32 1, %s4
  %s7 = scalar_select 0, %s6, %s4
  $region1: #{_lambda_.49} parent=0
    #allocation2 [shape = 'u8[8192]{0}', space=vmem, size = 0x2000, scoped, tag = 'output window, operand 0, single buffered']
    #allocation3 [shape = 's32[1]{0}', space=sflag, size = 0x4, scoped, tag = 'scoped memory for _lambda_.49']
    %8 = vsyncpa [#allocation3], 0
    // Predicated region
    $region2: #{_lambda_.49} parent=1 // pred_check
      _
    $region3: #{_lambda_.49} parent=1 // pred_check_branch
      %10 = sbr.rel (0) target = $region5
    $region4: #{_lambda_.49} parent=1 // pred_region
      _
    $region5: #{_lambda_.49} parent=1 // pred_fallthru
      _
    // Predicated region
    $region6: #{_lambda_.49} parent=1 // pred_check
      _
    $region7: #{_lambda_.49} parent=1 // pred_check_branch
      %12 = sbr.rel (0) target = $region9
    $region8: #{_lambda_.49} parent=1 // pred_region
      _
    $region9: #{_lambda_.49} parent=1 // pred_fallthru
      _
    // Predicated region
    $region10: #{_lambda_.49} parent=1 // pred_check
      _
    $region11: #{_lambda_.49} parent=1 // pred_check_branch
      %14 = sbr.rel (0) target = $region13
    $region12: #{_lambda_.49} parent=1 // pred_region
      _
    $region13: #{_lambda_.49} parent=1 // pred_fallthru
      _
    %v15 = vld [vmem:[%s0] sm:$0xff]
    %v16 = vld [vmem:[%s0 + $0x8] sm:$0xff]
    %vm17 = vcmask 261120
    %v18 = vsel %vm17, %v15, 0.0
    %19 = vadd.xlane.f32.xlu0 %v18
    %v20 = vpop.xlane.xlu0 %19
    %v21 = vsel %vm17, %v16, 0.0
    %22 = vadd.xlane.f32.xlu0 %v21
    %v23 = vpop.xlane.xlu0 %22
    %v24 = vrcp.pop 32.0
    %v25 = vmul.f32 %v20, %v24
    %v26 = vmul.f32 %v23, %v24
    %v27 = vsub.f32 %v15, %v25
    %v28 = vsub.f32 %v16, %v26
    %v29 = vmul.f32 %v27, %v27
    %v30 = vmul.f32 %v28, %v28
    %v31 = vsel %vm17, %v29, 0.0
    %32 = vadd.xlane.f32.xlu0 %v31
    %v33 = vpop.xlane.xlu0 %32
    %v34 = vsel %vm17, %v30, 0.0
    %35 = vadd.xlane.f32.xlu0 %v34
    %v36 = vpop.xlane.xlu0 %35
    %v37 = vmul.f32 %v33, %v24
    %v38 = vmul.f32 %v36, %v24
    %v39 = vadd.f32 %v37, 1e-05
    %v40 = vadd.f32 %v38, 1e-05
    %v41 = vrsqrt.pop %v39
    %v42 = vrsqrt.pop %v40
    %v43 = vmul.f32 %v27, %v41
    %v44 = vmul.f32 %v28, %v42
    %v45 = vld [vmem:[%s1] sm:$0x1]
    %v47 = vlaneseq
    %v48 = vshrl.u32 %v47, 7
    %v49 = vsub.s32 0, %v48
    %v50 = vrot.slane %v45, %v49
    %v52 = vmul.f32 %v43, %v50
    %v53 = vmul.f32 %v44, %v50
    %v54 = vld [vmem:[%s2] sm:$0x1]
    %v56 = vlaneseq
    %v57 = vshrl.u32 %v56, 7
    %v58 = vsub.s32 0, %v57
    %v59 = vrot.slane %v54, %v58
    %v61 = vadd.f32 %v52, %v59
    %v62 = vadd.f32 %v53, %v59
    %63 = vst.msk [vmem:[#allocation2] sm:$0xff] %vm17, %v61
    %64 = vst.msk [vmem:[#allocation2 + $0x8] sm:$0xff] %vm17, %v62
    // Predicated region
    $region14: #{_lambda_.49} parent=1 // pred_check
      _
    $region15: #{_lambda_.49} parent=1 // pred_check_branch
      %66 = sbr.rel (0) target = $region17
    $region16: #{_lambda_.49} parent=1 // pred_region
      %s68 = ssub.s32 256, 256
      %69 = vsyncadd [#allocation3], %s68
      %s70 = sshll.u32 [#allocation2], 4
      %s71 = int_to_ptr.vmem [resolvable:$true] %s70
      %76 = dma.vmem_to_hbm [thread:$0]  %s71, 256, %s3, [#allocation3], 128, 128, 8
    $region17: #{_lambda_.49} parent=1 // pred_fallthru
      _
    // Predicated region
    $region18: #{_lambda_.49} parent=1 // pred_check
      _
    $region19: #{_lambda_.49} parent=1 // pred_check_branch
      %78 = sbr.rel (0) target = $region21
    $region20: #{_lambda_.49} parent=1 // pred_region
      %79 = dma.done [#allocation3], 256
    $region21: #{_lambda_.49} parent=1 // pred_fallthru
      _
    %80 = vsyncpa [#allocation3], 1

</llo_original>
